<compile_context>
chip_gen: v6e
topology: v6e:2x2x1
jax: 0.10.0
libtpu: 0.0.40
codegen_flags: <defaults>
</compile_context>

<pallas_src>
import functools

import jax
import jax.numpy as jnp
from jax.experimental import pallas as pl
from jax.experimental.pallas import tpu as pltpu

EPS = 1e-5


# ----------------------------------------------------------------------------
# Fused kernel
# ----------------------------------------------------------------------------
def _bn_train(y, g, bt):
    """BatchNorm1d training mode over rows (axis 0): biased var, eps=1e-5.

    One-pass sum / sum-of-squares; per-channel stats land on the lane axis so
    the scale/shift is a cheap sublane broadcast.
    """
    inv_r = 1.0 / y.shape[0]
    mean = jnp.sum(y, axis=0, keepdims=True) * inv_r
    msq = jnp.sum(y * y, axis=0, keepdims=True) * inv_r
    var = msq - mean * mean
    return (y - mean) * jax.lax.rsqrt(var + EPS) * g + bt


def _pointnet_kernel(*refs, B, N):
    (x_ref, iden_ref,
     # STN3d
     sw1, sb1, sg1, sbt1, sw2, sb2, sg2, sbt2, sw3, sb3, sg3, sbt3,
     sf1w, sf1b, sg4, sbt4, sf2w, sf2b, sg5, sbt5, sf3w, sf3b,
     # PointNetfeat
     fw1, fb1, fg1, fbt1, fw2, fb2, fg2, fbt2, fw3, fb3, fg3, fbt3,
     # classifier
     cf1w, cf1b, cg1, cbt1, cf2w, cf2b, cg2, cbt2, cf3w, cf3b,
     # outputs
     logp_ref, trans_ref) = refs

    def block(h, w_ref, b_ref, g_ref, bt_ref, relu=True):
        # channel-last matmul: (R, Cin) @ (Cin, Cout) -> (R, Cout), Cout on lanes
        y = jnp.dot(h, w_ref[...], preferred_element_type=jnp.float32) + b_ref[...]
        y = _bn_train(y, g_ref[...], bt_ref[...])
        return jnp.maximum(y, 0.0) if relu else y

    x2d = x_ref[...]                                        # (B*N, 3) channel-last

    # ------------------------------- STN3d ---------------------------------
    h = block(x2d, sw1, sb1, sg1, sbt1)                     # (B*N, n)
    h = block(h, sw2, sb2, sg2, sbt2)                       # (B*N, 2n)
    h = block(h, sw3, sb3, sg3, sbt3)                       # (B*N, 16n)
    c_glob = h.shape[-1]
    pooled = jnp.max(h.reshape(B, N, c_glob), axis=1)       # AdaptiveMaxPool1d(1)
    h = block(pooled, sf1w, sf1b, sg4, sbt4)                # (B, 8n)
    h = block(h, sf2w, sf2b, sg5, sbt5)                     # (B, 4n)
    t9 = jnp.dot(h, sf3w[...], preferred_element_type=jnp.float32) + sf3b[...]
    t9 = t9 + iden_ref[...]                                 # (B, 9) + identity
    # Build (B, 3, 3) from lane slices (avoids a lane-splitting reshape).
    trans = jnp.concatenate(
        [t9[:, 0:3][:, None, :],
         t9[:, 3:6][:, None, :],
         t9[:, 6:9][:, None, :]], axis=1)                   # (B, 3, 3)
    trans_ref[...] = trans

    # -------------------- apply learned input transform --------------------
    # PyTorch: x^T @ trans (points channel-last) -> exactly x3d[b] @ trans[b]
    x3d = x2d.reshape(B, N, 3)
    xt = jnp.einsum("bnc,bcd->bnd", x3d, trans,
                    preferred_element_type=jnp.float32)     # (B, N, 3)
    xt2d = xt.reshape(B * N, 3)

    # ---------------------------- PointNetfeat ------------------------------
    h = block(xt2d, fw1, fb1, fg1, fbt1)                    # (B*N, n)
    h = block(h, fw2, fb2, fg2, fbt2)                       # (B*N, 2n)
    h = block(h, fw3, fb3, fg3, fbt3, relu=False)           # (B*N, 16n), no relu
    gfeat = jnp.max(h.reshape(B, N, c_glob), axis=1)        # global feature (B, 16n)

    # ------------------------------ classifier ------------------------------
    h = block(gfeat, cf1w, cf1b, cg1, cbt1)                 # (B, 8n)
    h = block(h, cf2w, cf2b, cg2, cbt2)                     # (B, 4n)
    y = jnp.dot(h, cf3w[...], preferred_element_type=jnp.float32) + cf3b[...]
    m = jnp.max(y, axis=-1, keepdims=True)
    z = y - m
    lse = jnp.log(jnp.sum(jnp.exp(z), axis=-1, keepdims=True))
    logp_ref[...] = z - lse                                 # log_softmax (B, k)


# ----------------------------------------------------------------------------
# Parameter construction (deterministic, PyTorch-like uniform init)
# ----------------------------------------------------------------------------
def _init_linear(key, fout, fin):
    k1, k2 = jax.random.split(key)
    bound = 1.0 / jnp.sqrt(fin)
    w = jax.random.uniform(k1, (fout, fin), jnp.float32, -bound, bound)
    b = jax.random.uniform(k2, (fout,), jnp.float32, -bound, bound)
    return w, b


def _init_bn(c):
    return jnp.ones((c,), jnp.float32), jnp.zeros((c,), jnp.float32)


def make_params(key, n=16, k=2):
    keys = jax.random.split(key, 12)
    p = {}
    # STN3d
    p["stn.conv1.w"], p["stn.conv1.b"] = _init_linear(keys[0], n, 3)
    p["stn.conv2.w"], p["stn.conv2.b"] = _init_linear(keys[1], n * 2, n)
    p["stn.conv3.w"], p["stn.conv3.b"] = _init_linear(keys[2], n * 16, n * 2)
    p["stn.fc1.w"], p["stn.fc1.b"] = _init_linear(keys[3], n * 8, n * 16)
    p["stn.fc2.w"], p["stn.fc2.b"] = _init_linear(keys[4], n * 4, n * 8)
    p["stn.fc3.w"], p["stn.fc3.b"] = _init_linear(keys[5], 9, n * 4)
    p["stn.bn1.g"], p["stn.bn1.b"] = _init_bn(n)
    p["stn.bn2.g"], p["stn.bn2.b"] = _init_bn(n * 2)
    p["stn.bn3.g"], p["stn.bn3.b"] = _init_bn(n * 16)
    p["stn.bn4.g"], p["stn.bn4.b"] = _init_bn(n * 8)
    p["stn.bn5.g"], p["stn.bn5.b"] = _init_bn(n * 4)
    # PointNetfeat
    p["feat.conv1.w"], p["feat.conv1.b"] = _init_linear(keys[6], n, 3)
    p["feat.conv2.w"], p["feat.conv2.b"] = _init_linear(keys[7], n * 2, n)
    p["feat.conv3.w"], p["feat.conv3.b"] = _init_linear(keys[8], n * 16, n * 2)
    p["feat.bn1.g"], p["feat.bn1.b"] = _init_bn(n)
    p["feat.bn2.g"], p["feat.bn2.b"] = _init_bn(n * 2)
    p["feat.bn3.g"], p["feat.bn3.b"] = _init_bn(n * 16)
    # Classification head
    p["cls.fc1.w"], p["cls.fc1.b"] = _init_linear(keys[9], n * 8, n * 16)
    p["cls.fc2.w"], p["cls.fc2.b"] = _init_linear(keys[10], n * 4, n * 8)
    p["cls.fc3.w"], p["cls.fc3.b"] = _init_linear(keys[11], k, n * 4)
    p["cls.bn1.g"], p["cls.bn1.b"] = _init_bn(n * 8)
    p["cls.bn2.g"], p["cls.bn2.b"] = _init_bn(n * 4)
    return p


# ----------------------------------------------------------------------------
# Forward pass wrapper: one fused pallas_call
# ----------------------------------------------------------------------------
def pointnet_cls_forward(x, p):
    B, _, N = x.shape
    k = p["cls.fc3.w"].shape[0]

    # Channel-last, batch-flattened layout: channels on the 128-lane axis.
    x2d = jnp.transpose(x, (0, 2, 1)).reshape(B * N, 3)
    iden = jnp.array([[1., 0., 0., 0., 1., 0., 0., 0., 1.]], jnp.float32)

    wT = lambda name: p[name].T                  # pre-transposed -> (Cin/Fin, Cout/Fout)
    rowv = lambda name: p[name].reshape(1, -1)   # (1, C): channels on lanes

    args = [
        x2d, iden,
        # STN3d
        wT("stn.conv1.w"), rowv("stn.conv1.b"), rowv("stn.bn1.g"), rowv("stn.bn1.b"),
        wT("stn.conv2.w"), rowv("stn.conv2.b"), rowv("stn.bn2.g"), rowv("stn.bn2.b"),
        wT("stn.conv3.w"), rowv("stn.conv3.b"), rowv("stn.bn3.g"), rowv("stn.bn3.b"),
        wT("stn.fc1.w"), rowv("stn.fc1.b"), rowv("stn.bn4.g"), rowv("stn.bn4.b"),
        wT("stn.fc2.w"), rowv("stn.fc2.b"), rowv("stn.bn5.g"), rowv("stn.bn5.b"),
        wT("stn.fc3.w"), rowv("stn.fc3.b"),
        # PointNetfeat
        wT("feat.conv1.w"), rowv("feat.conv1.b"), rowv("feat.bn1.g"), rowv("feat.bn1.b"),
        wT("feat.conv2.w"), rowv("feat.conv2.b"), rowv("feat.bn2.g"), rowv("feat.bn2.b"),
        wT("feat.conv3.w"), rowv("feat.conv3.b"), rowv("feat.bn3.g"), rowv("feat.bn3.b"),
        # classifier
        wT("cls.fc1.w"), rowv("cls.fc1.b"), rowv("cls.bn1.g"), rowv("cls.bn1.b"),
        wT("cls.fc2.w"), rowv("cls.fc2.b"), rowv("cls.bn2.g"), rowv("cls.bn2.b"),
        wT("cls.fc3.w"), rowv("cls.fc3.b"),
    ]

    in_specs = [pl.BlockSpec(a.shape, lambda i, _n=a.ndim: (0,) * _n) for a in args]
    out_shape = (jax.ShapeDtypeStruct((B, k), jnp.float32),
                 jax.ShapeDtypeStruct((B, 3, 3), jnp.float32))
    out_specs = (pl.BlockSpec((B, k), lambda i: (0, 0)),
                 pl.BlockSpec((B, 3, 3), lambda i: (0, 0, 0)))

    logp, trans = pl.pallas_call(
        functools.partial(_pointnet_kernel, B=B, N=N),
        grid=(1,),
        in_specs=in_specs,
        out_specs=out_specs,
        out_shape=out_shape,
        compiler_params=pltpu.CompilerParams(
            dimension_semantics=("arbitrary",)),
    )(*args)
    return logp, trans


if __name__ == "__main__":
    n, k = 16, 2
    B, N = 2, 16          # batch of 2 point clouds, 16 points each, 3 coords
    key = jax.random.PRNGKey(0)
    pkey, xkey = jax.random.split(key)
    params = make_params(pkey, n=n, k=k)
    x = jax.random.normal(xkey, (B, 3, N), jnp.float32)

    fwd = jax.jit(pointnet_cls_forward)
    logp, trans = fwd(x, params)
    jax.block_until_ready((logp, trans))

    assert logp.shape == (B, k) and trans.shape == (B, 3, 3)
    # log_softmax rows must sum (in prob space) to ~1
    assert bool(jnp.all(jnp.abs(jnp.sum(jnp.exp(logp), axis=-1) - 1.0) < 1e-4))
    print("KERNEL_OK")
</pallas_src>

<mosaic_0001>
module attributes {stable_mosaic.version = 11 : i64} {
  func.func @_pointnet_kernel(%arg0: i32, %arg1: memref<32x3xf32, #tpu.memory_space<vmem>>, %arg2: memref<1x9xf32, #tpu.memory_space<vmem>>, %arg3: memref<3x16xf32, #tpu.memory_space<vmem>>, %arg4: memref<1x16xf32, #tpu.memory_space<vmem>>, %arg5: memref<1x16xf32, #tpu.memory_space<vmem>>, %arg6: memref<1x16xf32, #tpu.memory_space<vmem>>, %arg7: memref<16x32xf32, #tpu.memory_space<vmem>>, %arg8: memref<1x32xf32, #tpu.memory_space<vmem>>, %arg9: memref<1x32xf32, #tpu.memory_space<vmem>>, %arg10: memref<1x32xf32, #tpu.memory_space<vmem>>, %arg11: memref<32x256xf32, #tpu.memory_space<vmem>>, %arg12: memref<1x256xf32, #tpu.memory_space<vmem>>, %arg13: memref<1x256xf32, #tpu.memory_space<vmem>>, %arg14: memref<1x256xf32, #tpu.memory_space<vmem>>, %arg15: memref<256x128xf32, #tpu.memory_space<vmem>>, %arg16: memref<1x128xf32, #tpu.memory_space<vmem>>, %arg17: memref<1x128xf32, #tpu.memory_space<vmem>>, %arg18: memref<1x128xf32, #tpu.memory_space<vmem>>, %arg19: memref<128x64xf32, #tpu.memory_space<vmem>>, %arg20: memref<1x64xf32, #tpu.memory_space<vmem>>, %arg21: memref<1x64xf32, #tpu.memory_space<vmem>>, %arg22: memref<1x64xf32, #tpu.memory_space<vmem>>, %arg23: memref<64x9xf32, #tpu.memory_space<vmem>>, %arg24: memref<1x9xf32, #tpu.memory_space<vmem>>, %arg25: memref<3x16xf32, #tpu.memory_space<vmem>>, %arg26: memref<1x16xf32, #tpu.memory_space<vmem>>, %arg27: memref<1x16xf32, #tpu.memory_space<vmem>>, %arg28: memref<1x16xf32, #tpu.memory_space<vmem>>, %arg29: memref<16x32xf32, #tpu.memory_space<vmem>>, %arg30: memref<1x32xf32, #tpu.memory_space<vmem>>, %arg31: memref<1x32xf32, #tpu.memory_space<vmem>>, %arg32: memref<1x32xf32, #tpu.memory_space<vmem>>, %arg33: memref<32x256xf32, #tpu.memory_space<vmem>>, %arg34: memref<1x256xf32, #tpu.memory_space<vmem>>, %arg35: memref<1x256xf32, #tpu.memory_space<vmem>>, %arg36: memref<1x256xf32, #tpu.memory_space<vmem>>, %arg37: memref<256x128xf32, #tpu.memory_space<vmem>>, %arg38: memref<1x128xf32, #tpu.memory_space<vmem>>, %arg39: memref<1x128xf32, #tpu.memory_space<vmem>>, %arg40: memref<1x128xf32, #tpu.memory_space<vmem>>, %arg41: memref<128x64xf32, #tpu.memory_space<vmem>>, %arg42: memref<1x64xf32, #tpu.memory_space<vmem>>, %arg43: memref<1x64xf32, #tpu.memory_space<vmem>>, %arg44: memref<1x64xf32, #tpu.memory_space<vmem>>, %arg45: memref<64x2xf32, #tpu.memory_space<vmem>>, %arg46: memref<1x2xf32, #tpu.memory_space<vmem>>, %arg47: memref<2x2xf32, #tpu.memory_space<vmem>>, %arg48: memref<2x3x3xf32, #tpu.memory_space<vmem>>) attributes {dimension_semantics = [#tpu.dimension_semantics<arbitrary>], iteration_bounds = array<i64: 1>, scalar_prefetch = 0 : i64, scratch_operands = 0 : i64, tpu.core_type = #tpu.core_type<tc>, window_params = [{pipeline_mode = #tpu.pipeline_mode<synchronous>, transform_indices = @transform_0, window_bounds = array<i64: 32, 3>}, {pipeline_mode = #tpu.pipeline_mode<synchronous>, transform_indices = @transform_1, window_bounds = array<i64: 1, 9>}, {pipeline_mode = #tpu.pipeline_mode<synchronous>, transform_indices = @transform_2, window_bounds = array<i64: 3, 16>}, {pipeline_mode = #tpu.pipeline_mode<synchronous>, transform_indices = @transform_3, window_bounds = array<i64: 1, 16>}, {pipeline_mode = #tpu.pipeline_mode<synchronous>, transform_indices = @transform_4, window_bounds = array<i64: 1, 16>}, {pipeline_mode = #tpu.pipeline_mode<synchronous>, transform_indices = @transform_5, window_bounds = array<i64: 1, 16>}, {pipeline_mode = #tpu.pipeline_mode<synchronous>, transform_indices = @transform_6, window_bounds = array<i64: 16, 32>}, {pipeline_mode = #tpu.pipeline_mode<synchronous>, transform_indices = @transform_7, window_bounds = array<i64: 1, 32>}, {pipeline_mode = #tpu.pipeline_mode<synchronous>, transform_indices = @transform_8, window_bounds = array<i64: 1, 32>}, {pipeline_mode = #tpu.pipeline_mode<synchronous>, transform_indices = @transform_9, window_bounds = array<i64: 1, 32>}, {pipeline_mode = #tpu.pipeline_mode<synchronous>, transform_indices = @transform_10, window_bounds = array<i64: 32, 256>}, {pipeline_mode = #tpu.pipeline_mode<synchronous>, transform_indices = @transform_11, window_bounds = array<i64: 1, 256>}, {pipeline_mode = #tpu.pipeline_mode<synchronous>, transform_indices = @transform_12, window_bounds = array<i64: 1, 256>}, {pipeline_mode = #tpu.pipeline_mode<synchronous>, transform_indices = @transform_13, window_bounds = array<i64: 1, 256>}, {pipeline_mode = #tpu.pipeline_mode<synchronous>, transform_indices = @transform_14, window_bounds = array<i64: 256, 128>}, {pipeline_mode = #tpu.pipeline_mode<synchronous>, transform_indices = @transform_15, window_bounds = array<i64: 1, 128>}, {pipeline_mode = #tpu.pipeline_mode<synchronous>, transform_indices = @transform_16, window_bounds = array<i64: 1, 128>}, {pipeline_mode = #tpu.pipeline_mode<synchronous>, transform_indices = @transform_17, window_bounds = array<i64: 1, 128>}, {pipeline_mode = #tpu.pipeline_mode<synchronous>, transform_indices = @transform_18, window_bounds = array<i64: 128, 64>}, {pipeline_mode = #tpu.pipeline_mode<synchronous>, transform_indices = @transform_19, window_bounds = array<i64: 1, 64>}, {pipeline_mode = #tpu.pipeline_mode<synchronous>, transform_indices = @transform_20, window_bounds = array<i64: 1, 64>}, {pipeline_mode = #tpu.pipeline_mode<synchronous>, transform_indices = @transform_21, window_bounds = array<i64: 1, 64>}, {pipeline_mode = #tpu.pipeline_mode<synchronous>, transform_indices = @transform_22, window_bounds = array<i64: 64, 9>}, {pipeline_mode = #tpu.pipeline_mode<synchronous>, transform_indices = @transform_23, window_bounds = array<i64: 1, 9>}, {pipeline_mode = #tpu.pipeline_mode<synchronous>, transform_indices = @transform_24, window_bounds = array<i64: 3, 16>}, {pipeline_mode = #tpu.pipeline_mode<synchronous>, transform_indices = @transform_25, window_bounds = array<i64: 1, 16>}, {pipeline_mode = #tpu.pipeline_mode<synchronous>, transform_indices = @transform_26, window_bounds = array<i64: 1, 16>}, {pipeline_mode = #tpu.pipeline_mode<synchronous>, transform_indices = @transform_27, window_bounds = array<i64: 1, 16>}, {pipeline_mode = #tpu.pipeline_mode<synchronous>, transform_indices = @transform_28, window_bounds = array<i64: 16, 32>}, {pipeline_mode = #tpu.pipeline_mode<synchronous>, transform_indices = @transform_29, window_bounds = array<i64: 1, 32>}, {pipeline_mode = #tpu.pipeline_mode<synchronous>, transform_indices = @transform_30, window_bounds = array<i64: 1, 32>}, {pipeline_mode = #tpu.pipeline_mode<synchronous>, transform_indices = @transform_31, window_bounds = array<i64: 1, 32>}, {pipeline_mode = #tpu.pipeline_mode<synchronous>, transform_indices = @transform_32, window_bounds = array<i64: 32, 256>}, {pipeline_mode = #tpu.pipeline_mode<synchronous>, transform_indices = @transform_33, window_bounds = array<i64: 1, 256>}, {pipeline_mode = #tpu.pipeline_mode<synchronous>, transform_indices = @transform_34, window_bounds = array<i64: 1, 256>}, {pipeline_mode = #tpu.pipeline_mode<synchronous>, transform_indices = @transform_35, window_bounds = array<i64: 1, 256>}, {pipeline_mode = #tpu.pipeline_mode<synchronous>, transform_indices = @transform_36, window_bounds = array<i64: 256, 128>}, {pipeline_mode = #tpu.pipeline_mode<synchronous>, transform_indices = @transform_37, window_bounds = array<i64: 1, 128>}, {pipeline_mode = #tpu.pipeline_mode<synchronous>, transform_indices = @transform_38, window_bounds = array<i64: 1, 128>}, {pipeline_mode = #tpu.pipeline_mode<synchronous>, transform_indices = @transform_39, window_bounds = array<i64: 1, 128>}, {pipeline_mode = #tpu.pipeline_mode<synchronous>, transform_indices = @transform_40, window_bounds = array<i64: 128, 64>}, {pipeline_mode = #tpu.pipeline_mode<synchronous>, transform_indices = @transform_41, window_bounds = array<i64: 1, 64>}, {pipeline_mode = #tpu.pipeline_mode<synchronous>, transform_indices = @transform_42, window_bounds = array<i64: 1, 64>}, {pipeline_mode = #tpu.pipeline_mode<synchronous>, transform_indices = @transform_43, window_bounds = array<i64: 1, 64>}, {pipeline_mode = #tpu.pipeline_mode<synchronous>, transform_indices = @transform_44, window_bounds = array<i64: 64, 2>}, {pipeline_mode = #tpu.pipeline_mode<synchronous>, transform_indices = @transform_45, window_bounds = array<i64: 1, 2>}, {pipeline_mode = #tpu.pipeline_mode<synchronous>, transform_indices = @transform_46, window_bounds = array<i64: 2, 2>}, {pipeline_mode = #tpu.pipeline_mode<synchronous>, transform_indices = @transform_47, window_bounds = array<i64: 2, 3, 3>}]} {
    %c0 = arith.constant 0 : index
    %c0_0 = arith.constant 0 : index
    %0 = vector.load %arg1[%c0, %c0_0] : memref<32x3xf32, #tpu.memory_space<vmem>>, vector<32x3xf32>
    %c0_1 = arith.constant 0 : index
    %c0_2 = arith.constant 0 : index
    %1 = vector.load %arg3[%c0_1, %c0_2] : memref<3x16xf32, #tpu.memory_space<vmem>>, vector<3x16xf32>
    %cst = arith.constant dense<0.000000e+00> : vector<32x16xf32>
    %2 = tpu.matmul %0, %1, %cst {dimension_numbers = #tpu.dot_dimension_numbers<[1], [0], [0], [1], [0, 0, 1, 1], [], []>} : vector<32x3xf32>, vector<3x16xf32>, vector<32x16xf32> -> vector<32x16xf32>
    %c0_3 = arith.constant 0 : index
    %c0_4 = arith.constant 0 : index
    %3 = vector.load %arg4[%c0_3, %c0_4] : memref<1x16xf32, #tpu.memory_space<vmem>>, vector<1x16xf32>
    %4 = vector.broadcast %3 : vector<1x16xf32> to vector<32x16xf32>
    %5 = arith.addf %2, %4 : vector<32x16xf32>
    %c0_5 = arith.constant 0 : index
    %c0_6 = arith.constant 0 : index
    %6 = vector.load %arg5[%c0_5, %c0_6] : memref<1x16xf32, #tpu.memory_space<vmem>>, vector<1x16xf32>
    %c0_7 = arith.constant 0 : index
    %c0_8 = arith.constant 0 : index
    %7 = vector.load %arg6[%c0_7, %c0_8] : memref<1x16xf32, #tpu.memory_space<vmem>>, vector<1x16xf32>
    %cst_9 = arith.constant dense<0.000000e+00> : vector<16xf32>
    %8 = vector.multi_reduction <add>, %5, %cst_9 [0] : vector<32x16xf32> to vector<16xf32>
    %9 = vector.shape_cast %8 : vector<16xf32> to vector<1x16xf32>
    %cst_10 = arith.constant 3.125000e-02 : f32
    %10 = vector.broadcast %cst_10 : f32 to vector<1x16xf32>
    %11 = arith.mulf %9, %10 : vector<1x16xf32>
    %12 = arith.mulf %5, %5 : vector<32x16xf32>
    %cst_11 = arith.constant dense<0.000000e+00> : vector<16xf32>
    %13 = vector.multi_reduction <add>, %12, %cst_11 [0] : vector<32x16xf32> to vector<16xf32>
    %14 = vector.shape_cast %13 : vector<16xf32> to vector<1x16xf32>
    %cst_12 = arith.constant 3.125000e-02 : f32
    %15 = vector.broadcast %cst_12 : f32 to vector<1x16xf32>
    %16 = arith.mulf %14, %15 : vector<1x16xf32>
    %17 = arith.mulf %11, %11 : vector<1x16xf32>
    %18 = arith.subf %16, %17 : vector<1x16xf32>
    %19 = vector.broadcast %11 : vector<1x16xf32> to vector<32x16xf32>
    %20 = arith.subf %5, %19 : vector<32x16xf32>
    %cst_13 = arith.constant 9.99999974E-6 : f32
    %21 = vector.broadcast %cst_13 : f32 to vector<1x16xf32>
    %22 = arith.addf %18, %21 : vector<1x16xf32>
    %23 = math.rsqrt %22 : vector<1x16xf32>
    %24 = vector.broadcast %23 : vector<1x16xf32> to vector<32x16xf32>
    %25 = arith.mulf %20, %24 : vector<32x16xf32>
    %26 = vector.broadcast %6 : vector<1x16xf32> to vector<32x16xf32>
    %27 = arith.mulf %25, %26 : vector<32x16xf32>
    %28 = vector.broadcast %7 : vector<1x16xf32> to vector<32x16xf32>
    %29 = arith.addf %27, %28 : vector<32x16xf32>
    %cst_14 = arith.constant 0.000000e+00 : f32
    %30 = vector.broadcast %cst_14 : f32 to vector<32x16xf32>
    %31 = arith.maximumf %29, %30 : vector<32x16xf32>
    %c0_15 = arith.constant 0 : index
    %c0_16 = arith.constant 0 : index
    %32 = vector.load %arg7[%c0_15, %c0_16] : memref<16x32xf32, #tpu.memory_space<vmem>>, vector<16x32xf32>
    %cst_17 = arith.constant dense<0.000000e+00> : vector<32x32xf32>
    %33 = tpu.matmul %31, %32, %cst_17 {dimension_numbers = #tpu.dot_dimension_numbers<[1], [0], [0], [1], [0, 0, 1, 1], [], []>} : vector<32x16xf32>, vector<16x32xf32>, vector<32x32xf32> -> vector<32x32xf32>
    %c0_18 = arith.constant 0 : index
    %c0_19 = arith.constant 0 : index
    %34 = vector.load %arg8[%c0_18, %c0_19] : memref<1x32xf32, #tpu.memory_space<vmem>>, vector<1x32xf32>
    %35 = vector.broadcast %34 : vector<1x32xf32> to vector<32x32xf32>
    %36 = arith.addf %33, %35 : vector<32x32xf32>
    %c0_20 = arith.constant 0 : index
    %c0_21 = arith.constant 0 : index
    %37 = vector.load %arg9[%c0_20, %c0_21] : memref<1x32xf32, #tpu.memory_space<vmem>>, vector<1x32xf32>
    %c0_22 = arith.constant 0 : index
    %c0_23 = arith.constant 0 : index
    %38 = vector.load %arg10[%c0_22, %c0_23] : memref<1x32xf32, #tpu.memory_space<vmem>>, vector<1x32xf32>
    %cst_24 = arith.constant dense<0.000000e+00> : vector<32xf32>
    %39 = vector.multi_reduction <add>, %36, %cst_24 [0] : vector<32x32xf32> to vector<32xf32>
    %40 = vector.shape_cast %39 : vector<32xf32> to vector<1x32xf32>
    %cst_25 = arith.constant 3.125000e-02 : f32
    %41 = vector.broadcast %cst_25 : f32 to vector<1x32xf32>
    %42 = arith.mulf %40, %41 : vector<1x32xf32>
    %43 = arith.mulf %36, %36 : vector<32x32xf32>
    %cst_26 = arith.constant dense<0.000000e+00> : vector<32xf32>
    %44 = vector.multi_reduction <add>, %43, %cst_26 [0] : vector<32x32xf32> to vector<32xf32>
    %45 = vector.shape_cast %44 : vector<32xf32> to vector<1x32xf32>
    %cst_27 = arith.constant 3.125000e-02 : f32
    %46 = vector.broadcast %cst_27 : f32 to vector<1x32xf32>
    %47 = arith.mulf %45, %46 : vector<1x32xf32>
    %48 = arith.mulf %42, %42 : vector<1x32xf32>
    %49 = arith.subf %47, %48 : vector<1x32xf32>
    %50 = vector.broadcast %42 : vector<1x32xf32> to vector<32x32xf32>
    %51 = arith.subf %36, %50 : vector<32x32xf32>
    %cst_28 = arith.constant 9.99999974E-6 : f32
    %52 = vector.broadcast %cst_28 : f32 to vector<1x32xf32>
    %53 = arith.addf %49, %52 : vector<1x32xf32>
    %54 = math.rsqrt %53 : vector<1x32xf32>
    %55 = vector.broadcast %54 : vector<1x32xf32> to vector<32x32xf32>
    %56 = arith.mulf %51, %55 : vector<32x32xf32>
    %57 = vector.broadcast %37 : vector<1x32xf32> to vector<32x32xf32>
    %58 = arith.mulf %56, %57 : vector<32x32xf32>
    %59 = vector.broadcast %38 : vector<1x32xf32> to vector<32x32xf32>
    %60 = arith.addf %58, %59 : vector<32x32xf32>
    %cst_29 = arith.constant 0.000000e+00 : f32
    %61 = vector.broadcast %cst_29 : f32 to vector<32x32xf32>
    %62 = arith.maximumf %60, %61 : vector<32x32xf32>
    %c0_30 = arith.constant 0 : index
    %c0_31 = arith.constant 0 : index
    %63 = vector.load %arg11[%c0_30, %c0_31] : memref<32x256xf32, #tpu.memory_space<vmem>>, vector<32x256xf32>
    %cst_32 = arith.constant dense<0.000000e+00> : vector<32x256xf32>
    %64 = tpu.matmul %62, %63, %cst_32 {dimension_numbers = #tpu.dot_dimension_numbers<[1], [0], [0], [1], [0, 0, 1, 1], [], []>} : vector<32x32xf32>, vector<32x256xf32>, vector<32x256xf32> -> vector<32x256xf32>
    %c0_33 = arith.constant 0 : index
    %c0_34 = arith.constant 0 : index
    %65 = vector.load %arg12[%c0_33, %c0_34] : memref<1x256xf32, #tpu.memory_space<vmem>>, vector<1x256xf32>
    %66 = vector.broadcast %65 : vector<1x256xf32> to vector<32x256xf32>
    %67 = arith.addf %64, %66 : vector<32x256xf32>
    %c0_35 = arith.constant 0 : index
    %c0_36 = arith.constant 0 : index
    %68 = vector.load %arg13[%c0_35, %c0_36] : memref<1x256xf32, #tpu.memory_space<vmem>>, vector<1x256xf32>
    %c0_37 = arith.constant 0 : index
    %c0_38 = arith.constant 0 : index
    %69 = vector.load %arg14[%c0_37, %c0_38] : memref<1x256xf32, #tpu.memory_space<vmem>>, vector<1x256xf32>
    %cst_39 = arith.constant dense<0.000000e+00> : vector<256xf32>
    %70 = vector.multi_reduction <add>, %67, %cst_39 [0] : vector<32x256xf32> to vector<256xf32>
    %71 = vector.shape_cast %70 : vector<256xf32> to vector<1x256xf32>
    %cst_40 = arith.constant 3.125000e-02 : f32
    %72 = vector.broadcast %cst_40 : f32 to vector<1x256xf32>
    %73 = arith.mulf %71, %72 : vector<1x256xf32>
    %74 = arith.mulf %67, %67 : vector<32x256xf32>
    %cst_41 = arith.constant dense<0.000000e+00> : vector<256xf32>
    %75 = vector.multi_reduction <add>, %74, %cst_41 [0] : vector<32x256xf32> to vector<256xf32>
    %76 = vector.shape_cast %75 : vector<256xf32> to vector<1x256xf32>
    %cst_42 = arith.constant 3.125000e-02 : f32
    %77 = vector.broadcast %cst_42 : f32 to vector<1x256xf32>
    %78 = arith.mulf %76, %77 : vector<1x256xf32>
    %79 = arith.mulf %73, %73 : vector<1x256xf32>
    %80 = arith.subf %78, %79 : vector<1x256xf32>
    %81 = vector.broadcast %73 : vector<1x256xf32> to vector<32x256xf32>
    %82 = arith.subf %67, %81 : vector<32x256xf32>
    %cst_43 = arith.constant 9.99999974E-6 : f32
    %83 = vector.broadcast %cst_43 : f32 to vector<1x256xf32>
    %84 = arith.addf %80, %83 : vector<1x256xf32>
    %85 = math.rsqrt %84 : vector<1x256xf32>
    %86 = vector.broadcast %85 : vector<1x256xf32> to vector<32x256xf32>
    %87 = arith.mulf %82, %86 : vector<32x256xf32>
    %88 = vector.broadcast %68 : vector<1x256xf32> to vector<32x256xf32>
    %89 = arith.mulf %87, %88 : vector<32x256xf32>
    %90 = vector.broadcast %69 : vector<1x256xf32> to vector<32x256xf32>
    %91 = arith.addf %89, %90 : vector<32x256xf32>
    %cst_44 = arith.constant 0.000000e+00 : f32
    %92 = vector.broadcast %cst_44 : f32 to vector<32x256xf32>
    %93 = arith.maximumf %91, %92 : vector<32x256xf32>
    %94 = vector.shape_cast %93 : vector<32x256xf32> to vector<2x16x256xf32>
    %cst_45 = arith.constant dense<0xFF800000> : vector<2x256xf32>
    %95 = vector.multi_reduction <maximumf>, %94, %cst_45 [1] : vector<2x16x256xf32> to vector<2x256xf32>
    %c0_46 = arith.constant 0 : index
    %c0_47 = arith.constant 0 : index
    %96 = vector.load %arg15[%c0_46, %c0_47] : memref<256x128xf32, #tpu.memory_space<vmem>>, vector<256x128xf32>
    %cst_48 = arith.constant dense<0.000000e+00> : vector<2x128xf32>
    %97 = tpu.matmul %95, %96, %cst_48 {dimension_numbers = #tpu.dot_dimension_numbers<[1], [0], [0], [1], [0, 0, 1, 1], [], []>} : vector<2x256xf32>, vector<256x128xf32>, vector<2x128xf32> -> vector<2x128xf32>
    %c0_49 = arith.constant 0 : index
    %c0_50 = arith.constant 0 : index
    %98 = vector.load %arg16[%c0_49, %c0_50] : memref<1x128xf32, #tpu.memory_space<vmem>>, vector<1x128xf32>
    %99 = vector.broadcast %98 : vector<1x128xf32> to vector<2x128xf32>
    %100 = arith.addf %97, %99 : vector<2x128xf32>
    %c0_51 = arith.constant 0 : index
    %c0_52 = arith.constant 0 : index
    %101 = vector.load %arg17[%c0_51, %c0_52] : memref<1x128xf32, #tpu.memory_space<vmem>>, vector<1x128xf32>
    %c0_53 = arith.constant 0 : index
    %c0_54 = arith.constant 0 : index
    %102 = vector.load %arg18[%c0_53, %c0_54] : memref<1x128xf32, #tpu.memory_space<vmem>>, vector<1x128xf32>
    %cst_55 = arith.constant dense<0.000000e+00> : vector<128xf32>
    %103 = vector.multi_reduction <add>, %100, %cst_55 [0] : vector<2x128xf32> to vector<128xf32>
    %104 = vector.shape_cast %103 : vector<128xf32> to vector<1x128xf32>
    %cst_56 = arith.constant 5.000000e-01 : f32
    %105 = vector.broadcast %cst_56 : f32 to vector<1x128xf32>
    %106 = arith.mulf %104, %105 : vector<1x128xf32>
    %107 = arith.mulf %100, %100 : vector<2x128xf32>
    %cst_57 = arith.constant dense<0.000000e+00> : vector<128xf32>
    %108 = vector.multi_reduction <add>, %107, %cst_57 [0] : vector<2x128xf32> to vector<128xf32>
    %109 = vector.shape_cast %108 : vector<128xf32> to vector<1x128xf32>
    %cst_58 = arith.constant 5.000000e-01 : f32
    %110 = vector.broadcast %cst_58 : f32 to vector<1x128xf32>
    %111 = arith.mulf %109, %110 : vector<1x128xf32>
    %112 = arith.mulf %106, %106 : vector<1x128xf32>
    %113 = arith.subf %111, %112 : vector<1x128xf32>
    %114 = vector.broadcast %106 : vector<1x128xf32> to vector<2x128xf32>
    %115 = arith.subf %100, %114 : vector<2x128xf32>
    %cst_59 = arith.constant 9.99999974E-6 : f32
    %116 = vector.broadcast %cst_59 : f32 to vector<1x128xf32>
    %117 = arith.addf %113, %116 : vector<1x128xf32>
    %118 = math.rsqrt %117 : vector<1x128xf32>
    %119 = vector.broadcast %118 : vector<1x128xf32> to vector<2x128xf32>
    %120 = arith.mulf %115, %119 : vector<2x128xf32>
    %121 = vector.broadcast %101 : vector<1x128xf32> to vector<2x128xf32>
    %122 = arith.mulf %120, %121 : vector<2x128xf32>
    %123 = vector.broadcast %102 : vector<1x128xf32> to vector<2x128xf32>
    %124 = arith.addf %122, %123 : vector<2x128xf32>
    %cst_60 = arith.constant 0.000000e+00 : f32
    %125 = vector.broadcast %cst_60 : f32 to vector<2x128xf32>
    %126 = arith.maximumf %124, %125 : vector<2x128xf32>
    %c0_61 = arith.constant 0 : index
    %c0_62 = arith.constant 0 : index
    %127 = vector.load %arg19[%c0_61, %c0_62] : memref<128x64xf32, #tpu.memory_space<vmem>>, vector<128x64xf32>
    %cst_63 = arith.constant dense<0.000000e+00> : vector<2x64xf32>
    %128 = tpu.matmul %126, %127, %cst_63 {dimension_numbers = #tpu.dot_dimension_numbers<[1], [0], [0], [1], [0, 0, 1, 1], [], []>} : vector<2x128xf32>, vector<128x64xf32>, vector<2x64xf32> -> vector<2x64xf32>
    %c0_64 = arith.constant 0 : index
    %c0_65 = arith.constant 0 : index
    %129 = vector.load %arg20[%c0_64, %c0_65] : memref<1x64xf32, #tpu.memory_space<vmem>>, vector<1x64xf32>
    %130 = vector.broadcast %129 : vector<1x64xf32> to vector<2x64xf32>
    %131 = arith.addf %128, %130 : vector<2x64xf32>
    %c0_66 = arith.constant 0 : index
    %c0_67 = arith.constant 0 : index
    %132 = vector.load %arg21[%c0_66, %c0_67] : memref<1x64xf32, #tpu.memory_space<vmem>>, vector<1x64xf32>
    %c0_68 = arith.constant 0 : index
    %c0_69 = arith.constant 0 : index
    %133 = vector.load %arg22[%c0_68, %c0_69] : memref<1x64xf32, #tpu.memory_space<vmem>>, vector<1x64xf32>
    %cst_70 = arith.constant dense<0.000000e+00> : vector<64xf32>
    %134 = vector.multi_reduction <add>, %131, %cst_70 [0] : vector<2x64xf32> to vector<64xf32>
    %135 = vector.shape_cast %134 : vector<64xf32> to vector<1x64xf32>
    %cst_71 = arith.constant 5.000000e-01 : f32
    %136 = vector.broadcast %cst_71 : f32 to vector<1x64xf32>
    %137 = arith.mulf %135, %136 : vector<1x64xf32>
    %138 = arith.mulf %131, %131 : vector<2x64xf32>
    %cst_72 = arith.constant dense<0.000000e+00> : vector<64xf32>
    %139 = vector.multi_reduction <add>, %138, %cst_72 [0] : vector<2x64xf32> to vector<64xf32>
    %140 = vector.shape_cast %139 : vector<64xf32> to vector<1x64xf32>
    %cst_73 = arith.constant 5.000000e-01 : f32
    %141 = vector.broadcast %cst_73 : f32 to vector<1x64xf32>
    %142 = arith.mulf %140, %141 : vector<1x64xf32>
    %143 = arith.mulf %137, %137 : vector<1x64xf32>
    %144 = arith.subf %142, %143 : vector<1x64xf32>
    %145 = vector.broadcast %137 : vector<1x64xf32> to vector<2x64xf32>
    %146 = arith.subf %131, %145 : vector<2x64xf32>
    %cst_74 = arith.constant 9.99999974E-6 : f32
    %147 = vector.broadcast %cst_74 : f32 to vector<1x64xf32>
    %148 = arith.addf %144, %147 : vector<1x64xf32>
    %149 = math.rsqrt %148 : vector<1x64xf32>
    %150 = vector.broadcast %149 : vector<1x64xf32> to vector<2x64xf32>
    %151 = arith.mulf %146, %150 : vector<2x64xf32>
    %152 = vector.broadcast %132 : vector<1x64xf32> to vector<2x64xf32>
    %153 = arith.mulf %151, %152 : vector<2x64xf32>
    %154 = vector.broadcast %133 : vector<1x64xf32> to vector<2x64xf32>
    %155 = arith.addf %153, %154 : vector<2x64xf32>
    %cst_75 = arith.constant 0.000000e+00 : f32
    %156 = vector.broadcast %cst_75 : f32 to vector<2x64xf32>
    %157 = arith.maximumf %155, %156 : vector<2x64xf32>
    %c0_76 = arith.constant 0 : index
    %c0_77 = arith.constant 0 : index
    %158 = vector.load %arg23[%c0_76, %c0_77] : memref<64x9xf32, #tpu.memory_space<vmem>>, vector<64x9xf32>
    %cst_78 = arith.constant dense<0.000000e+00> : vector<2x9xf32>
    %159 = tpu.matmul %157, %158, %cst_78 {dimension_numbers = #tpu.dot_dimension_numbers<[1], [0], [0], [1], [0, 0, 1, 1], [], []>} : vector<2x64xf32>, vector<64x9xf32>, vector<2x9xf32> -> vector<2x9xf32>
    %c0_79 = arith.constant 0 : index
    %c0_80 = arith.constant 0 : index
    %160 = vector.load %arg24[%c0_79, %c0_80] : memref<1x9xf32, #tpu.memory_space<vmem>>, vector<1x9xf32>
    %161 = vector.broadcast %160 : vector<1x9xf32> to vector<2x9xf32>
    %162 = arith.addf %159, %161 : vector<2x9xf32>
    %c0_81 = arith.constant 0 : index
    %c0_82 = arith.constant 0 : index
    %163 = vector.load %arg2[%c0_81, %c0_82] : memref<1x9xf32, #tpu.memory_space<vmem>>, vector<1x9xf32>
    %164 = vector.broadcast %163 : vector<1x9xf32> to vector<2x9xf32>
    %165 = arith.addf %162, %164 : vector<2x9xf32>
    %166 = vector.extract_strided_slice %165 {offsets = [0, 0], sizes = [2, 3], strides = [1, 1]} : vector<2x9xf32> to vector<2x3xf32>
    %167 = vector.shape_cast %166 : vector<2x3xf32> to vector<2x1x3xf32>
    %168 = vector.extract_strided_slice %165 {offsets = [0, 3], sizes = [2, 3], strides = [1, 1]} : vector<2x9xf32> to vector<2x3xf32>
    %169 = vector.shape_cast %168 : vector<2x3xf32> to vector<2x1x3xf32>
    %170 = vector.extract_strided_slice %165 {offsets = [0, 6], sizes = [2, 3], strides = [1, 1]} : vector<2x9xf32> to vector<2x3xf32>
    %171 = vector.shape_cast %170 : vector<2x3xf32> to vector<2x1x3xf32>
    %172 = tpu.concatenate %167, %169, %171 in 1 : vector<2x1x3xf32>, vector<2x1x3xf32>, vector<2x1x3xf32> -> vector<2x3x3xf32>
    %c0_83 = arith.constant 0 : index
    %c0_84 = arith.constant 0 : index
    %c0_85 = arith.constant 0 : index
    %173 = vector.load %arg48[%c0_83, %c0_84, %c0_85] : memref<2x3x3xf32, #tpu.memory_space<vmem>>, vector<2x3x3xf32>
    tpu.vector_store %arg48[%c0_83, %c0_84, %c0_85], %172 {strides = array<i32>} : memref<2x3x3xf32, #tpu.memory_space<vmem>>, vector<2x3x3xf32>,
    %174 = vector.shape_cast %0 : vector<32x3xf32> to vector<2x16x3xf32>
    "tpu.trace_start"() <{level = 10 : i32, message = "bnc,bcd->bnd"}> : () -> ()
    %cst_86 = arith.constant dense<0.000000e+00> : vector<2x16x3xf32>
    %175 = tpu.matmul %174, %172, %cst_86 {dimension_numbers = #tpu.dot_dimension_numbers<[2], [1], [1], [2], [0, 0, 0, 1, 1, 2], [0], [0]>} : vector<2x16x3xf32>, vector<2x3x3xf32>, vector<2x16x3xf32> -> vector<2x16x3xf32>
    "tpu.trace_stop"() : () -> ()
    %176 = vector.shape_cast %175 : vector<2x16x3xf32> to vector<32x3xf32>
    %c0_87 = arith.constant 0 : index
    %c0_88 = arith.constant 0 : index
    %177 = vector.load %arg25[%c0_87, %c0_88] : memref<3x16xf32, #tpu.memory_space<vmem>>, vector<3x16xf32>
    %cst_89 = arith.constant dense<0.000000e+00> : vector<32x16xf32>
    %178 = tpu.matmul %176, %177, %cst_89 {dimension_numbers = #tpu.dot_dimension_numbers<[1], [0], [0], [1], [0, 0, 1, 1], [], []>} : vector<32x3xf32>, vector<3x16xf32>, vector<32x16xf32> -> vector<32x16xf32>
    %c0_90 = arith.constant 0 : index
    %c0_91 = arith.constant 0 : index
    %179 = vector.load %arg26[%c0_90, %c0_91] : memref<1x16xf32, #tpu.memory_space<vmem>>, vector<1x16xf32>
    %180 = vector.broadcast %179 : vector<1x16xf32> to vector<32x16xf32>
    %181 = arith.addf %178, %180 : vector<32x16xf32>
    %c0_92 = arith.constant 0 : index
    %c0_93 = arith.constant 0 : index
    %182 = vector.load %arg27[%c0_92, %c0_93] : memref<1x16xf32, #tpu.memory_space<vmem>>, vector<1x16xf32>
    %c0_94 = arith.constant 0 : index
    %c0_95 = arith.constant 0 : index
    %183 = vector.load %arg28[%c0_94, %c0_95] : memref<1x16xf32, #tpu.memory_space<vmem>>, vector<1x16xf32>
    %cst_96 = arith.constant dense<0.000000e+00> : vector<16xf32>
    %184 = vector.multi_reduction <add>, %181, %cst_96 [0] : vector<32x16xf32> to vector<16xf32>
    %185 = vector.shape_cast %184 : vector<16xf32> to vector<1x16xf32>
    %cst_97 = arith.constant 3.125000e-02 : f32
    %186 = vector.broadcast %cst_97 : f32 to vector<1x16xf32>
    %187 = arith.mulf %185, %186 : vector<1x16xf32>
    %188 = arith.mulf %181, %181 : vector<32x16xf32>
    %cst_98 = arith.constant dense<0.000000e+00> : vector<16xf32>
    %189 = vector.multi_reduction <add>, %188, %cst_98 [0] : vector<32x16xf32> to vector<16xf32>
    %190 = vector.shape_cast %189 : vector<16xf32> to vector<1x16xf32>
    %cst_99 = arith.constant 3.125000e-02 : f32
    %191 = vector.broadcast %cst_99 : f32 to vector<1x16xf32>
    %192 = arith.mulf %190, %191 : vector<1x16xf32>
    %193 = arith.mulf %187, %187 : vector<1x16xf32>
    %194 = arith.subf %192, %193 : vector<1x16xf32>
    %195 = vector.broadcast %187 : vector<1x16xf32> to vector<32x16xf32>
    %196 = arith.subf %181, %195 : vector<32x16xf32>
    %cst_100 = arith.constant 9.99999974E-6 : f32
    %197 = vector.broadcast %cst_100 : f32 to vector<1x16xf32>
    %198 = arith.addf %194, %197 : vector<1x16xf32>
    %199 = math.rsqrt %198 : vector<1x16xf32>
    %200 = vector.broadcast %199 : vector<1x16xf32> to vector<32x16xf32>
    %201 = arith.mulf %196, %200 : vector<32x16xf32>
    %202 = vector.broadcast %182 : vector<1x16xf32> to vector<32x16xf32>
    %203 = arith.mulf %201, %202 : vector<32x16xf32>
    %204 = vector.broadcast %183 : vector<1x16xf32> to vector<32x16xf32>
    %205 = arith.addf %203, %204 : vector<32x16xf32>
    %cst_101 = arith.constant 0.000000e+00 : f32
    %206 = vector.broadcast %cst_101 : f32 to vector<32x16xf32>
    %207 = arith.maximumf %205, %206 : vector<32x16xf32>
    %c0_102 = arith.constant 0 : index
    %c0_103 = arith.constant 0 : index
    %208 = vector.load %arg29[%c0_102, %c0_103] : memref<16x32xf32, #tpu.memory_space<vmem>>, vector<16x32xf32>
    %cst_104 = arith.constant dense<0.000000e+00> : vector<32x32xf32>
    %209 = tpu.matmul %207, %208, %cst_104 {dimension_numbers = #tpu.dot_dimension_numbers<[1], [0], [0], [1], [0, 0, 1, 1], [], []>} : vector<32x16xf32>, vector<16x32xf32>, vector<32x32xf32> -> vector<32x32xf32>
    %c0_105 = arith.constant 0 : index
    %c0_106 = arith.constant 0 : index
    %210 = vector.load %arg30[%c0_105, %c0_106] : memref<1x32xf32, #tpu.memory_space<vmem>>, vector<1x32xf32>
    %211 = vector.broadcast %210 : vector<1x32xf32> to vector<32x32xf32>
    %212 = arith.addf %209, %211 : vector<32x32xf32>
    %c0_107 = arith.constant 0 : index
    %c0_108 = arith.constant 0 : index
    %213 = vector.load %arg31[%c0_107, %c0_108] : memref<1x32xf32, #tpu.memory_space<vmem>>, vector<1x32xf32>
    %c0_109 = arith.constant 0 : index
    %c0_110 = arith.constant 0 : index
    %214 = vector.load %arg32[%c0_109, %c0_110] : memref<1x32xf32, #tpu.memory_space<vmem>>, vector<1x32xf32>
    %cst_111 = arith.constant dense<0.000000e+00> : vector<32xf32>
    %215 = vector.multi_reduction <add>, %212, %cst_111 [0] : vector<32x32xf32> to vector<32xf32>
    %216 = vector.shape_cast %215 : vector<32xf32> to vector<1x32xf32>
    %cst_112 = arith.constant 3.125000e-02 : f32
    %217 = vector.broadcast %cst_112 : f32 to vector<1x32xf32>
    %218 = arith.mulf %216, %217 : vector<1x32xf32>
    %219 = arith.mulf %212, %212 : vector<32x32xf32>
    %cst_113 = arith.constant dense<0.000000e+00> : vector<32xf32>
    %220 = vector.multi_reduction <add>, %219, %cst_113 [0] : vector<32x32xf32> to vector<32xf32>
    %221 = vector.shape_cast %220 : vector<32xf32> to vector<1x32xf32>
    %cst_114 = arith.constant 3.125000e-02 : f32
    %222 = vector.broadcast %cst_114 : f32 to vector<1x32xf32>
    %223 = arith.mulf %221, %222 : vector<1x32xf32>
    %224 = arith.mulf %218, %218 : vector<1x32xf32>
    %225 = arith.subf %223, %224 : vector<1x32xf32>
    %226 = vector.broadcast %218 : vector<1x32xf32> to vector<32x32xf32>
    %227 = arith.subf %212, %226 : vector<32x32xf32>
    %cst_115 = arith.constant 9.99999974E-6 : f32
    %228 = vector.broadcast %cst_115 : f32 to vector<1x32xf32>
    %229 = arith.addf %225, %228 : vector<1x32xf32>
    %230 = math.rsqrt %229 : vector<1x32xf32>
    %231 = vector.broadcast %230 : vector<1x32xf32> to vector<32x32xf32>
    %232 = arith.mulf %227, %231 : vector<32x32xf32>
    %233 = vector.broadcast %213 : vector<1x32xf32> to vector<32x32xf32>
    %234 = arith.mulf %232, %233 : vector<32x32xf32>
    %235 = vector.broadcast %214 : vector<1x32xf32> to vector<32x32xf32>
    %236 = arith.addf %234, %235 : vector<32x32xf32>
    %cst_116 = arith.constant 0.000000e+00 : f32
    %237 = vector.broadcast %cst_116 : f32 to vector<32x32xf32>
    %238 = arith.maximumf %236, %237 : vector<32x32xf32>
    %c0_117 = arith.constant 0 : index
    %c0_118 = arith.constant 0 : index
    %239 = vector.load %arg33[%c0_117, %c0_118] : memref<32x256xf32, #tpu.memory_space<vmem>>, vector<32x256xf32>
    %cst_119 = arith.constant dense<0.000000e+00> : vector<32x256xf32>
    %240 = tpu.matmul %238, %239, %cst_119 {dimension_numbers = #tpu.dot_dimension_numbers<[1], [0], [0], [1], [0, 0, 1, 1], [], []>} : vector<32x32xf32>, vector<32x256xf32>, vector<32x256xf32> -> vector<32x256xf32>
    %c0_120 = arith.constant 0 : index
    %c0_121 = arith.constant 0 : index
    %241 = vector.load %arg34[%c0_120, %c0_121] : memref<1x256xf32, #tpu.memory_space<vmem>>, vector<1x256xf32>
    %242 = vector.broadcast %241 : vector<1x256xf32> to vector<32x256xf32>
    %243 = arith.addf %240, %242 : vector<32x256xf32>
    %c0_122 = arith.constant 0 : index
    %c0_123 = arith.constant 0 : index
    %244 = vector.load %arg35[%c0_122, %c0_123] : memref<1x256xf32, #tpu.memory_space<vmem>>, vector<1x256xf32>
    %c0_124 = arith.constant 0 : index
    %c0_125 = arith.constant 0 : index
    %245 = vector.load %arg36[%c0_124, %c0_125] : memref<1x256xf32, #tpu.memory_space<vmem>>, vector<1x256xf32>
    %cst_126 = arith.constant dense<0.000000e+00> : vector<256xf32>
    %246 = vector.multi_reduction <add>, %243, %cst_126 [0] : vector<32x256xf32> to vector<256xf32>
    %247 = vector.shape_cast %246 : vector<256xf32> to vector<1x256xf32>
    %cst_127 = arith.constant 3.125000e-02 : f32
    %248 = vector.broadcast %cst_127 : f32 to vector<1x256xf32>
    %249 = arith.mulf %247, %248 : vector<1x256xf32>
    %250 = arith.mulf %243, %243 : vector<32x256xf32>
    %cst_128 = arith.constant dense<0.000000e+00> : vector<256xf32>
    %251 = vector.multi_reduction <add>, %250, %cst_128 [0] : vector<32x256xf32> to vector<256xf32>
    %252 = vector.shape_cast %251 : vector<256xf32> to vector<1x256xf32>
    %cst_129 = arith.constant 3.125000e-02 : f32
    %253 = vector.broadcast %cst_129 : f32 to vector<1x256xf32>
    %254 = arith.mulf %252, %253 : vector<1x256xf32>
    %255 = arith.mulf %249, %249 : vector<1x256xf32>
    %256 = arith.subf %254, %255 : vector<1x256xf32>
    %257 = vector.broadcast %249 : vector<1x256xf32> to vector<32x256xf32>
    %258 = arith.subf %243, %257 : vector<32x256xf32>
    %cst_130 = arith.constant 9.99999974E-6 : f32
    %259 = vector.broadcast %cst_130 : f32 to vector<1x256xf32>
    %260 = arith.addf %256, %259 : vector<1x256xf32>
    %261 = math.rsqrt %260 : vector<1x256xf32>
    %262 = vector.broadcast %261 : vector<1x256xf32> to vector<32x256xf32>
    %263 = arith.mulf %258, %262 : vector<32x256xf32>
    %264 = vector.broadcast %244 : vector<1x256xf32> to vector<32x256xf32>
    %265 = arith.mulf %263, %264 : vector<32x256xf32>
    %266 = vector.broadcast %245 : vector<1x256xf32> to vector<32x256xf32>
    %267 = arith.addf %265, %266 : vector<32x256xf32>
    %268 = vector.shape_cast %267 : vector<32x256xf32> to vector<2x16x256xf32>
    %cst_131 = arith.constant dense<0xFF800000> : vector<2x256xf32>
    %269 = vector.multi_reduction <maximumf>, %268, %cst_131 [1] : vector<2x16x256xf32> to vector<2x256xf32>
    %c0_132 = arith.constant 0 : index
    %c0_133 = arith.constant 0 : index
    %270 = vector.load %arg37[%c0_132, %c0_133] : memref<256x128xf32, #tpu.memory_space<vmem>>, vector<256x128xf32>
    %cst_134 = arith.constant dense<0.000000e+00> : vector<2x128xf32>
    %271 = tpu.matmul %269, %270, %cst_134 {dimension_numbers = #tpu.dot_dimension_numbers<[1], [0], [0], [1], [0, 0, 1, 1], [], []>} : vector<2x256xf32>, vector<256x128xf32>, vector<2x128xf32> -> vector<2x128xf32>
    %c0_135 = arith.constant 0 : index
    %c0_136 = arith.constant 0 : index
    %272 = vector.load %arg38[%c0_135, %c0_136] : memref<1x128xf32, #tpu.memory_space<vmem>>, vector<1x128xf32>
    %273 = vector.broadcast %272 : vector<1x128xf32> to vector<2x128xf32>
    %274 = arith.addf %271, %273 : vector<2x128xf32>
    %c0_137 = arith.constant 0 : index
    %c0_138 = arith.constant 0 : index
    %275 = vector.load %arg39[%c0_137, %c0_138] : memref<1x128xf32, #tpu.memory_space<vmem>>, vector<1x128xf32>
    %c0_139 = arith.constant 0 : index
    %c0_140 = arith.constant 0 : index
    %276 = vector.load %arg40[%c0_139, %c0_140] : memref<1x128xf32, #tpu.memory_space<vmem>>, vector<1x128xf32>
    %cst_141 = arith.constant dense<0.000000e+00> : vector<128xf32>
    %277 = vector.multi_reduction <add>, %274, %cst_141 [0] : vector<2x128xf32> to vector<128xf32>
    %278 = vector.shape_cast %277 : vector<128xf32> to vector<1x128xf32>
    %cst_142 = arith.constant 5.000000e-01 : f32
    %279 = vector.broadcast %cst_142 : f32 to vector<1x128xf32>
    %280 = arith.mulf %278, %279 : vector<1x128xf32>
    %281 = arith.mulf %274, %274 : vector<2x128xf32>
    %cst_143 = arith.constant dense<0.000000e+00> : vector<128xf32>
    %282 = vector.multi_reduction <add>, %281, %cst_143 [0] : vector<2x128xf32> to vector<128xf32>
    %283 = vector.shape_cast %282 : vector<128xf32> to vector<1x128xf32>
    %cst_144 = arith.constant 5.000000e-01 : f32
    %284 = vector.broadcast %cst_144 : f32 to vector<1x128xf32>
    %285 = arith.mulf %283, %284 : vector<1x128xf32>
    %286 = arith.mulf %280, %280 : vector<1x128xf32>
    %287 = arith.subf %285, %286 : vector<1x128xf32>
    %288 = vector.broadcast %280 : vector<1x128xf32> to vector<2x128xf32>
    %289 = arith.subf %274, %288 : vector<2x128xf32>
    %cst_145 = arith.constant 9.99999974E-6 : f32
    %290 = vector.broadcast %cst_145 : f32 to vector<1x128xf32>
    %291 = arith.addf %287, %290 : vector<1x128xf32>
    %292 = math.rsqrt %291 : vector<1x128xf32>
    %293 = vector.broadcast %292 : vector<1x128xf32> to vector<2x128xf32>
    %294 = arith.mulf %289, %293 : vector<2x128xf32>
    %295 = vector.broadcast %275 : vector<1x128xf32> to vector<2x128xf32>
    %296 = arith.mulf %294, %295 : vector<2x128xf32>
    %297 = vector.broadcast %276 : vector<1x128xf32> to vector<2x128xf32>
    %298 = arith.addf %296, %297 : vector<2x128xf32>
    %cst_146 = arith.constant 0.000000e+00 : f32
    %299 = vector.broadcast %cst_146 : f32 to vector<2x128xf32>
    %300 = arith.maximumf %298, %299 : vector<2x128xf32>
    %c0_147 = arith.constant 0 : index
    %c0_148 = arith.constant 0 : index
    %301 = vector.load %arg41[%c0_147, %c0_148] : memref<128x64xf32, #tpu.memory_space<vmem>>, vector<128x64xf32>
    %cst_149 = arith.constant dense<0.000000e+00> : vector<2x64xf32>
    %302 = tpu.matmul %300, %301, %cst_149 {dimension_numbers = #tpu.dot_dimension_numbers<[1], [0], [0], [1], [0, 0, 1, 1], [], []>} : vector<2x128xf32>, vector<128x64xf32>, vector<2x64xf32> -> vector<2x64xf32>
    %c0_150 = arith.constant 0 : index
    %c0_151 = arith.constant 0 : index
    %303 = vector.load %arg42[%c0_150, %c0_151] : memref<1x64xf32, #tpu.memory_space<vmem>>, vector<1x64xf32>
    %304 = vector.broadcast %303 : vector<1x64xf32> to vector<2x64xf32>
    %305 = arith.addf %302, %304 : vector<2x64xf32>
    %c0_152 = arith.constant 0 : index
    %c0_153 = arith.constant 0 : index
    %306 = vector.load %arg43[%c0_152, %c0_153] : memref<1x64xf32, #tpu.memory_space<vmem>>, vector<1x64xf32>
    %c0_154 = arith.constant 0 : index
    %c0_155 = arith.constant 0 : index
    %307 = vector.load %arg44[%c0_154, %c0_155] : memref<1x64xf32, #tpu.memory_space<vmem>>, vector<1x64xf32>
    %cst_156 = arith.constant dense<0.000000e+00> : vector<64xf32>
    %308 = vector.multi_reduction <add>, %305, %cst_156 [0] : vector<2x64xf32> to vector<64xf32>
    %309 = vector.shape_cast %308 : vector<64xf32> to vector<1x64xf32>
    %cst_157 = arith.constant 5.000000e-01 : f32
    %310 = vector.broadcast %cst_157 : f32 to vector<1x64xf32>
    %311 = arith.mulf %309, %310 : vector<1x64xf32>
    %312 = arith.mulf %305, %305 : vector<2x64xf32>
    %cst_158 = arith.constant dense<0.000000e+00> : vector<64xf32>
    %313 = vector.multi_reduction <add>, %312, %cst_158 [0] : vector<2x64xf32> to vector<64xf32>
    %314 = vector.shape_cast %313 : vector<64xf32> to vector<1x64xf32>
    %cst_159 = arith.constant 5.000000e-01 : f32
    %315 = vector.broadcast %cst_159 : f32 to vector<1x64xf32>
    %316 = arith.mulf %314, %315 : vector<1x64xf32>
    %317 = arith.mulf %311, %311 : vector<1x64xf32>
    %318 = arith.subf %316, %317 : vector<1x64xf32>
    %319 = vector.broadcast %311 : vector<1x64xf32> to vector<2x64xf32>
    %320 = arith.subf %305, %319 : vector<2x64xf32>
    %cst_160 = arith.constant 9.99999974E-6 : f32
    %321 = vector.broadcast %cst_160 : f32 to vector<1x64xf32>
    %322 = arith.addf %318, %321 : vector<1x64xf32>
    %323 = math.rsqrt %322 : vector<1x64xf32>
    %324 = vector.broadcast %323 : vector<1x64xf32> to vector<2x64xf32>
    %325 = arith.mulf %320, %324 : vector<2x64xf32>
    %326 = vector.broadcast %306 : vector<1x64xf32> to vector<2x64xf32>
    %327 = arith.mulf %325, %326 : vector<2x64xf32>
    %328 = vector.broadcast %307 : vector<1x64xf32> to vector<2x64xf32>
    %329 = arith.addf %327, %328 : vector<2x64xf32>
    %cst_161 = arith.constant 0.000000e+00 : f32
    %330 = vector.broadcast %cst_161 : f32 to vector<2x64xf32>
    %331 = arith.maximumf %329, %330 : vector<2x64xf32>
    %c0_162 = arith.constant 0 : index
    %c0_163 = arith.constant 0 : index
    %332 = vector.load %arg45[%c0_162, %c0_163] : memref<64x2xf32, #tpu.memory_space<vmem>>, vector<64x2xf32>
    %cst_164 = arith.constant dense<0.000000e+00> : vector<2x2xf32>
    %333 = tpu.matmul %331, %332, %cst_164 {dimension_numbers = #tpu.dot_dimension_numbers<[1], [0], [0], [1], [0, 0, 1, 1], [], []>} : vector<2x64xf32>, vector<64x2xf32>, vector<2x2xf32> -> vector<2x2xf32>
    %c0_165 = arith.constant 0 : index
    %c0_166 = arith.constant 0 : index
    %334 = vector.load %arg46[%c0_165, %c0_166] : memref<1x2xf32, #tpu.memory_space<vmem>>, vector<1x2xf32>
    %335 = vector.broadcast %334 : vector<1x2xf32> to vector<2x2xf32>
    %336 = arith.addf %333, %335 : vector<2x2xf32>
    %cst_167 = arith.constant dense<0xFF800000> : vector<2xf32>
    %337 = vector.multi_reduction <maximumf>, %336, %cst_167 [1] : vector<2x2xf32> to vector<2xf32>
    %338 = vector.shape_cast %337 : vector<2xf32> to vector<2x1xf32>
    %339 = vector.broadcast %338 : vector<2x1xf32> to vector<2x2xf32>
    %340 = arith.subf %336, %339 : vector<2x2xf32>
    %341 = math.exp %340 : vector<2x2xf32>
    %cst_168 = arith.constant dense<0.000000e+00> : vector<2xf32>
    %342 = vector.multi_reduction <add>, %341, %cst_168 [1] : vector<2x2xf32> to vector<2xf32>
    %343 = vector.shape_cast %342 : vector<2xf32> to vector<2x1xf32>
    %344 = math.log %343 : vector<2x1xf32>
    %345 = vector.broadcast %344 : vector<2x1xf32> to vector<2x2xf32>
    %346 = arith.subf %340, %345 : vector<2x2xf32>
    %c0_169 = arith.constant 0 : index
    %c0_170 = arith.constant 0 : index
    %347 = vector.load %arg47[%c0_169, %c0_170] : memref<2x2xf32, #tpu.memory_space<vmem>>, vector<2x2xf32>
    tpu.vector_store %arg47[%c0_169, %c0_170], %346 {strides = array<i32>} : memref<2x2xf32, #tpu.memory_space<vmem>>, vector<2x2xf32>,
    return
  }
  func.func @transform_0(%arg0: i32) -> (i32, i32) {
    %c0_i32 = arith.constant 0 : i32
    %c0_i32_0 = arith.constant 0 : i32
    %c0_i32_1 = arith.constant 0 : i32
    return %c0_i32, %c0_i32_0 : i32, i32
  }
  func.func @transform_1(%arg0: i32) -> (i32, i32) {
    %c0_i32 = arith.constant 0 : i32
    %c0_i32_0 = arith.constant 0 : i32
    %c0_i32_1 = arith.constant 0 : i32
    return %c0_i32, %c0_i32_0 : i32, i32
  }
  func.func @transform_2(%arg0: i32) -> (i32, i32) {
    %c0_i32 = arith.constant 0 : i32
    %c0_i32_0 = arith.constant 0 : i32
    %c0_i32_1 = arith.constant 0 : i32
    return %c0_i32, %c0_i32_0 : i32, i32
  }
  func.func @transform_3(%arg0: i32) -> (i32, i32) {
    %c0_i32 = arith.constant 0 : i32
    %c0_i32_0 = arith.constant 0 : i32
    %c0_i32_1 = arith.constant 0 : i32
    return %c0_i32, %c0_i32_0 : i32, i32
  }
  func.func @transform_4(%arg0: i32) -> (i32, i32) {
    %c0_i32 = arith.constant 0 : i32
    %c0_i32_0 = arith.constant 0 : i32
    %c0_i32_1 = arith.constant 0 : i32
    return %c0_i32, %c0_i32_0 : i32, i32
  }
  func.func @transform_5(%arg0: i32) -> (i32, i32) {
    %c0_i32 = arith.constant 0 : i32
    %c0_i32_0 = arith.constant 0 : i32
    %c0_i32_1 = arith.constant 0 : i32
    return %c0_i32, %c0_i32_0 : i32, i32
  }
  func.func @transform_6(%arg0: i32) -> (i32, i32) {
    %c0_i32 = arith.constant 0 : i32
    %c0_i32_0 = arith.constant 0 : i32
    %c0_i32_1 = arith.constant 0 : i32
    return %c0_i32, %c0_i32_0 : i32, i32
  }
  func.func @transform_7(%arg0: i32) -> (i32, i32) {
    %c0_i32 = arith.constant 0 : i32
    %c0_i32_0 = arith.constant 0 : i32
    %c0_i32_1 = arith.constant 0 : i32
    return %c0_i32, %c0_i32_0 : i32, i32
  }
  func.func @transform_8(%arg0: i32) -> (i32, i32) {
    %c0_i32 = arith.constant 0 : i32
    %c0_i32_0 = arith.constant 0 : i32
    %c0_i32_1 = arith.constant 0 : i32
    return %c0_i32, %c0_i32_0 : i32, i32
  }
  func.func @transform_9(%arg0: i32) -> (i32, i32) {
    %c0_i32 = arith.constant 0 : i32
    %c0_i32_0 = arith.constant 0 : i32
    %c0_i32_1 = arith.constant 0 : i32
    return %c0_i32, %c0_i32_0 : i32, i32
  }
  func.func @transform_10(%arg0: i32) -> (i32, i32) {
    %c0_i32 = arith.constant 0 : i32
    %c0_i32_0 = arith.constant 0 : i32
    %c0_i32_1 = arith.constant 0 : i32
    return %c0_i32, %c0_i32_0 : i32, i32
  }
  func.func @transform_11(%arg0: i32) -> (i32, i32) {
    %c0_i32 = arith.constant 0 : i32
    %c0_i32_0 = arith.constant 0 : i32
    %c0_i32_1 = arith.constant 0 : i32
    return %c0_i32, %c0_i32_0 : i32, i32
  }
  func.func @transform_12(%arg0: i32) -> (i32, i32) {
    %c0_i32 = arith.constant 0 : i32
    %c0_i32_0 = arith.constant 0 : i32
    %c0_i32_1 = arith.constant 0 : i32
    return %c0_i32, %c0_i32_0 : i32, i32
  }
  func.func @transform_13(%arg0: i32) -> (i32, i32) {
    %c0_i32 = arith.constant 0 : i32
    %c0_i32_0 = arith.constant 0 : i32
    %c0_i32_1 = arith.constant 0 : i32
    return %c0_i32, %c0_i32_0 : i32, i32
  }
  func.func @transform_14(%arg0: i32) -> (i32, i32) {
    %c0_i32 = arith.constant 0 : i32
    %c0_i32_0 = arith.constant 0 : i32
    %c0_i32_1 = arith.constant 0 : i32
    return %c0_i32, %c0_i32_0 : i32, i32
  }
  func.func @transform_15(%arg0: i32) -> (i32, i32) {
    %c0_i32 = arith.constant 0 : i32
    %c0_i32_0 = arith.constant 0 : i32
    %c0_i32_1 = arith.constant 0 : i32
    return %c0_i32, %c0_i32_0 : i32, i32
  }
  func.func @transform_16(%arg0: i32) -> (i32, i32) {
    %c0_i32 = arith.constant 0 : i32
    %c0_i32_0 = arith.constant 0 : i32
    %c0_i32_1 = arith.constant 0 : i32
    return %c0_i32, %c0_i32_0 : i32, i32
  }
  func.func @transform_17(%arg0: i32) -> (i32, i32) {
    %c0_i32 = arith.constant 0 : i32
    %c0_i32_0 = arith.constant 0 : i32
    %c0_i32_1 = arith.constant 0 : i32
    return %c0_i32, %c0_i32_0 : i32, i32
  }
  func.func @transform_18(%arg0: i32) -> (i32, i32) {
    %c0_i32 = arith.constant 0 : i32
    %c0_i32_0 = arith.constant 0 : i32
    %c0_i32_1 = arith.constant 0 : i32
    return %c0_i32, %c0_i32_0 : i32, i32
  }
  func.func @transform_19(%arg0: i32) -> (i32, i32) {
    %c0_i32 = arith.constant 0 : i32
    %c0_i32_0 = arith.constant 0 : i32
    %c0_i32_1 = arith.constant 0 : i32
    return %c0_i32, %c0_i32_0 : i32, i32
  }
  func.func @transform_20(%arg0: i32) -> (i32, i32) {
    %c0_i32 = arith.constant 0 : i32
    %c0_i32_0 = arith.constant 0 : i32
    %c0_i32_1 = arith.constant 0 : i32
    return %c0_i32, %c0_i32_0 : i32, i32
  }
  func.func @transform_21(%arg0: i32) -> (i32, i32) {
    %c0_i32 = arith.constant 0 : i32
    %c0_i32_0 = arith.constant 0 : i32
    %c0_i32_1 = arith.constant 0 : i32
    return %c0_i32, %c0_i32_0 : i32, i32
  }
  func.func @transform_22(%arg0: i32) -> (i32, i32) {
    %c0_i32 = arith.constant 0 : i32
    %c0_i32_0 = arith.constant 0 : i32
    %c0_i32_1 = arith.constant 0 : i32
    return %c0_i32, %c0_i32_0 : i32, i32
  }
  func.func @transform_23(%arg0: i32) -> (i32, i32) {
    %c0_i32 = arith.constant 0 : i32
    %c0_i32_0 = arith.constant 0 : i32
    %c0_i32_1 = arith.constant 0 : i32
    return %c0_i32, %c0_i32_0 : i32, i32
  }
  func.func @transform_24(%arg0: i32) -> (i32, i32) {
    %c0_i32 = arith.constant 0 : i32
    %c0_i32_0 = arith.constant 0 : i32
    %c0_i32_1 = arith.constant 0 : i32
    return %c0_i32, %c0_i32_0 : i32, i32
  }
  func.func @transform_25(%arg0: i32) -> (i32, i32) {
    %c0_i32 = arith.constant 0 : i32
    %c0_i32_0 = arith.constant 0 : i32
    %c0_i32_1 = arith.constant 0 : i32
    return %c0_i32, %c0_i32_0 : i32, i32
  }
  func.func @transform_26(%arg0: i32) -> (i32, i32) {
    %c0_i32 = arith.constant 0 : i32
    %c0_i32_0 = arith.constant 0 : i32
    %c0_i32_1 = arith.constant 0 : i32
    return %c0_i32, %c0_i32_0 : i32, i32
  }
  func.func @transform_27(%arg0: i32) -> (i32, i32) {
    %c0_i32 = arith.constant 0 : i32
    %c0_i32_0 = arith.constant 0 : i32
    %c0_i32_1 = arith.constant 0 : i32
    return %c0_i32, %c0_i32_0 : i32, i32
  }
  func.func @transform_28(%arg0: i32) -> (i32, i32) {
    %c0_i32 = arith.constant 0 : i32
    %c0_i32_0 = arith.constant 0 : i32
    %c0_i32_1 = arith.constant 0 : i32
    return %c0_i32, %c0_i32_0 : i32, i32
  }
  func.func @transform_29(%arg0: i32) -> (i32, i32) {
    %c0_i32 = arith.constant 0 : i32
    %c0_i32_0 = arith.constant 0 : i32
    %c0_i32_1 = arith.constant 0 : i32
    return %c0_i32, %c0_i32_0 : i32, i32
  }
  func.func @transform_30(%arg0: i32) -> (i32, i32) {
    %c0_i32 = arith.constant 0 : i32
    %c0_i32_0 = arith.constant 0 : i32
    %c0_i32_1 = arith.constant 0 : i32
    return %c0_i32, %c0_i32_0 : i32, i32
  }
  func.func @transform_31(%arg0: i32) -> (i32, i32) {
    %c0_i32 = arith.constant 0 : i32
    %c0_i32_0 = arith.constant 0 : i32
    %c0_i32_1 = arith.constant 0 : i32
    return %c0_i32, %c0_i32_0 : i32, i32
  }
  func.func @transform_32(%arg0: i32) -> (i32, i32) {
    %c0_i32 = arith.constant 0 : i32
    %c0_i32_0 = arith.constant 0 : i32
    %c0_i32_1 = arith.constant 0 : i32
    return %c0_i32, %c0_i32_0 : i32, i32
  }
  func.func @transform_33(%arg0: i32) -> (i32, i32) {
    %c0_i32 = arith.constant 0 : i32
    %c0_i32_0 = arith.constant 0 : i32
    %c0_i32_1 = arith.constant 0 : i32
    return %c0_i32, %c0_i32_0 : i32, i32
  }
  func.func @transform_34(%arg0: i32) -> (i32, i32) {
    %c0_i32 = arith.constant 0 : i32
    %c0_i32_0 = arith.constant 0 : i32
    %c0_i32_1 = arith.constant 0 : i32
    return %c0_i32, %c0_i32_0 : i32, i32
  }
  func.func @transform_35(%arg0: i32) -> (i32, i32) {
    %c0_i32 = arith.constant 0 : i32
    %c0_i32_0 = arith.constant 0 : i32
    %c0_i32_1 = arith.constant 0 : i32
    return %c0_i32, %c0_i32_0 : i32, i32
  }
  func.func @transform_36(%arg0: i32) -> (i32, i32) {
    %c0_i32 = arith.constant 0 : i32
    %c0_i32_0 = arith.constant 0 : i32
    %c0_i32_1 = arith.constant 0 : i32
    return %c0_i32, %c0_i32_0 : i32, i32
  }
  func.func @transform_37(%arg0: i32) -> (i32, i32) {
    %c0_i32 = arith.constant 0 : i32
    %c0_i32_0 = arith.constant 0 : i32
    %c0_i32_1 = arith.constant 0 : i32
    return %c0_i32, %c0_i32_0 : i32, i32
  }
  func.func @transform_38(%arg0: i32) -> (i32, i32) {
    %c0_i32 = arith.constant 0 : i32
    %c0_i32_0 = arith.constant 0 : i32
    %c0_i32_1 = arith.constant 0 : i32
    return %c0_i32, %c0_i32_0 : i32, i32
  }
  func.func @transform_39(%arg0: i32) -> (i32, i32) {
    %c0_i32 = arith.constant 0 : i32
    %c0_i32_0 = arith.constant 0 : i32
    %c0_i32_1 = arith.constant 0 : i32
    return %c0_i32, %c0_i32_0 : i32, i32
  }
  func.func @transform_40(%arg0: i32) -> (i32, i32) {
    %c0_i32 = arith.constant 0 : i32
    %c0_i32_0 = arith.constant 0 : i32
    %c0_i32_1 = arith.constant 0 : i32
    return %c0_i32, %c0_i32_0 : i32, i32
  }
  func.func @transform_41(%arg0: i32) -> (i32, i32) {
    %c0_i32 = arith.constant 0 : i32
    %c0_i32_0 = arith.constant 0 : i32
    %c0_i32_1 = arith.constant 0 : i32
    return %c0_i32, %c0_i32_0 : i32, i32
  }
  func.func @transform_42(%arg0: i32) -> (i32, i32) {
    %c0_i32 = arith.constant 0 : i32
    %c0_i32_0 = arith.constant 0 : i32
    %c0_i32_1 = arith.constant 0 : i32
    return %c0_i32, %c0_i32_0 : i32, i32
  }
  func.func @transform_43(%arg0: i32) -> (i32, i32) {
    %c0_i32 = arith.constant 0 : i32
    %c0_i32_0 = arith.constant 0 : i32
    %c0_i32_1 = arith.constant 0 : i32
    return %c0_i32, %c0_i32_0 : i32, i32
  }
  func.func @transform_44(%arg0: i32) -> (i32, i32) {
    %c0_i32 = arith.constant 0 : i32
    %c0_i32_0 = arith.constant 0 : i32
    %c0_i32_1 = arith.constant 0 : i32
    return %c0_i32, %c0_i32_0 : i32, i32
  }
  func.func @transform_45(%arg0: i32) -> (i32, i32) {
    %c0_i32 = arith.constant 0 : i32
    %c0_i32_0 = arith.constant 0 : i32
    %c0_i32_1 = arith.constant 0 : i32
    return %c0_i32, %c0_i32_0 : i32, i32
  }
  func.func @transform_46(%arg0: i32) -> (i32, i32) {
    %c0_i32 = arith.constant 0 : i32
    %c0_i32_0 = arith.constant 0 : i32
    %c0_i32_1 = arith.constant 0 : i32
    return %c0_i32, %c0_i32_0 : i32, i32
  }
  func.func @transform_47(%arg0: i32) -> (i32, i32, i32) {
    %c0_i32 = arith.constant 0 : i32
    %c0_i32_0 = arith.constant 0 : i32
    %c0_i32_1 = arith.constant 0 : i32
    %c0_i32_2 = arith.constant 0 : i32
    return %c0_i32, %c0_i32_0, %c0_i32_1 : i32, i32, i32
  }
}

</mosaic_0001>

<llo_original>
// kernel: pointnet_cls_forward.1
$region0: #{pointnet_cls_forward.1}
  #allocation0 [shape = 'u32[]', space=smem, size = 0x4, offset = 0x4, fixed_abs, tag = 'smem constant byte address 0x4 - core index']
  #allocation1 [shape = 'u32[144,128]{1,0:T(1,128)}', space=vmem, size = 0x12000, scoped, tag = 'internal scratch']
  %s0 = inlined_call_operand.smem [shape: u32[48], index: -1, kind: input, shape index: {}]
  %s1 = sld [smem:[%s0]]
  %s2 = scalar_lea.smem %s0, 1
  %s3 = sld [smem:[%s2]]
  %s4 = scalar_lea.smem %s0, 2
  %s5 = sld [smem:[%s4]]
  %s6 = scalar_lea.smem %s0, 3
  %s7 = sld [smem:[%s6]]
  %s8 = scalar_lea.smem %s0, 4
  %s9 = sld [smem:[%s8]]
  %s10 = scalar_lea.smem %s0, 5
  %s11 = sld [smem:[%s10]]
  %s12 = scalar_lea.smem %s0, 6
  %s13 = sld [smem:[%s12]]
  %s14 = scalar_lea.smem %s0, 7
  %s15 = sld [smem:[%s14]]
  %s16 = scalar_lea.smem %s0, 8
  %s17 = sld [smem:[%s16]]
  %s18 = scalar_lea.smem %s0, 9
  %s19 = sld [smem:[%s18]]
  %s20 = scalar_lea.smem %s0, 10
  %s21 = sld [smem:[%s20]]
  %s22 = scalar_lea.smem %s0, 11
  %s23 = sld [smem:[%s22]]
  %s24 = scalar_lea.smem %s0, 12
  %s25 = sld [smem:[%s24]]
  %s26 = scalar_lea.smem %s0, 13
  %s27 = sld [smem:[%s26]]
  %s28 = scalar_lea.smem %s0, 14
  %s29 = sld [smem:[%s28]]
  %s30 = scalar_lea.smem %s0, 15
  %s31 = sld [smem:[%s30]]
  %s32 = scalar_lea.smem %s0, 16
  %s33 = sld [smem:[%s32]]
  %s34 = scalar_lea.smem %s0, 17
  %s35 = sld [smem:[%s34]]
  %s36 = scalar_lea.smem %s0, 18
  %s37 = sld [smem:[%s36]]
  %s38 = scalar_lea.smem %s0, 19
  %s39 = sld [smem:[%s38]]
  %s40 = scalar_lea.smem %s0, 20
  %s41 = sld [smem:[%s40]]
  %s42 = scalar_lea.smem %s0, 21
  %s43 = sld [smem:[%s42]]
  %s44 = scalar_lea.smem %s0, 22
  %s45 = sld [smem:[%s44]]
  %s46 = scalar_lea.smem %s0, 23
  %s47 = sld [smem:[%s46]]
  %s48 = scalar_lea.smem %s0, 24
  %s49 = sld [smem:[%s48]]
  %s50 = scalar_lea.smem %s0, 25
  %s51 = sld [smem:[%s50]]
  %s52 = scalar_lea.smem %s0, 26
  %s53 = sld [smem:[%s52]]
  %s54 = scalar_lea.smem %s0, 27
  %s55 = sld [smem:[%s54]]
  %s56 = scalar_lea.smem %s0, 28
  %s57 = sld [smem:[%s56]]
  %s58 = scalar_lea.smem %s0, 29
  %s59 = sld [smem:[%s58]]
  %s60 = scalar_lea.smem %s0, 30
  %s61 = sld [smem:[%s60]]
  %s62 = scalar_lea.smem %s0, 31
  %s63 = sld [smem:[%s62]]
  %s64 = scalar_lea.smem %s0, 32
  %s65 = sld [smem:[%s64]]
  %s66 = scalar_lea.smem %s0, 33
  %s67 = sld [smem:[%s66]]
  %s68 = scalar_lea.smem %s0, 34
  %s69 = sld [smem:[%s68]]
  %s70 = scalar_lea.smem %s0, 35
  %s71 = sld [smem:[%s70]]
  %s72 = scalar_lea.smem %s0, 36
  %s73 = sld [smem:[%s72]]
  %s74 = scalar_lea.smem %s0, 37
  %s75 = sld [smem:[%s74]]
  %s76 = scalar_lea.smem %s0, 38
  %s77 = sld [smem:[%s76]]
  %s78 = scalar_lea.smem %s0, 39
  %s79 = sld [smem:[%s78]]
  %s80 = scalar_lea.smem %s0, 40
  %s81 = sld [smem:[%s80]]
  %s82 = scalar_lea.smem %s0, 41
  %s83 = sld [smem:[%s82]]
  %s84 = scalar_lea.smem %s0, 42
  %s85 = sld [smem:[%s84]]
  %s86 = scalar_lea.smem %s0, 43
  %s87 = sld [smem:[%s86]]
  %s88 = scalar_lea.smem %s0, 44
  %s89 = sld [smem:[%s88]]
  %s90 = scalar_lea.smem %s0, 45
  %s91 = sld [smem:[%s90]]
  %s92 = scalar_lea.smem %s0, 46
  %s93 = sld [smem:[%s92]]
  %s94 = scalar_lea.smem %s0, 47
  %s95 = sld [smem:[%s94]]
  %96 = xla_tuple %s93, %s95
  %s97 = sld [smem:[#allocation0]]
  $region202: #{pointnet_cls_forward.1} parent=0
    _
  %s99 = ssub.s32 1, %s97
  %s100 = scalar_select 0, %s99, %s97
  $region1: #{pointnet_cls_forward.1} parent=0
    #allocation2 [shape = 'u8[1024]{0}', space=vmem, size = 0x400, scoped, tag = 'output window, operand 0, single buffered']
    #allocation3 [shape = 's32[1]{0}', space=sflag, size = 0x4, scoped, tag = 'scoped memory for pointnet_cls_forward.1']
    %101 = vsyncpa [#allocation3], 0
    // Predicated region
    $region2: #{pointnet_cls_forward.1} parent=1 // pred_check
      _
    $region3: #{pointnet_cls_forward.1} parent=1 // pred_check_branch
      %103 = sbr.rel (0) target = $region5
    $region4: #{pointnet_cls_forward.1} parent=1 // pred_region
      _
    $region5: #{pointnet_cls_forward.1} parent=1 // pred_fallthru
      _
    // Predicated region
    $region6: #{pointnet_cls_forward.1} parent=1 // pred_check
      _
    $region7: #{pointnet_cls_forward.1} parent=1 // pred_check_branch
      %105 = sbr.rel (0) target = $region9
    $region8: #{pointnet_cls_forward.1} parent=1 // pred_region
      _
    $region9: #{pointnet_cls_forward.1} parent=1 // pred_fallthru
      _
    // Predicated region
    $region10: #{pointnet_cls_forward.1} parent=1 // pred_check
      _
    $region11: #{pointnet_cls_forward.1} parent=1 // pred_check_branch
      %107 = sbr.rel (0) target = $region13
    $region12: #{pointnet_cls_forward.1} parent=1 // pred_region
      _
    $region13: #{pointnet_cls_forward.1} parent=1 // pred_fallthru
      _
    // Predicated region
    $region14: #{pointnet_cls_forward.1} parent=1 // pred_check
      _
    $region15: #{pointnet_cls_forward.1} parent=1 // pred_check_branch
      %109 = sbr.rel (0) target = $region17
    $region16: #{pointnet_cls_forward.1} parent=1 // pred_region
      _
    $region17: #{pointnet_cls_forward.1} parent=1 // pred_fallthru
      _
    // Predicated region
    $region18: #{pointnet_cls_forward.1} parent=1 // pred_check
      _
    $region19: #{pointnet_cls_forward.1} parent=1 // pred_check_branch
      %111 = sbr.rel (0) target = $region21
    $region20: #{pointnet_cls_forward.1} parent=1 // pred_region
      _
    $region21: #{pointnet_cls_forward.1} parent=1 // pred_fallthru
      _
    // Predicated region
    $region22: #{pointnet_cls_forward.1} parent=1 // pred_check
      _
    $region23: #{pointnet_cls_forward.1} parent=1 // pred_check_branch
      %113 = sbr.rel (0) target = $region25
    $region24: #{pointnet_cls_forward.1} parent=1 // pred_region
      _
    $region25: #{pointnet_cls_forward.1} parent=1 // pred_fallthru
      _
    // Predicated region
    $region26: #{pointnet_cls_forward.1} parent=1 // pred_check
      _
    $region27: #{pointnet_cls_forward.1} parent=1 // pred_check_branch
      %115 = sbr.rel (0) target = $region29
    $region28: #{pointnet_cls_forward.1} parent=1 // pred_region
      _
    $region29: #{pointnet_cls_forward.1} parent=1 // pred_fallthru
      _
    // Predicated region
    $region30: #{pointnet_cls_forward.1} parent=1 // pred_check
      _
    $region31: #{pointnet_cls_forward.1} parent=1 // pred_check_branch
      %117 = sbr.rel (0) target = $region33
    $region32: #{pointnet_cls_forward.1} parent=1 // pred_region
      _
    $region33: #{pointnet_cls_forward.1} parent=1 // pred_fallthru
      _
    // Predicated region
    $region34: #{pointnet_cls_forward.1} parent=1 // pred_check
      _
    $region35: #{pointnet_cls_forward.1} parent=1 // pred_check_branch
      %119 = sbr.rel (0) target = $region37
    $region36: #{pointnet_cls_forward.1} parent=1 // pred_region
      _
    $region37: #{pointnet_cls_forward.1} parent=1 // pred_fallthru
      _
    // Predicated region
    $region38: #{pointnet_cls_forward.1} parent=1 // pred_check
      _
    $region39: #{pointnet_cls_forward.1} parent=1 // pred_check_branch
      %121 = sbr.rel (0) target = $region41
    $region40: #{pointnet_cls_forward.1} parent=1 // pred_region
      _
    $region41: #{pointnet_cls_forward.1} parent=1 // pred_fallthru
      _
    // Predicated region
    $region42: #{pointnet_cls_forward.1} parent=1 // pred_check
      _
    $region43: #{pointnet_cls_forward.1} parent=1 // pred_check_branch
      %123 = sbr.rel (0) target = $region45
    $region44: #{pointnet_cls_forward.1} parent=1 // pred_region
      _
    $region45: #{pointnet_cls_forward.1} parent=1 // pred_fallthru
      _
    // Predicated region
    $region46: #{pointnet_cls_forward.1} parent=1 // pred_check
      _
    $region47: #{pointnet_cls_forward.1} parent=1 // pred_check_branch
      %125 = sbr.rel (0) target = $region49
    $region48: #{pointnet_cls_forward.1} parent=1 // pred_region
      _
    $region49: #{pointnet_cls_forward.1} parent=1 // pred_fallthru
      _
    // Predicated region
    $region50: #{pointnet_cls_forward.1} parent=1 // pred_check
      _
    $region51: #{pointnet_cls_forward.1} parent=1 // pred_check_branch
      %127 = sbr.rel (0) target = $region53
    $region52: #{pointnet_cls_forward.1} parent=1 // pred_region
      _
    $region53: #{pointnet_cls_forward.1} parent=1 // pred_fallthru
      _
    // Predicated region
    $region54: #{pointnet_cls_forward.1} parent=1 // pred_check
      _
    $region55: #{pointnet_cls_forward.1} parent=1 // pred_check_branch
      %129 = sbr.rel (0) target = $region57
    $region56: #{pointnet_cls_forward.1} parent=1 // pred_region
      _
    $region57: #{pointnet_cls_forward.1} parent=1 // pred_fallthru
      _
    // Predicated region
    $region58: #{pointnet_cls_forward.1} parent=1 // pred_check
      _
    $region59: #{pointnet_cls_forward.1} parent=1 // pred_check_branch
      %131 = sbr.rel (0) target = $region61
    $region60: #{pointnet_cls_forward.1} parent=1 // pred_region
      _
    $region61: #{pointnet_cls_forward.1} parent=1 // pred_fallthru
      _
    // Predicated region
    $region62: #{pointnet_cls_forward.1} parent=1 // pred_check
      _
    $region63: #{pointnet_cls_forward.1} parent=1 // pred_check_branch
      %133 = sbr.rel (0) target = $region65
    $region64: #{pointnet_cls_forward.1} parent=1 // pred_region
      _
    $region65: #{pointnet_cls_forward.1} parent=1 // pred_fallthru
      _
    // Predicated region
    $region66: #{pointnet_cls_forward.1} parent=1 // pred_check
      _
    $region67: #{pointnet_cls_forward.1} parent=1 // pred_check_branch
      %135 = sbr.rel (0) target = $region69
    $region68: #{pointnet_cls_forward.1} parent=1 // pred_region
      _
    $region69: #{pointnet_cls_forward.1} parent=1 // pred_fallthru
      _
    // Predicated region
    $region70: #{pointnet_cls_forward.1} parent=1 // pred_check
      _
    $region71: #{pointnet_cls_forward.1} parent=1 // pred_check_branch
      %137 = sbr.rel (0) target = $region73
    $region72: #{pointnet_cls_forward.1} parent=1 // pred_region
      _
    $region73: #{pointnet_cls_forward.1} parent=1 // pred_fallthru
      _
    // Predicated region
    $region74: #{pointnet_cls_forward.1} parent=1 // pred_check
      _
    $region75: #{pointnet_cls_forward.1} parent=1 // pred_check_branch
      %139 = sbr.rel (0) target = $region77
    $region76: #{pointnet_cls_forward.1} parent=1 // pred_region
      _
    $region77: #{pointnet_cls_forward.1} parent=1 // pred_fallthru
      _
    // Predicated region
    $region78: #{pointnet_cls_forward.1} parent=1 // pred_check
      _
    $region79: #{pointnet_cls_forward.1} parent=1 // pred_check_branch
      %141 = sbr.rel (0) target = $region81
    $region80: #{pointnet_cls_forward.1} parent=1 // pred_region
      _
    $region81: #{pointnet_cls_forward.1} parent=1 // pred_fallthru
      _
    // Predicated region
    $region82: #{pointnet_cls_forward.1} parent=1 // pred_check
      _
    $region83: #{pointnet_cls_forward.1} parent=1 // pred_check_branch
      %143 = sbr.rel (0) target = $region85
    $region84: #{pointnet_cls_forward.1} parent=1 // pred_region
      _
    $region85: #{pointnet_cls_forward.1} parent=1 // pred_fallthru
      _
    // Predicated region
    $region86: #{pointnet_cls_forward.1} parent=1 // pred_check
      _
    $region87: #{pointnet_cls_forward.1} parent=1 // pred_check_branch
      %145 = sbr.rel (0) target = $region89
    $region88: #{pointnet_cls_forward.1} parent=1 // pred_region
      _
    $region89: #{pointnet_cls_forward.1} parent=1 // pred_fallthru
      _
    // Predicated region
    $region90: #{pointnet_cls_forward.1} parent=1 // pred_check
      _
    $region91: #{pointnet_cls_forward.1} parent=1 // pred_check_branch
      %147 = sbr.rel (0) target = $region93
    $region92: #{pointnet_cls_forward.1} parent=1 // pred_region
      _
    $region93: #{pointnet_cls_forward.1} parent=1 // pred_fallthru
      _
    // Predicated region
    $region94: #{pointnet_cls_forward.1} parent=1 // pred_check
      _
    $region95: #{pointnet_cls_forward.1} parent=1 // pred_check_branch
      %149 = sbr.rel (0) target = $region97
    $region96: #{pointnet_cls_forward.1} parent=1 // pred_region
      _
    $region97: #{pointnet_cls_forward.1} parent=1 // pred_fallthru
      _
    // Predicated region
    $region98: #{pointnet_cls_forward.1} parent=1 // pred_check
      _
    $region99: #{pointnet_cls_forward.1} parent=1 // pred_check_branch
      %151 = sbr.rel (0) target = $region101
    $region100: #{pointnet_cls_forward.1} parent=1 // pred_region
      _
    $region101: #{pointnet_cls_forward.1} parent=1 // pred_fallthru
      _
    // Predicated region
    $region102: #{pointnet_cls_forward.1} parent=1 // pred_check
      _
    $region103: #{pointnet_cls_forward.1} parent=1 // pred_check_branch
      %153 = sbr.rel (0) target = $region105
    $region104: #{pointnet_cls_forward.1} parent=1 // pred_region
      _
    $region105: #{pointnet_cls_forward.1} parent=1 // pred_fallthru
      _
    // Predicated region
    $region106: #{pointnet_cls_forward.1} parent=1 // pred_check
      _
    $region107: #{pointnet_cls_forward.1} parent=1 // pred_check_branch
      %155 = sbr.rel (0) target = $region109
    $region108: #{pointnet_cls_forward.1} parent=1 // pred_region
      _
    $region109: #{pointnet_cls_forward.1} parent=1 // pred_fallthru
      _
    // Predicated region
    $region110: #{pointnet_cls_forward.1} parent=1 // pred_check
      _
    $region111: #{pointnet_cls_forward.1} parent=1 // pred_check_branch
      %157 = sbr.rel (0) target = $region113
    $region112: #{pointnet_cls_forward.1} parent=1 // pred_region
      _
    $region113: #{pointnet_cls_forward.1} parent=1 // pred_fallthru
      _
    // Predicated region
    $region114: #{pointnet_cls_forward.1} parent=1 // pred_check
      _
    $region115: #{pointnet_cls_forward.1} parent=1 // pred_check_branch
      %159 = sbr.rel (0) target = $region117
    $region116: #{pointnet_cls_forward.1} parent=1 // pred_region
      _
    $region117: #{pointnet_cls_forward.1} parent=1 // pred_fallthru
      _
    // Predicated region
    $region118: #{pointnet_cls_forward.1} parent=1 // pred_check
      _
    $region119: #{pointnet_cls_forward.1} parent=1 // pred_check_branch
      %161 = sbr.rel (0) target = $region121
    $region120: #{pointnet_cls_forward.1} parent=1 // pred_region
      _
    $region121: #{pointnet_cls_forward.1} parent=1 // pred_fallthru
      _
    // Predicated region
    $region122: #{pointnet_cls_forward.1} parent=1 // pred_check
      _
    $region123: #{pointnet_cls_forward.1} parent=1 // pred_check_branch
      %163 = sbr.rel (0) target = $region125
    $region124: #{pointnet_cls_forward.1} parent=1 // pred_region
      _
    $region125: #{pointnet_cls_forward.1} parent=1 // pred_fallthru
      _
    // Predicated region
    $region126: #{pointnet_cls_forward.1} parent=1 // pred_check
      _
    $region127: #{pointnet_cls_forward.1} parent=1 // pred_check_branch
      %165 = sbr.rel (0) target = $region129
    $region128: #{pointnet_cls_forward.1} parent=1 // pred_region
      _
    $region129: #{pointnet_cls_forward.1} parent=1 // pred_fallthru
      _
    // Predicated region
    $region130: #{pointnet_cls_forward.1} parent=1 // pred_check
      _
    $region131: #{pointnet_cls_forward.1} parent=1 // pred_check_branch
      %167 = sbr.rel (0) target = $region133
    $region132: #{pointnet_cls_forward.1} parent=1 // pred_region
      _
    $region133: #{pointnet_cls_forward.1} parent=1 // pred_fallthru
      _
    // Predicated region
    $region134: #{pointnet_cls_forward.1} parent=1 // pred_check
      _
    $region135: #{pointnet_cls_forward.1} parent=1 // pred_check_branch
      %169 = sbr.rel (0) target = $region137
    $region136: #{pointnet_cls_forward.1} parent=1 // pred_region
      _
    $region137: #{pointnet_cls_forward.1} parent=1 // pred_fallthru
      _
    // Predicated region
    $region138: #{pointnet_cls_forward.1} parent=1 // pred_check
      _
    $region139: #{pointnet_cls_forward.1} parent=1 // pred_check_branch
      %171 = sbr.rel (0) target = $region141
    $region140: #{pointnet_cls_forward.1} parent=1 // pred_region
      _
    $region141: #{pointnet_cls_forward.1} parent=1 // pred_fallthru
      _
    // Predicated region
    $region142: #{pointnet_cls_forward.1} parent=1 // pred_check
      _
    $region143: #{pointnet_cls_forward.1} parent=1 // pred_check_branch
      %173 = sbr.rel (0) target = $region145
    $region144: #{pointnet_cls_forward.1} parent=1 // pred_region
      _
    $region145: #{pointnet_cls_forward.1} parent=1 // pred_fallthru
      _
    // Predicated region
    $region146: #{pointnet_cls_forward.1} parent=1 // pred_check
      _
    $region147: #{pointnet_cls_forward.1} parent=1 // pred_check_branch
      %175 = sbr.rel (0) target = $region149
    $region148: #{pointnet_cls_forward.1} parent=1 // pred_region
      _
    $region149: #{pointnet_cls_forward.1} parent=1 // pred_fallthru
      _
    // Predicated region
    $region150: #{pointnet_cls_forward.1} parent=1 // pred_check
      _
    $region151: #{pointnet_cls_forward.1} parent=1 // pred_check_branch
      %177 = sbr.rel (0) target = $region153
    $region152: #{pointnet_cls_forward.1} parent=1 // pred_region
      _
    $region153: #{pointnet_cls_forward.1} parent=1 // pred_fallthru
      _
    // Predicated region
    $region154: #{pointnet_cls_forward.1} parent=1 // pred_check
      _
    $region155: #{pointnet_cls_forward.1} parent=1 // pred_check_branch
      %179 = sbr.rel (0) target = $region157
    $region156: #{pointnet_cls_forward.1} parent=1 // pred_region
      _
    $region157: #{pointnet_cls_forward.1} parent=1 // pred_fallthru
      _
    // Predicated region
    $region158: #{pointnet_cls_forward.1} parent=1 // pred_check
      _
    $region159: #{pointnet_cls_forward.1} parent=1 // pred_check_branch
      %181 = sbr.rel (0) target = $region161
    $region160: #{pointnet_cls_forward.1} parent=1 // pred_region
      _
    $region161: #{pointnet_cls_forward.1} parent=1 // pred_fallthru
      _
    // Predicated region
    $region162: #{pointnet_cls_forward.1} parent=1 // pred_check
      _
    $region163: #{pointnet_cls_forward.1} parent=1 // pred_check_branch
      %183 = sbr.rel (0) target = $region165
    $region164: #{pointnet_cls_forward.1} parent=1 // pred_region
      _
    $region165: #{pointnet_cls_forward.1} parent=1 // pred_fallthru
      _
    // Predicated region
    $region166: #{pointnet_cls_forward.1} parent=1 // pred_check
      _
    $region167: #{pointnet_cls_forward.1} parent=1 // pred_check_branch
      %185 = sbr.rel (0) target = $region169
    $region168: #{pointnet_cls_forward.1} parent=1 // pred_region
      _
    $region169: #{pointnet_cls_forward.1} parent=1 // pred_fallthru
      _
    // Predicated region
    $region170: #{pointnet_cls_forward.1} parent=1 // pred_check
      _
    $region171: #{pointnet_cls_forward.1} parent=1 // pred_check_branch
      %187 = sbr.rel (0) target = $region173
    $region172: #{pointnet_cls_forward.1} parent=1 // pred_region
      _
    $region173: #{pointnet_cls_forward.1} parent=1 // pred_fallthru
      _
    // Predicated region
    $region174: #{pointnet_cls_forward.1} parent=1 // pred_check
      _
    $region175: #{pointnet_cls_forward.1} parent=1 // pred_check_branch
      %189 = sbr.rel (0) target = $region177
    $region176: #{pointnet_cls_forward.1} parent=1 // pred_region
      _
    $region177: #{pointnet_cls_forward.1} parent=1 // pred_fallthru
      _
    // Predicated region
    $region178: #{pointnet_cls_forward.1} parent=1 // pred_check
      _
    $region179: #{pointnet_cls_forward.1} parent=1 // pred_check_branch
      %191 = sbr.rel (0) target = $region181
    $region180: #{pointnet_cls_forward.1} parent=1 // pred_region
      _
    $region181: #{pointnet_cls_forward.1} parent=1 // pred_fallthru
      _
    // Predicated region
    $region182: #{pointnet_cls_forward.1} parent=1 // pred_check
      _
    $region183: #{pointnet_cls_forward.1} parent=1 // pred_check_branch
      %193 = sbr.rel (0) target = $region185
    $region184: #{pointnet_cls_forward.1} parent=1 // pred_region
      _
    $region185: #{pointnet_cls_forward.1} parent=1 // pred_fallthru
      _
    %v194 = vld [vmem:[%s1] sm:$0xff]
    %v195 = vld [vmem:[%s1 + $0x8] sm:$0xff]
    %v196 = vld [vmem:[%s1 + $0x10] sm:$0xff]
    %v197 = vld [vmem:[%s1 + $0x18] sm:$0xff]
    %v198 = vld [vmem:[%s5] sm:$0x7]
    %v199 = vld [vmem:[%s7] sm:$0x1]
    %v201 = vlaneseq
    %v202 = vshrl.u32 %v201, 7
    %v203 = vsub.s32 0, %v202
    %v204 = vrot.slane %v199, %v203
    %vm206 = vcmask 23552
    %v208 = vsel %vm206, %v194, 0
    %v211 = vsel %vm206, %v195, 0
    %v214 = vsel %vm206, %v196, 0
    %v217 = vsel %vm206, %v197, 0
    %vm219 = vcmask 1042432
    %v221 = vsel %vm219, %v198, 0
    %223 = vmatprep.subr.mxu0 0.0
    %224 = vmatpush1.msra.mxu0 0.0
    %225 = vmatprep.subr.mxu0 0.0
    %226 = vmatpush1.msra.mxu0 0.0
    %227 = vmatprep.subr.mxu0 0.0
    %228 = vmatpush1.msra.mxu0 0.0
    %229 = vmatprep.subr.mxu0 0.0
    %230 = vmatpush1.msra.mxu0 0.0
    %231 = vmatprep.subr.mxu0 0.0
    %232 = vmatpush1.msra.mxu0 0.0
    %233 = vmatprep.subr.mxu0 0.0
    %234 = vmatpush1.msra.mxu0 0.0
    %235 = vmatprep.subr.mxu0 0.0
    %236 = vmatpush1.msra.mxu0 0.0
    %237 = vmatprep.subr.mxu0 0.0
    %238 = vmatpush1.msra.mxu0 0.0
    %239 = vmatprep.subr.mxu0 0.0
    %240 = vmatpush1.msra.mxu0 0.0
    %241 = vmatprep.subr.mxu0 0.0
    %242 = vmatpush1.msra.mxu0 0.0
    %243 = vmatprep.subr.mxu0 0.0
    %244 = vmatpush1.msra.mxu0 0.0
    %245 = vmatprep.subr.mxu0 0.0
    %246 = vmatpush1.msra.mxu0 0.0
    %247 = vmatprep.subr.mxu0 0.0
    %248 = vmatpush1.msra.mxu0 0.0
    %249 = vmatprep.subr.mxu0 0.0
    %250 = vmatpush1.msra.mxu0 0.0
    %251 = vmatprep.subr.mxu0 0.0
    %252 = vmatpush1.msra.mxu0 0.0
    %253 = vmatprep.subr.mxu0 0.0
    %254 = vmatpush1.msra.mxu0 %v221
    %255 = vmatprep.subr.mxu0 0.0
    %256 = vmatpush2.msra.mxu0 0.0
    %257 = vmatprep.subr.mxu0 0.0
    %258 = vmatpush2.msra.mxu0 0.0
    %259 = vmatprep.subr.mxu0 0.0
    %260 = vmatpush2.msra.mxu0 0.0
    %261 = vmatprep.subr.mxu0 0.0
    %262 = vmatpush2.msra.mxu0 0.0
    %263 = vmatprep.subr.mxu0 0.0
    %264 = vmatpush2.msra.mxu0 0.0
    %265 = vmatprep.subr.mxu0 0.0
    %266 = vmatpush2.msra.mxu0 0.0
    %267 = vmatprep.subr.mxu0 0.0
    %268 = vmatpush2.msra.mxu0 0.0
    %269 = vmatprep.subr.mxu0 0.0
    %270 = vmatpush2.msra.mxu0 0.0
    %271 = vmatprep.subr.mxu0 0.0
    %272 = vmatpush2.msra.mxu0 0.0
    %273 = vmatprep.subr.mxu0 0.0
    %274 = vmatpush2.msra.mxu0 0.0
    %275 = vmatprep.subr.mxu0 0.0
    %276 = vmatpush2.msra.mxu0 0.0
    %277 = vmatprep.subr.mxu0 0.0
    %278 = vmatpush2.msra.mxu0 0.0
    %279 = vmatprep.subr.mxu0 0.0
    %280 = vmatpush2.msra.mxu0 0.0
    %281 = vmatprep.subr.mxu0 0.0
    %282 = vmatpush2.msra.mxu0 0.0
    %283 = vmatprep.subr.mxu0 0.0
    %284 = vmatpush2.msra.mxu0 0.0
    %285 = vmatprep.subr.mxu0 0.0
    %286 = vmatpush2.msra.mxu0 0.0
    %287 = vmatprep.mubr.f32.mxu0 0.0
    %288 = vmatmul.mubr.f32.gmra.mxu0 %v208
    %v289 = vpop.f32.mrf.mxu0
    %v290 = vadd.f32 %v204, %v289
    %v291 = vpop.f32.mrf.mxu0
    %292 = vmatprep.mubr.f32.mxu0 0.0
    %293 = vmatmul.mubr.f32.gmra.mxu0 %v211
    %v294 = vpop.f32.mrf.mxu0
    %v295 = vadd.f32 %v204, %v294
    %v296 = vpop.f32.mrf.mxu0
    %297 = vmatprep.mubr.f32.mxu0 0.0
    %298 = vmatmul.mubr.f32.gmra.mxu0 %v214
    %v299 = vpop.f32.mrf.mxu0
    %v300 = vadd.f32 %v204, %v299
    %v301 = vpop.f32.mrf.mxu0
    %302 = vmatprep.mubr.f32.mxu0 0.0
    %303 = vmatmul.mubr.f32.gmra.mxu0 %v217
    %v304 = vpop.f32.mrf.mxu0
    %v305 = vadd.f32 %v204, %v304
    %v306 = vpop.f32.mrf.mxu0
    %307 = vdwg.mxu0
    %v308 = vld [vmem:[%s9] sm:$0x1]
    %v309 = vld [vmem:[%s11] sm:$0x1]
    %vm310 = vcmask 130048
    %v311 = vsel %vm310, %v290, 0.0
    %v312 = vsel %vm310, %v295, 0.0
    %v313 = vadd.f32 %v311, %v312
    %v314 = vsel %vm310, %v300, 0.0
    %v315 = vadd.f32 %v313, %v314
    %v316 = vsel %vm310, %v305, 0.0
    %v317 = vadd.f32 %v315, %v316
    %v318 = vrot.slane %v317, 4
    %v319 = vadd.f32 %v317, %v318
    %v320 = vrot.slane %v319, 2
    %v321 = vadd.f32 %v319, %v320
    %v322 = vrot.slane %v321, 1
    %v323 = vadd.f32 %v321, %v322
    %v324 = vmul.f32 %v323, 0.03125
    %v325 = vmul.f32 %v290, %v290
    %v326 = vmul.f32 %v295, %v295
    %v327 = vmul.f32 %v300, %v300
    %v328 = vmul.f32 %v305, %v305
    %v329 = vsel %vm310, %v325, 0.0
    %v330 = vsel %vm310, %v326, 0.0
    %v331 = vadd.f32 %v329, %v330
    %v332 = vsel %vm310, %v327, 0.0
    %v333 = vadd.f32 %v331, %v332
    %v334 = vsel %vm310, %v328, 0.0
    %v335 = vadd.f32 %v333, %v334
    %v336 = vrot.slane %v335, 4
    %v337 = vadd.f32 %v335, %v336
    %v338 = vrot.slane %v337, 2
    %v339 = vadd.f32 %v337, %v338
    %v340 = vrot.slane %v339, 1
    %v341 = vadd.f32 %v339, %v340
    %v342 = vmul.f32 %v341, 0.03125
    %v343 = vmul.f32 %v324, %v324
    %v344 = vsub.f32 %v342, %v343
    %v345 = vsub.f32 %v290, %v324
    %v346 = vsub.f32 %v295, %v324
    %v347 = vsub.f32 %v300, %v324
    %v348 = vsub.f32 %v305, %v324
    %v349 = vadd.f32 %v344, 1e-05
    %v350 = vrsqrt.pop %v349
    %v351 = vmul.f32 %v345, %v350
    %v352 = vmul.f32 %v346, %v350
    %v353 = vmul.f32 %v347, %v350
    %v354 = vmul.f32 %v348, %v350
    %v356 = vlaneseq
    %v357 = vshrl.u32 %v356, 7
    %v358 = vsub.s32 0, %v357
    %v359 = vrot.slane %v308, %v358
    %v361 = vmul.f32 %v351, %v359
    %v362 = vmul.f32 %v352, %v359
    %v363 = vmul.f32 %v353, %v359
    %v364 = vmul.f32 %v354, %v359
    %v366 = vlaneseq
    %v367 = vshrl.u32 %v366, 7
    %v368 = vsub.s32 0, %v367
    %v369 = vrot.slane %v309, %v368
    %v371 = vadd.f32 %v361, %v369
    %v372 = vadd.f32 %v362, %v369
    %v373 = vadd.f32 %v363, %v369
    %v374 = vadd.f32 %v364, %v369
    %v375 = vmax.f32 %v371, 0.0
    %v376 = vmax.f32 %v372, 0.0
    %v377 = vmax.f32 %v373, 0.0
    %v378 = vmax.f32 %v374, 0.0
    %v379 = vld [vmem:[%s13] sm:$0xff]
    %v380 = vld [vmem:[%s13 + $0x8] sm:$0xff]
    %v381 = vld [vmem:[%s15] sm:$0x1]
    %v383 = vlaneseq
    %v384 = vshrl.u32 %v383, 7
    %v385 = vsub.s32 0, %v384
    %v386 = vrot.slane %v381, %v385
    %v389 = vsel %vm310, %v375, 0
    %v392 = vsel %vm310, %v376, 0
    %v395 = vsel %vm310, %v377, 0
    %v398 = vsel %vm310, %v378, 0
    %400 = vmatprep.subr.mxu0 0.0
    %401 = vmatpush1.msra.mxu0 0.0
    %402 = vmatprep.subr.mxu0 0.0
    %403 = vmatpush1.msra.mxu0 0.0
    %404 = vmatprep.subr.mxu0 0.0
    %405 = vmatpush1.msra.mxu0 0.0
    %406 = vmatprep.subr.mxu0 0.0
    %407 = vmatpush1.msra.mxu0 0.0
    %408 = vmatprep.subr.mxu0 0.0
    %409 = vmatpush1.msra.mxu0 0.0
    %410 = vmatprep.subr.mxu0 0.0
    %411 = vmatpush1.msra.mxu0 0.0
    %412 = vmatprep.subr.mxu0 0.0
    %413 = vmatpush1.msra.mxu0 0.0
    %414 = vmatprep.subr.mxu0 0.0
    %415 = vmatpush1.msra.mxu0 0.0
    %416 = vmatprep.subr.mxu0 0.0
    %417 = vmatpush1.msra.mxu0 0.0
    %418 = vmatprep.subr.mxu0 0.0
    %419 = vmatpush1.msra.mxu0 0.0
    %420 = vmatprep.subr.mxu0 0.0
    %421 = vmatpush1.msra.mxu0 0.0
    %422 = vmatprep.subr.mxu0 0.0
    %423 = vmatpush1.msra.mxu0 0.0
    %424 = vmatprep.subr.mxu0 0.0
    %425 = vmatpush1.msra.mxu0 0.0
    %426 = vmatprep.subr.mxu0 0.0
    %427 = vmatpush1.msra.mxu0 0.0
    %428 = vmatprep.subr.mxu0 0.0
    %429 = vmatpush1.msra.mxu0 %v380
    %430 = vmatprep.subr.mxu0 0.0
    %431 = vmatpush1.msra.mxu0 %v379
    %432 = vmatprep.subr.mxu0 0.0
    %433 = vmatpush2.msra.mxu0 0.0
    %434 = vmatprep.subr.mxu0 0.0
    %435 = vmatpush2.msra.mxu0 0.0
    %436 = vmatprep.subr.mxu0 0.0
    %437 = vmatpush2.msra.mxu0 0.0
    %438 = vmatprep.subr.mxu0 0.0
    %439 = vmatpush2.msra.mxu0 0.0
    %440 = vmatprep.subr.mxu0 0.0
    %441 = vmatpush2.msra.mxu0 0.0
    %442 = vmatprep.subr.mxu0 0.0
    %443 = vmatpush2.msra.mxu0 0.0
    %444 = vmatprep.subr.mxu0 0.0
    %445 = vmatpush2.msra.mxu0 0.0
    %446 = vmatprep.subr.mxu0 0.0
    %447 = vmatpush2.msra.mxu0 0.0
    %448 = vmatprep.subr.mxu0 0.0
    %449 = vmatpush2.msra.mxu0 0.0
    %450 = vmatprep.subr.mxu0 0.0
    %451 = vmatpush2.msra.mxu0 0.0
    %452 = vmatprep.subr.mxu0 0.0
    %453 = vmatpush2.msra.mxu0 0.0
    %454 = vmatprep.subr.mxu0 0.0
    %455 = vmatpush2.msra.mxu0 0.0
    %456 = vmatprep.subr.mxu0 0.0
    %457 = vmatpush2.msra.mxu0 0.0
    %458 = vmatprep.subr.mxu0 0.0
    %459 = vmatpush2.msra.mxu0 0.0
    %460 = vmatprep.subr.mxu0 0.0
    %461 = vmatpush2.msra.mxu0 0.0
    %462 = vmatprep.subr.mxu0 0.0
    %463 = vmatpush2.msra.mxu0 0.0
    %464 = vmatprep.mubr.f32.mxu0 0.0
    %465 = vmatmul.mubr.f32.gmra.mxu0 %v389
    %v466 = vpop.f32.mrf.mxu0
    %v467 = vadd.f32 %v386, %v466
    %v468 = vpop.f32.mrf.mxu0
    %469 = vmatprep.mubr.f32.mxu0 0.0
    %470 = vmatmul.mubr.f32.gmra.mxu0 %v392
    %v471 = vpop.f32.mrf.mxu0
    %v472 = vadd.f32 %v386, %v471
    %v473 = vpop.f32.mrf.mxu0
    %474 = vmatprep.mubr.f32.mxu0 0.0
    %475 = vmatmul.mubr.f32.gmra.mxu0 %v395
    %v476 = vpop.f32.mrf.mxu0
    %v477 = vadd.f32 %v386, %v476
    %v478 = vpop.f32.mrf.mxu0
    %479 = vmatprep.mubr.f32.mxu0 0.0
    %480 = vmatmul.mubr.f32.gmra.mxu0 %v398
    %v481 = vpop.f32.mrf.mxu0
    %v482 = vadd.f32 %v386, %v481
    %v483 = vpop.f32.mrf.mxu0
    %484 = vdwg.mxu0
    %v485 = vld [vmem:[%s17] sm:$0x1]
    %v486 = vld [vmem:[%s19] sm:$0x1]
    %vm487 = vcmask 261120
    %v488 = vsel %vm487, %v467, 0.0
    %v489 = vsel %vm487, %v472, 0.0
    %v490 = vadd.f32 %v488, %v489
    %v491 = vsel %vm487, %v477, 0.0
    %v492 = vadd.f32 %v490, %v491
    %v493 = vsel %vm487, %v482, 0.0
    %v494 = vadd.f32 %v492, %v493
    %v495 = vrot.slane %v494, 4
    %v496 = vadd.f32 %v494, %v495
    %v497 = vrot.slane %v496, 2
    %v498 = vadd.f32 %v496, %v497
    %v499 = vrot.slane %v498, 1
    %v500 = vadd.f32 %v498, %v499
    %v501 = vmul.f32 %v500, 0.03125
    %v502 = vmul.f32 %v467, %v467
    %v503 = vmul.f32 %v472, %v472
    %v504 = vmul.f32 %v477, %v477
    %v505 = vmul.f32 %v482, %v482
    %v506 = vsel %vm487, %v502, 0.0
    %v507 = vsel %vm487, %v503, 0.0
    %v508 = vadd.f32 %v506, %v507
    %v509 = vsel %vm487, %v504, 0.0
    %v510 = vadd.f32 %v508, %v509
    %v511 = vsel %vm487, %v505, 0.0
    %v512 = vadd.f32 %v510, %v511
    %v513 = vrot.slane %v512, 4
    %v514 = vadd.f32 %v512, %v513
    %v515 = vrot.slane %v514, 2
    %v516 = vadd.f32 %v514, %v515
    %v517 = vrot.slane %v516, 1
    %v518 = vadd.f32 %v516, %v517
    %v519 = vmul.f32 %v518, 0.03125
    %v520 = vmul.f32 %v501, %v501
    %v521 = vsub.f32 %v519, %v520
    %v522 = vsub.f32 %v467, %v501
    %v523 = vsub.f32 %v472, %v501
    %v524 = vsub.f32 %v477, %v501
    %v525 = vsub.f32 %v482, %v501
    %v526 = vadd.f32 %v521, 1e-05
    %v527 = vrsqrt.pop %v526
    %v528 = vmul.f32 %v522, %v527
    %v529 = vmul.f32 %v523, %v527
    %v530 = vmul.f32 %v524, %v527
    %v531 = vmul.f32 %v525, %v527
    %v533 = vlaneseq
    %v534 = vshrl.u32 %v533, 7
    %v535 = vsub.s32 0, %v534
    %v536 = vrot.slane %v485, %v535
    %v538 = vmul.f32 %v528, %v536
    %v539 = vmul.f32 %v529, %v536
    %v540 = vmul.f32 %v530, %v536
    %v541 = vmul.f32 %v531, %v536
    %v543 = vlaneseq
    %v544 = vshrl.u32 %v543, 7
    %v545 = vsub.s32 0, %v544
    %v546 = vrot.slane %v486, %v545
    %v548 = vadd.f32 %v538, %v546
    %v549 = vadd.f32 %v539, %v546
    %v550 = vadd.f32 %v540, %v546
    %v551 = vadd.f32 %v541, %v546
    %v552 = vmax.f32 %v548, 0.0
    %v553 = vmax.f32 %v549, 0.0
    %v554 = vmax.f32 %v550, 0.0
    %v555 = vmax.f32 %v551, 0.0
    %v556 = vld [vmem:[%s21] sm:$0xff]
    %v557 = vld [vmem:[%s21 + $0x8] sm:$0xff]
    %v558 = vld [vmem:[%s21 + $0x10] sm:$0xff]
    %v559 = vld [vmem:[%s21 + $0x18] sm:$0xff]
    %v560 = vld [vmem:[%s21 + $0x20] sm:$0xff]
    %v561 = vld [vmem:[%s21 + $0x28] sm:$0xff]
    %v562 = vld [vmem:[%s21 + $0x30] sm:$0xff]
    %v563 = vld [vmem:[%s21 + $0x38] sm:$0xff]
    %v564 = vld [vmem:[%s23] sm:$0x3]
    %v566 = vlaneseq
    %v567 = vshrl.u32 %v566, 7
    %v568 = vsub.s32 0, %v567
    %v569 = vrot.slane %v564, %v568
    %v570 = vlaneseq
    %v571 = vshrl.u32 %v570, 7
    %v572 = vsub.s32 1, %v571
    %v573 = vrot.slane %v564, %v572
    %v577 = vsel %vm487, %v552, 0
    %v580 = vsel %vm487, %v553, 0
    %v583 = vsel %vm487, %v554, 0
    %v586 = vsel %vm487, %v555, 0
    %588 = vmatprep.subr.mxu0 0.0
    %589 = vmatpush1.msra.mxu0 0.0
    %590 = vmatprep.subr.mxu0 0.0
    %591 = vmatpush1.msra.mxu0 0.0
    %592 = vmatprep.subr.mxu0 0.0
    %593 = vmatpush1.msra.mxu0 0.0
    %594 = vmatprep.subr.mxu0 0.0
    %595 = vmatpush1.msra.mxu0 0.0
    %596 = vmatprep.subr.mxu0 0.0
    %597 = vmatpush1.msra.mxu0 0.0
    %598 = vmatprep.subr.mxu0 0.0
    %599 = vmatpush1.msra.mxu0 0.0
    %600 = vmatprep.subr.mxu0 0.0
    %601 = vmatpush1.msra.mxu0 0.0
    %602 = vmatprep.subr.mxu0 0.0
    %603 = vmatpush1.msra.mxu0 0.0
    %604 = vmatprep.subr.mxu0 0.0
    %605 = vmatpush1.msra.mxu0 0.0
    %606 = vmatprep.subr.mxu0 0.0
    %607 = vmatpush1.msra.mxu0 0.0
    %608 = vmatprep.subr.mxu0 0.0
    %609 = vmatpush1.msra.mxu0 0.0
    %610 = vmatprep.subr.mxu0 0.0
    %611 = vmatpush1.msra.mxu0 0.0
    %612 = vmatprep.subr.mxu0 %v563
    %613 = vmatpush1.msra.mxu0 %v562
    %614 = vmatprep.subr.mxu0 %v561
    %615 = vmatpush1.msra.mxu0 %v560
    %616 = vmatprep.subr.mxu0 %v559
    %617 = vmatpush1.msra.mxu0 %v558
    %618 = vmatprep.subr.mxu0 %v557
    %619 = vmatpush1.msra.mxu0 %v556
    %620 = vmatprep.subr.mxu0 0.0
    %621 = vmatpush2.msra.mxu0 0.0
    %622 = vmatprep.subr.mxu0 0.0
    %623 = vmatpush2.msra.mxu0 0.0
    %624 = vmatprep.subr.mxu0 0.0
    %625 = vmatpush2.msra.mxu0 0.0
    %626 = vmatprep.subr.mxu0 0.0
    %627 = vmatpush2.msra.mxu0 0.0
    %628 = vmatprep.subr.mxu0 0.0
    %629 = vmatpush2.msra.mxu0 0.0
    %630 = vmatprep.subr.mxu0 0.0
    %631 = vmatpush2.msra.mxu0 0.0
    %632 = vmatprep.subr.mxu0 0.0
    %633 = vmatpush2.msra.mxu0 0.0
    %634 = vmatprep.subr.mxu0 0.0
    %635 = vmatpush2.msra.mxu0 0.0
    %636 = vmatprep.subr.mxu0 0.0
    %637 = vmatpush2.msra.mxu0 0.0
    %638 = vmatprep.subr.mxu0 0.0
    %639 = vmatpush2.msra.mxu0 0.0
    %640 = vmatprep.subr.mxu0 0.0
    %641 = vmatpush2.msra.mxu0 0.0
    %642 = vmatprep.subr.mxu0 0.0
    %643 = vmatpush2.msra.mxu0 0.0
    %644 = vmatprep.subr.mxu0 0.0
    %645 = vmatpush2.msra.mxu0 0.0
    %646 = vmatprep.subr.mxu0 0.0
    %647 = vmatpush2.msra.mxu0 0.0
    %648 = vmatprep.subr.mxu0 0.0
    %649 = vmatpush2.msra.mxu0 0.0
    %650 = vmatprep.subr.mxu0 0.0
    %651 = vmatpush2.msra.mxu0 0.0
    %652 = vmatprep.mubr.f32.mxu0 0.0
    %653 = vmatmul.mubr.f32.gmra.mxu0 %v577
    %v654 = vpop.f32.mrf.mxu0
    %v655 = vadd.f32 %v569, %v654
    %v656 = vpop.f32.mrf.mxu0
    %v657 = vadd.f32 %v573, %v656
    %658 = vmatprep.mubr.f32.mxu0 0.0
    %659 = vmatmul.mubr.f32.gmra.mxu0 %v580
    %v660 = vpop.f32.mrf.mxu0
    %v661 = vadd.f32 %v569, %v660
    %v662 = vpop.f32.mrf.mxu0
    %v663 = vadd.f32 %v573, %v662
    %664 = vmatprep.mubr.f32.mxu0 0.0
    %665 = vmatmul.mubr.f32.gmra.mxu0 %v583
    %v666 = vpop.f32.mrf.mxu0
    %v667 = vadd.f32 %v569, %v666
    %v668 = vpop.f32.mrf.mxu0
    %v669 = vadd.f32 %v573, %v668
    %670 = vmatprep.mubr.f32.mxu0 0.0
    %671 = vmatmul.mubr.f32.gmra.mxu0 %v586
    %v672 = vpop.f32.mrf.mxu0
    %v673 = vadd.f32 %v569, %v672
    %v674 = vpop.f32.mrf.mxu0
    %v675 = vadd.f32 %v573, %v674
    %676 = vdwg.mxu0
    %v677 = vld [vmem:[%s25] sm:$0x3]
    %v678 = vld [vmem:[%s27] sm:$0x3]
    %v679 = vadd.f32 %v655, %v661
    %v680 = vadd.f32 %v679, %v667
    %v681 = vadd.f32 %v680, %v673
    %v682 = vrot.slane %v681, 4
    %v683 = vadd.f32 %v681, %v682
    %v684 = vrot.slane %v683, 2
    %v685 = vadd.f32 %v683, %v684
    %v686 = vrot.slane %v685, 1
    %v687 = vadd.f32 %v685, %v686
    %v688 = vadd.f32 %v657, %v663
    %v689 = vadd.f32 %v688, %v669
    %v690 = vadd.f32 %v689, %v675
    %v691 = vrot.slane %v690, 4
    %v692 = vadd.f32 %v690, %v691
    %v693 = vrot.slane %v692, 2
    %v694 = vadd.f32 %v692, %v693
    %v695 = vrot.slane %v694, 1
    %v696 = vadd.f32 %v694, %v695
    %v697 = vmul.f32 %v687, 0.03125
    %v698 = vmul.f32 %v696, 0.03125
    %v699 = vmul.f32 %v655, %v655
    %v700 = vmul.f32 %v657, %v657
    %v701 = vmul.f32 %v661, %v661
    %v702 = vmul.f32 %v663, %v663
    %v703 = vmul.f32 %v667, %v667
    %v704 = vmul.f32 %v669, %v669
    %v705 = vmul.f32 %v673, %v673
    %v706 = vmul.f32 %v675, %v675
    %v707 = vadd.f32 %v699, %v701
    %v708 = vadd.f32 %v707, %v703
    %v709 = vadd.f32 %v708, %v705
    %v710 = vrot.slane %v709, 4
    %v711 = vadd.f32 %v709, %v710
    %v712 = vrot.slane %v711, 2
    %v713 = vadd.f32 %v711, %v712
    %v714 = vrot.slane %v713, 1
    %v715 = vadd.f32 %v713, %v714
    %v716 = vadd.f32 %v700, %v702
    %v717 = vadd.f32 %v716, %v704
    %v718 = vadd.f32 %v717, %v706
    %v719 = vrot.slane %v718, 4
    %v720 = vadd.f32 %v718, %v719
    %v721 = vrot.slane %v720, 2
    %v722 = vadd.f32 %v720, %v721
    %v723 = vrot.slane %v722, 1
    %v724 = vadd.f32 %v722, %v723
    %v725 = vmul.f32 %v715, 0.03125
    %v726 = vmul.f32 %v724, 0.03125
    %v727 = vmul.f32 %v697, %v697
    %v728 = vmul.f32 %v698, %v698
    %v729 = vsub.f32 %v725, %v727
    %v730 = vsub.f32 %v726, %v728
    %v731 = vsub.f32 %v655, %v697
    %v732 = vsub.f32 %v657, %v698
    %v733 = vsub.f32 %v661, %v697
    %v734 = vsub.f32 %v663, %v698
    %v735 = vsub.f32 %v667, %v697
    %v736 = vsub.f32 %v669, %v698
    %v737 = vsub.f32 %v673, %v697
    %v738 = vsub.f32 %v675, %v698
    %v739 = vadd.f32 %v729, 1e-05
    %v740 = vadd.f32 %v730, 1e-05
    %v741 = vrsqrt.pop %v739
    %v742 = vrsqrt.pop %v740
    %v743 = vmul.f32 %v731, %v741
    %v744 = vmul.f32 %v732, %v742
    %v745 = vmul.f32 %v733, %v741
    %v746 = vmul.f32 %v734, %v742
    %v747 = vmul.f32 %v735, %v741
    %v748 = vmul.f32 %v736, %v742
    %v749 = vmul.f32 %v737, %v741
    %v750 = vmul.f32 %v738, %v742
    %v752 = vlaneseq
    %v753 = vshrl.u32 %v752, 7
    %v754 = vsub.s32 0, %v753
    %v755 = vrot.slane %v677, %v754
    %v756 = vlaneseq
    %v757 = vshrl.u32 %v756, 7
    %v758 = vsub.s32 1, %v757
    %v759 = vrot.slane %v677, %v758
    %v762 = vmul.f32 %v743, %v755
    %v763 = vmul.f32 %v744, %v759
    %v764 = vmul.f32 %v745, %v755
    %v765 = vmul.f32 %v746, %v759
    %v766 = vmul.f32 %v747, %v755
    %v767 = vmul.f32 %v748, %v759
    %v768 = vmul.f32 %v749, %v755
    %v769 = vmul.f32 %v750, %v759
    %v771 = vlaneseq
    %v772 = vshrl.u32 %v771, 7
    %v773 = vsub.s32 0, %v772
    %v774 = vrot.slane %v678, %v773
    %v775 = vlaneseq
    %v776 = vshrl.u32 %v775, 7
    %v777 = vsub.s32 1, %v776
    %v778 = vrot.slane %v678, %v777
    %v781 = vadd.f32 %v762, %v774
    %v782 = vadd.f32 %v763, %v778
    %v783 = vadd.f32 %v764, %v774
    %v784 = vadd.f32 %v765, %v778
    %v785 = vadd.f32 %v766, %v774
    %v786 = vadd.f32 %v767, %v778
    %v787 = vadd.f32 %v768, %v774
    %v788 = vadd.f32 %v769, %v778
    %v789 = vmax.f32 %v781, 0.0
    %v790 = vmax.f32 %v782, 0.0
    %v791 = vmax.f32 %v783, 0.0
    %v792 = vmax.f32 %v784, 0.0
    %v793 = vmax.f32 %v785, 0.0
    %v794 = vmax.f32 %v786, 0.0
    %v795 = vmax.f32 %v787, 0.0
    %v796 = vmax.f32 %v788, 0.0
    %v797 = vmax.f32 %v789, %v791
    %v798 = vrot.slane %v797, 4
    %v799 = vmax.f32 %v797, %v798
    %v800 = vrot.slane %v799, 2
    %v801 = vmax.f32 %v799, %v800
    %v802 = vrot.slane %v801, 1
    %v803 = vmax.f32 %v801, %v802
    %v804 = vmax.f32 %v790, %v792
    %v805 = vrot.slane %v804, 4
    %v806 = vmax.f32 %v804, %v805
    %v807 = vrot.slane %v806, 2
    %v808 = vmax.f32 %v806, %v807
    %v809 = vrot.slane %v808, 1
    %v810 = vmax.f32 %v808, %v809
    %v811 = vmax.f32 %v793, %v795
    %v812 = vrot.slane %v811, 4
    %v813 = vmax.f32 %v811, %v812
    %v814 = vrot.slane %v813, 2
    %v815 = vmax.f32 %v813, %v814
    %v816 = vrot.slane %v815, 1
    %v817 = vmax.f32 %v815, %v816
    %v818 = vmax.f32 %v794, %v796
    %v819 = vrot.slane %v818, 4
    %v820 = vmax.f32 %v818, %v819
    %v821 = vrot.slane %v820, 2
    %v822 = vmax.f32 %v820, %v821
    %v823 = vrot.slane %v822, 1
    %v824 = vmax.f32 %v822, %v823
    %v825 = vld [vmem:[%s29] sm:$0xff]
    %v826 = vld [vmem:[%s29 + $0x8] sm:$0xff]
    %v827 = vld [vmem:[%s29 + $0x10] sm:$0xff]
    %v828 = vld [vmem:[%s29 + $0x18] sm:$0xff]
    %v829 = vld [vmem:[%s29 + $0x20] sm:$0xff]
    %v830 = vld [vmem:[%s29 + $0x28] sm:$0xff]
    %v831 = vld [vmem:[%s29 + $0x30] sm:$0xff]
    %v832 = vld [vmem:[%s29 + $0x38] sm:$0xff]
    %v833 = vld [vmem:[%s29 + $0x40] sm:$0xff]
    %v834 = vld [vmem:[%s29 + $0x48] sm:$0xff]
    %v835 = vld [vmem:[%s29 + $0x50] sm:$0xff]
    %v836 = vld [vmem:[%s29 + $0x58] sm:$0xff]
    %v837 = vld [vmem:[%s29 + $0x60] sm:$0xff]
    %v838 = vld [vmem:[%s29 + $0x68] sm:$0xff]
    %v839 = vld [vmem:[%s29 + $0x70] sm:$0xff]
    %v840 = vld [vmem:[%s29 + $0x78] sm:$0xff]
    %v841 = vld [vmem:[%s29 + $0x80] sm:$0xff]
    %v842 = vld [vmem:[%s29 + $0x88] sm:$0xff]
    %v843 = vld [vmem:[%s29 + $0x90] sm:$0xff]
    %v844 = vld [vmem:[%s29 + $0x98] sm:$0xff]
    %v845 = vld [vmem:[%s29 + $0xa0] sm:$0xff]
    %v846 = vld [vmem:[%s29 + $0xa8] sm:$0xff]
    %v847 = vld [vmem:[%s29 + $0xb0] sm:$0xff]
    %v848 = vld [vmem:[%s29 + $0xb8] sm:$0xff]
    %v849 = vld [vmem:[%s29 + $0xc0] sm:$0xff]
    %v850 = vld [vmem:[%s29 + $0xc8] sm:$0xff]
    %v851 = vld [vmem:[%s29 + $0xd0] sm:$0xff]
    %v852 = vld [vmem:[%s29 + $0xd8] sm:$0xff]
    %v853 = vld [vmem:[%s29 + $0xe0] sm:$0xff]
    %v854 = vld [vmem:[%s29 + $0xe8] sm:$0xff]
    %v855 = vld [vmem:[%s29 + $0xf0] sm:$0xff]
    %v856 = vld [vmem:[%s29 + $0xf8] sm:$0xff]
    %v857 = vld [vmem:[%s31] sm:$0x1]
    %v859 = vlaneseq
    %v860 = vshrl.u32 %v859, 7
    %v861 = vsub.s32 0, %v860
    %v862 = vrot.slane %v857, %v861
    %vm868 = vcmask 1041409
    %v869 = vsel %vm868, %v817, %v803
    %v870 = vsel %vm868, %v824, %v810
    %873 = vmatprep.subr.mxu0 0.0
    %874 = vmatpush1.msra.mxu0 %v840
    %875 = vmatprep.subr.mxu0 0.0
    %876 = vmatpush1.msra.mxu0 %v839
    %877 = vmatprep.subr.mxu0 0.0
    %878 = vmatpush1.msra.mxu0 %v838
    %879 = vmatprep.subr.mxu0 0.0
    %880 = vmatpush1.msra.mxu0 %v837
    %881 = vmatprep.subr.mxu0 0.0
    %882 = vmatpush1.msra.mxu0 %v836
    %883 = vmatprep.subr.mxu0 0.0
    %884 = vmatpush1.msra.mxu0 %v835
    %885 = vmatprep.subr.mxu0 0.0
    %886 = vmatpush1.msra.mxu0 %v834
    %887 = vmatprep.subr.mxu0 0.0
    %888 = vmatpush1.msra.mxu0 %v833
    %889 = vmatprep.subr.mxu0 0.0
    %890 = vmatpush1.msra.mxu0 %v832
    %891 = vmatprep.subr.mxu0 0.0
    %892 = vmatpush1.msra.mxu0 %v831
    %893 = vmatprep.subr.mxu0 0.0
    %894 = vmatpush1.msra.mxu0 %v830
    %895 = vmatprep.subr.mxu0 0.0
    %896 = vmatpush1.msra.mxu0 %v829
    %897 = vmatprep.subr.mxu0 0.0
    %898 = vmatpush1.msra.mxu0 %v828
    %899 = vmatprep.subr.mxu0 0.0
    %900 = vmatpush1.msra.mxu0 %v827
    %901 = vmatprep.subr.mxu0 0.0
    %902 = vmatpush1.msra.mxu0 %v826
    %903 = vmatprep.subr.mxu0 0.0
    %904 = vmatpush1.msra.mxu0 %v825
    %905 = vmatprep.subr.mxu0 0.0
    %906 = vmatpush2.msra.mxu0 %v856
    %907 = vmatprep.subr.mxu0 0.0
    %908 = vmatpush2.msra.mxu0 %v855
    %909 = vmatprep.subr.mxu0 0.0
    %910 = vmatpush2.msra.mxu0 %v854
    %911 = vmatprep.subr.mxu0 0.0
    %912 = vmatpush2.msra.mxu0 %v853
    %913 = vmatprep.subr.mxu0 0.0
    %914 = vmatpush2.msra.mxu0 %v852
    %915 = vmatprep.subr.mxu0 0.0
    %916 = vmatpush2.msra.mxu0 %v851
    %917 = vmatprep.subr.mxu0 0.0
    %918 = vmatpush2.msra.mxu0 %v850
    %919 = vmatprep.subr.mxu0 0.0
    %920 = vmatpush2.msra.mxu0 %v849
    %921 = vmatprep.subr.mxu0 0.0
    %922 = vmatpush2.msra.mxu0 %v848
    %923 = vmatprep.subr.mxu0 0.0
    %924 = vmatpush2.msra.mxu0 %v847
    %925 = vmatprep.subr.mxu0 0.0
    %926 = vmatpush2.msra.mxu0 %v846
    %927 = vmatprep.subr.mxu0 0.0
    %928 = vmatpush2.msra.mxu0 %v845
    %929 = vmatprep.subr.mxu0 0.0
    %930 = vmatpush2.msra.mxu0 %v844
    %931 = vmatprep.subr.mxu0 0.0
    %932 = vmatpush2.msra.mxu0 %v843
    %933 = vmatprep.subr.mxu0 0.0
    %934 = vmatpush2.msra.mxu0 %v842
    %935 = vmatprep.subr.mxu0 0.0
    %936 = vmatpush2.msra.mxu0 %v841
    %937 = vmatprep.mubr.f32.mxu0 %v870
    %938 = vmatmul.mubr.f32.gmra.mxu0 %v869
    %v939 = vpop.f32.mrf.mxu0
    %v940 = vadd.f32 %v862, %v939
    %v941 = vpop.f32.mrf.mxu0
    %942 = vdwg.mxu0
    %v943 = vld [vmem:[%s33] sm:$0x1]
    %v944 = vld [vmem:[%s35] sm:$0x1]
    %vm945 = vcmask 1041408
    %v946 = vsel %vm945, %v940, 0.0
    %v947 = vrot.slane %v946, 4
    %v948 = vadd.f32 %v946, %v947
    %v949 = vrot.slane %v948, 2
    %v950 = vadd.f32 %v948, %v949
    %v951 = vrot.slane %v950, 1
    %v952 = vadd.f32 %v950, %v951
    %v953 = vmul.f32 %v952, 0.5
    %v954 = vmul.f32 %v940, %v940
    %v955 = vsel %vm945, %v954, 0.0
    %v956 = vrot.slane %v955, 4
    %v957 = vadd.f32 %v955, %v956
    %v958 = vrot.slane %v957, 2
    %v959 = vadd.f32 %v957, %v958
    %v960 = vrot.slane %v959, 1
    %v961 = vadd.f32 %v959, %v960
    %v962 = vmul.f32 %v961, 0.5
    %v963 = vmul.f32 %v953, %v953
    %v964 = vsub.f32 %v962, %v963
    %v965 = vsub.f32 %v940, %v953
    %v966 = vadd.f32 %v964, 1e-05
    %v967 = vrsqrt.pop %v966
    %v968 = vmul.f32 %v965, %v967
    %v970 = vlaneseq
    %v971 = vshrl.u32 %v970, 7
    %v972 = vsub.s32 0, %v971
    %v973 = vrot.slane %v943, %v972
    %v975 = vmul.f32 %v968, %v973
    %v977 = vlaneseq
    %v978 = vshrl.u32 %v977, 7
    %v979 = vsub.s32 0, %v978
    %v980 = vrot.slane %v944, %v979
    %v982 = vadd.f32 %v975, %v980
    %v983 = vmax.f32 %v982, 0.0
    %v984 = vld [vmem:[%s37] sm:$0xff]
    %v985 = vld [vmem:[%s37 + $0x8] sm:$0xff]
    %v986 = vld [vmem:[%s37 + $0x10] sm:$0xff]
    %v987 = vld [vmem:[%s37 + $0x18] sm:$0xff]
    %v988 = vld [vmem:[%s37 + $0x20] sm:$0xff]
    %v989 = vld [vmem:[%s37 + $0x28] sm:$0xff]
    %v990 = vld [vmem:[%s37 + $0x30] sm:$0xff]
    %v991 = vld [vmem:[%s37 + $0x38] sm:$0xff]
    %v992 = vld [vmem:[%s37 + $0x40] sm:$0xff]
    %v993 = vld [vmem:[%s37 + $0x48] sm:$0xff]
    %v994 = vld [vmem:[%s37 + $0x50] sm:$0xff]
    %v995 = vld [vmem:[%s37 + $0x58] sm:$0xff]
    %v996 = vld [vmem:[%s37 + $0x60] sm:$0xff]
    %v997 = vld [vmem:[%s37 + $0x68] sm:$0xff]
    %v998 = vld [vmem:[%s37 + $0x70] sm:$0xff]
    %v999 = vld [vmem:[%s37 + $0x78] sm:$0xff]
    %v1000 = vld [vmem:[%s39] sm:$0x1]
    %v1002 = vlaneseq
    %v1003 = vshrl.u32 %v1002, 7
    %v1004 = vsub.s32 0, %v1003
    %v1005 = vrot.slane %v1000, %v1004
    %1007 = vmatprep.subr.mxu0 0.0
    %1008 = vmatpush1.msra.mxu0 %v999
    %1009 = vmatprep.subr.mxu0 0.0
    %1010 = vmatpush1.msra.mxu0 %v998
    %1011 = vmatprep.subr.mxu0 0.0
    %1012 = vmatpush1.msra.mxu0 %v997
    %1013 = vmatprep.subr.mxu0 0.0
    %1014 = vmatpush1.msra.mxu0 %v996
    %1015 = vmatprep.subr.mxu0 0.0
    %1016 = vmatpush1.msra.mxu0 %v995
    %1017 = vmatprep.subr.mxu0 0.0
    %1018 = vmatpush1.msra.mxu0 %v994
    %1019 = vmatprep.subr.mxu0 0.0
    %1020 = vmatpush1.msra.mxu0 %v993
    %1021 = vmatprep.subr.mxu0 0.0
    %1022 = vmatpush1.msra.mxu0 %v992
    %1023 = vmatprep.subr.mxu0 0.0
    %1024 = vmatpush1.msra.mxu0 %v991
    %1025 = vmatprep.subr.mxu0 0.0
    %1026 = vmatpush1.msra.mxu0 %v990
    %1027 = vmatprep.subr.mxu0 0.0
    %1028 = vmatpush1.msra.mxu0 %v989
    %1029 = vmatprep.subr.mxu0 0.0
    %1030 = vmatpush1.msra.mxu0 %v988
    %1031 = vmatprep.subr.mxu0 0.0
    %1032 = vmatpush1.msra.mxu0 %v987
    %1033 = vmatprep.subr.mxu0 0.0
    %1034 = vmatpush1.msra.mxu0 %v986
    %1035 = vmatprep.subr.mxu0 0.0
    %1036 = vmatpush1.msra.mxu0 %v985
    %1037 = vmatprep.subr.mxu0 0.0
    %1038 = vmatpush1.msra.mxu0 %v984
    %1039 = vmatprep.subr.mxu0 0.0
    %1040 = vmatpush2.msra.mxu0 0.0
    %1041 = vmatprep.subr.mxu0 0.0
    %1042 = vmatpush2.msra.mxu0 0.0
    %1043 = vmatprep.subr.mxu0 0.0
    %1044 = vmatpush2.msra.mxu0 0.0
    %1045 = vmatprep.subr.mxu0 0.0
    %1046 = vmatpush2.msra.mxu0 0.0
    %1047 = vmatprep.subr.mxu0 0.0
    %1048 = vmatpush2.msra.mxu0 0.0
    %1049 = vmatprep.subr.mxu0 0.0
    %1050 = vmatpush2.msra.mxu0 0.0
    %1051 = vmatprep.subr.mxu0 0.0
    %1052 = vmatpush2.msra.mxu0 0.0
    %1053 = vmatprep.subr.mxu0 0.0
    %1054 = vmatpush2.msra.mxu0 0.0
    %1055 = vmatprep.subr.mxu0 0.0
    %1056 = vmatpush2.msra.mxu0 0.0
    %1057 = vmatprep.subr.mxu0 0.0
    %1058 = vmatpush2.msra.mxu0 0.0
    %1059 = vmatprep.subr.mxu0 0.0
    %1060 = vmatpush2.msra.mxu0 0.0
    %1061 = vmatprep.subr.mxu0 0.0
    %1062 = vmatpush2.msra.mxu0 0.0
    %1063 = vmatprep.subr.mxu0 0.0
    %1064 = vmatpush2.msra.mxu0 0.0
    %1065 = vmatprep.subr.mxu0 0.0
    %1066 = vmatpush2.msra.mxu0 0.0
    %1067 = vmatprep.subr.mxu0 0.0
    %1068 = vmatpush2.msra.mxu0 0.0
    %1069 = vmatprep.subr.mxu0 0.0
    %1070 = vmatpush2.msra.mxu0 0.0
    %1071 = vmatprep.mubr.f32.mxu0 0.0
    %1072 = vmatmul.mubr.f32.gmra.mxu0 %v983
    %v1073 = vpop.f32.mrf.mxu0
    %v1074 = vadd.f32 %v1005, %v1073
    %v1075 = vpop.f32.mrf.mxu0
    %1076 = vdwg.mxu0
    %v1077 = vld [vmem:[%s41] sm:$0x1]
    %v1078 = vld [vmem:[%s43] sm:$0x1]
    %vm1079 = vcmask 517120
    %v1080 = vsel %vm1079, %v1074, 0.0
    %v1081 = vrot.slane %v1080, 4
    %v1082 = vadd.f32 %v1080, %v1081
    %v1083 = vrot.slane %v1082, 2
    %v1084 = vadd.f32 %v1082, %v1083
    %v1085 = vrot.slane %v1084, 1
    %v1086 = vadd.f32 %v1084, %v1085
    %v1087 = vmul.f32 %v1086, 0.5
    %v1088 = vmul.f32 %v1074, %v1074
    %v1089 = vsel %vm1079, %v1088, 0.0
    %v1090 = vrot.slane %v1089, 4
    %v1091 = vadd.f32 %v1089, %v1090
    %v1092 = vrot.slane %v1091, 2
    %v1093 = vadd.f32 %v1091, %v1092
    %v1094 = vrot.slane %v1093, 1
    %v1095 = vadd.f32 %v1093, %v1094
    %v1096 = vmul.f32 %v1095, 0.5
    %v1097 = vmul.f32 %v1087, %v1087
    %v1098 = vsub.f32 %v1096, %v1097
    %v1099 = vsub.f32 %v1074, %v1087
    %v1100 = vadd.f32 %v1098, 1e-05
    %v1101 = vrsqrt.pop %v1100
    %v1102 = vmul.f32 %v1099, %v1101
    %v1104 = vlaneseq
    %v1105 = vshrl.u32 %v1104, 7
    %v1106 = vsub.s32 0, %v1105
    %v1107 = vrot.slane %v1077, %v1106
    %v1109 = vmul.f32 %v1102, %v1107
    %v1111 = vlaneseq
    %v1112 = vshrl.u32 %v1111, 7
    %v1113 = vsub.s32 0, %v1112
    %v1114 = vrot.slane %v1078, %v1113
    %v1116 = vadd.f32 %v1109, %v1114
    %v1117 = vmax.f32 %v1116, 0.0
    %v1118 = vld [vmem:[%s45] sm:$0xff]
    %v1119 = vld [vmem:[%s45 + $0x8] sm:$0xff]
    %v1120 = vld [vmem:[%s45 + $0x10] sm:$0xff]
    %v1121 = vld [vmem:[%s45 + $0x18] sm:$0xff]
    %v1122 = vld [vmem:[%s45 + $0x20] sm:$0xff]
    %v1123 = vld [vmem:[%s45 + $0x28] sm:$0xff]
    %v1124 = vld [vmem:[%s45 + $0x30] sm:$0xff]
    %v1125 = vld [vmem:[%s45 + $0x38] sm:$0xff]
    %v1126 = vld [vmem:[%s47] sm:$0x1]
    %v1128 = vlaneseq
    %v1129 = vshrl.u32 %v1128, 7
    %v1130 = vsub.s32 0, %v1129
    %v1131 = vrot.slane %v1126, %v1130
    %vm1133 = vcmask 523264
    %v1135 = vsel %vm1133, %v1117, 0
    %1137 = vmatprep.subr.mxu0 0.0
    %1138 = vmatpush1.msra.mxu0 0.0
    %1139 = vmatprep.subr.mxu0 0.0
    %1140 = vmatpush1.msra.mxu0 0.0
    %1141 = vmatprep.subr.mxu0 0.0
    %1142 = vmatpush1.msra.mxu0 0.0
    %1143 = vmatprep.subr.mxu0 0.0
    %1144 = vmatpush1.msra.mxu0 0.0
    %1145 = vmatprep.subr.mxu0 0.0
    %1146 = vmatpush1.msra.mxu0 0.0
    %1147 = vmatprep.subr.mxu0 0.0
    %1148 = vmatpush1.msra.mxu0 0.0
    %1149 = vmatprep.subr.mxu0 0.0
    %1150 = vmatpush1.msra.mxu0 0.0
    %1151 = vmatprep.subr.mxu0 0.0
    %1152 = vmatpush1.msra.mxu0 0.0
    %1153 = vmatprep.subr.mxu0 0.0
    %1154 = vmatpush1.msra.mxu0 %v1125
    %1155 = vmatprep.subr.mxu0 0.0
    %1156 = vmatpush1.msra.mxu0 %v1124
    %1157 = vmatprep.subr.mxu0 0.0
    %1158 = vmatpush1.msra.mxu0 %v1123
    %1159 = vmatprep.subr.mxu0 0.0
    %1160 = vmatpush1.msra.mxu0 %v1122
    %1161 = vmatprep.subr.mxu0 0.0
    %1162 = vmatpush1.msra.mxu0 %v1121
    %1163 = vmatprep.subr.mxu0 0.0
    %1164 = vmatpush1.msra.mxu0 %v1120
    %1165 = vmatprep.subr.mxu0 0.0
    %1166 = vmatpush1.msra.mxu0 %v1119
    %1167 = vmatprep.subr.mxu0 0.0
    %1168 = vmatpush1.msra.mxu0 %v1118
    %1169 = vmatprep.subr.mxu0 0.0
    %1170 = vmatpush2.msra.mxu0 0.0
    %1171 = vmatprep.subr.mxu0 0.0
    %1172 = vmatpush2.msra.mxu0 0.0
    %1173 = vmatprep.subr.mxu0 0.0
    %1174 = vmatpush2.msra.mxu0 0.0
    %1175 = vmatprep.subr.mxu0 0.0
    %1176 = vmatpush2.msra.mxu0 0.0
    %1177 = vmatprep.subr.mxu0 0.0
    %1178 = vmatpush2.msra.mxu0 0.0
    %1179 = vmatprep.subr.mxu0 0.0
    %1180 = vmatpush2.msra.mxu0 0.0
    %1181 = vmatprep.subr.mxu0 0.0
    %1182 = vmatpush2.msra.mxu0 0.0
    %1183 = vmatprep.subr.mxu0 0.0
    %1184 = vmatpush2.msra.mxu0 0.0
    %1185 = vmatprep.subr.mxu0 0.0
    %1186 = vmatpush2.msra.mxu0 0.0
    %1187 = vmatprep.subr.mxu0 0.0
    %1188 = vmatpush2.msra.mxu0 0.0
    %1189 = vmatprep.subr.mxu0 0.0
    %1190 = vmatpush2.msra.mxu0 0.0
    %1191 = vmatprep.subr.mxu0 0.0
    %1192 = vmatpush2.msra.mxu0 0.0
    %1193 = vmatprep.subr.mxu0 0.0
    %1194 = vmatpush2.msra.mxu0 0.0
    %1195 = vmatprep.subr.mxu0 0.0
    %1196 = vmatpush2.msra.mxu0 0.0
    %1197 = vmatprep.subr.mxu0 0.0
    %1198 = vmatpush2.msra.mxu0 0.0
    %1199 = vmatprep.subr.mxu0 0.0
    %1200 = vmatpush2.msra.mxu0 0.0
    %1201 = vmatprep.mubr.f32.mxu0 0.0
    %1202 = vmatmul.mubr.f32.gmra.mxu0 %v1135
    %v1203 = vpop.f32.mrf.mxu0
    %v1204 = vadd.f32 %v1131, %v1203
    %v1205 = vpop.f32.mrf.mxu0
    %1206 = vdwg.mxu0
    %v1207 = vld [vmem:[%s3] sm:$0x1]
    %v1209 = vlaneseq
    %v1210 = vshrl.u32 %v1209, 7
    %v1211 = vsub.s32 0, %v1210
    %v1212 = vrot.slane %v1207, %v1211
    %v1214 = vadd.f32 %v1204, %v1212
    %v1217 = vunpack.c.l.s4 1966171168
    %v1218 = vunpack.c.0.s8 %v1217
    %v1219 = vlaneseq
    %v1220 = vshrl.u32 %v1219, 7
    %v1221 = vsub.s32 %v1218, %v1220
    %v1222 = vrot.slane %v1214, %v1221
    %v1223 = vcombine.high %v1222, %v1222
    %v1225 = vunpack.c.l.s4 1966171168
    %v1226 = vunpack.c.0.s8 %v1225
    %v1227 = vlaneseq
    %v1228 = vshrl.u32 %v1227, 7
    %v1229 = vsub.s32 %v1226, %v1228
    %v1230 = vrot.slane %v1222, %v1229
    %v1232 = vunpack.c.l.s4 1966171168
    %v1233 = vunpack.c.0.s8 %v1232
    %v1234 = vlaneseq
    %v1235 = vshrl.u32 %v1234, 7
    %v1236 = vsub.s32 %v1233, %v1235
    %v1237 = vrot.slane %v1223, %v1236
    %v1240 = vlaneseq
    %v1241 = vshrl.u32 %v1240, 7
    %v1242 = vsub.s32 0, %v1241
    %v1243 = vrot.slane %v1230, %v1242
    %v1244 = vlaneseq
    %v1245 = vshrl.u32 %v1244, 7
    %v1246 = vsub.s32 0, %v1245
    %v1247 = vrot.slane %v1237, %v1246
    %1248 = vrot.lane.b32.xlu0 %v1243, 125
    %v1249 = vpop.permute.xlu0 %1248
    %1250 = vrot.lane.b32.xlu0 %v1247, 125
    %v1251 = vpop.permute.xlu0 %1250
    %1254 = vrot.lane.b32.xlu0 %v1243, 122
    %v1255 = vpop.permute.xlu0 %1254
    %1256 = vrot.lane.b32.xlu0 %v1247, 122
    %v1257 = vpop.permute.xlu0 %1256
    %vm1260 = vcmask 1040384
    %v1261 = vsel %vm1260, %v1230, %v1249
    %v1262 = vsel %vm1260, %v1237, %v1251
    %v1263 = vsel %vm945, %v1261, %v1255
    %v1264 = vsel %vm945, %v1262, %v1257
    %vm1265 = vcmask 18432
    %1266 = vst.msk [vmem:[%s95] sm:$0x7] %vm1265, %v1263
    %1267 = vst.msk [vmem:[%s95 + $0x4] sm:$0x7] %vm1265, %v1264
    %v1269 = vsel %vm219, %v1263, 0
    %1271 = vmatprep.subr.mxu0 0.0
    %1272 = vmatpush1.msra.mxu0 0.0
    %1273 = vmatprep.subr.mxu0 0.0
    %1274 = vmatpush1.msra.mxu0 0.0
    %1275 = vmatprep.subr.mxu0 0.0
    %1276 = vmatpush1.msra.mxu0 0.0
    %1277 = vmatprep.subr.mxu0 0.0
    %1278 = vmatpush1.msra.mxu0 0.0
    %1279 = vmatprep.subr.mxu0 0.0
    %1280 = vmatpush1.msra.mxu0 0.0
    %1281 = vmatprep.subr.mxu0 0.0
    %1282 = vmatpush1.msra.mxu0 0.0
    %1283 = vmatprep.subr.mxu0 0.0
    %1284 = vmatpush1.msra.mxu0 0.0
    %1285 = vmatprep.subr.mxu0 0.0
    %1286 = vmatpush1.msra.mxu0 0.0
    %1287 = vmatprep.subr.mxu0 0.0
    %1288 = vmatpush1.msra.mxu0 0.0
    %1289 = vmatprep.subr.mxu0 0.0
    %1290 = vmatpush1.msra.mxu0 0.0
    %1291 = vmatprep.subr.mxu0 0.0
    %1292 = vmatpush1.msra.mxu0 0.0
    %1293 = vmatprep.subr.mxu0 0.0
    %1294 = vmatpush1.msra.mxu0 0.0
    %1295 = vmatprep.subr.mxu0 0.0
    %1296 = vmatpush1.msra.mxu0 0.0
    %1297 = vmatprep.subr.mxu0 0.0
    %1298 = vmatpush1.msra.mxu0 0.0
    %1299 = vmatprep.subr.mxu0 0.0
    %1300 = vmatpush1.msra.mxu0 0.0
    %1301 = vmatprep.subr.mxu0 0.0
    %1302 = vmatpush1.msra.mxu0 %v1269
    %1303 = vmatprep.subr.mxu0 0.0
    %1304 = vmatpush2.msra.mxu0 0.0
    %1305 = vmatprep.subr.mxu0 0.0
    %1306 = vmatpush2.msra.mxu0 0.0
    %1307 = vmatprep.subr.mxu0 0.0
    %1308 = vmatpush2.msra.mxu0 0.0
    %1309 = vmatprep.subr.mxu0 0.0
    %1310 = vmatpush2.msra.mxu0 0.0
    %1311 = vmatprep.subr.mxu0 0.0
    %1312 = vmatpush2.msra.mxu0 0.0
    %1313 = vmatprep.subr.mxu0 0.0
    %1314 = vmatpush2.msra.mxu0 0.0
    %1315 = vmatprep.subr.mxu0 0.0
    %1316 = vmatpush2.msra.mxu0 0.0
    %1317 = vmatprep.subr.mxu0 0.0
    %1318 = vmatpush2.msra.mxu0 0.0
    %1319 = vmatprep.subr.mxu0 0.0
    %1320 = vmatpush2.msra.mxu0 0.0
    %1321 = vmatprep.subr.mxu0 0.0
    %1322 = vmatpush2.msra.mxu0 0.0
    %1323 = vmatprep.subr.mxu0 0.0
    %1324 = vmatpush2.msra.mxu0 0.0
    %1325 = vmatprep.subr.mxu0 0.0
    %1326 = vmatpush2.msra.mxu0 0.0
    %1327 = vmatprep.subr.mxu0 0.0
    %1328 = vmatpush2.msra.mxu0 0.0
    %1329 = vmatprep.subr.mxu0 0.0
    %1330 = vmatpush2.msra.mxu0 0.0
    %1331 = vmatprep.subr.mxu0 0.0
    %1332 = vmatpush2.msra.mxu0 0.0
    %1333 = vmatprep.subr.mxu0 0.0
    %1334 = vmatpush2.msra.mxu0 0.0
    %1335 = vmatprep.mubr.f32.mxu0 0.0
    %1336 = vmatmul.mubr.f32.gmra.mxu0 %v208
    %v1337 = vpop.f32.mrf.mxu0
    %v1338 = vadd.f32 0.0, %v1337
    %v1339 = vpop.f32.mrf.mxu0
    %1340 = vmatprep.mubr.f32.mxu0 0.0
    %1341 = vmatmul.mubr.f32.gmra.mxu0 %v211
    %v1342 = vpop.f32.mrf.mxu0
    %v1343 = vadd.f32 0.0, %v1342
    %v1344 = vpop.f32.mrf.mxu0
    %1345 = vdwg.mxu0
    %v1347 = vsel %vm219, %v1264, 0
    %1349 = vmatprep.subr.mxu0 0.0
    %1350 = vmatpush1.msra.mxu0 0.0
    %1351 = vmatprep.subr.mxu0 0.0
    %1352 = vmatpush1.msra.mxu0 0.0
    %1353 = vmatprep.subr.mxu0 0.0
    %1354 = vmatpush1.msra.mxu0 0.0
    %1355 = vmatprep.subr.mxu0 0.0
    %1356 = vmatpush1.msra.mxu0 0.0
    %1357 = vmatprep.subr.mxu0 0.0
    %1358 = vmatpush1.msra.mxu0 0.0
    %1359 = vmatprep.subr.mxu0 0.0
    %1360 = vmatpush1.msra.mxu0 0.0
    %1361 = vmatprep.subr.mxu0 0.0
    %1362 = vmatpush1.msra.mxu0 0.0
    %1363 = vmatprep.subr.mxu0 0.0
    %1364 = vmatpush1.msra.mxu0 0.0
    %1365 = vmatprep.subr.mxu0 0.0
    %1366 = vmatpush1.msra.mxu0 0.0
    %1367 = vmatprep.subr.mxu0 0.0
    %1368 = vmatpush1.msra.mxu0 0.0
    %1369 = vmatprep.subr.mxu0 0.0
    %1370 = vmatpush1.msra.mxu0 0.0
    %1371 = vmatprep.subr.mxu0 0.0
    %1372 = vmatpush1.msra.mxu0 0.0
    %1373 = vmatprep.subr.mxu0 0.0
    %1374 = vmatpush1.msra.mxu0 0.0
    %1375 = vmatprep.subr.mxu0 0.0
    %1376 = vmatpush1.msra.mxu0 0.0
    %1377 = vmatprep.subr.mxu0 0.0
    %1378 = vmatpush1.msra.mxu0 0.0
    %1379 = vmatprep.subr.mxu0 0.0
    %1380 = vmatpush1.msra.mxu0 %v1347
    %1381 = vmatprep.subr.mxu0 0.0
    %1382 = vmatpush2.msra.mxu0 0.0
    %1383 = vmatprep.subr.mxu0 0.0
    %1384 = vmatpush2.msra.mxu0 0.0
    %1385 = vmatprep.subr.mxu0 0.0
    %1386 = vmatpush2.msra.mxu0 0.0
    %1387 = vmatprep.subr.mxu0 0.0
    %1388 = vmatpush2.msra.mxu0 0.0
    %1389 = vmatprep.subr.mxu0 0.0
    %1390 = vmatpush2.msra.mxu0 0.0
    %1391 = vmatprep.subr.mxu0 0.0
    %1392 = vmatpush2.msra.mxu0 0.0
    %1393 = vmatprep.subr.mxu0 0.0
    %1394 = vmatpush2.msra.mxu0 0.0
    %1395 = vmatprep.subr.mxu0 0.0
    %1396 = vmatpush2.msra.mxu0 0.0
    %1397 = vmatprep.subr.mxu0 0.0
    %1398 = vmatpush2.msra.mxu0 0.0
    %1399 = vmatprep.subr.mxu0 0.0
    %1400 = vmatpush2.msra.mxu0 0.0
    %1401 = vmatprep.subr.mxu0 0.0
    %1402 = vmatpush2.msra.mxu0 0.0
    %1403 = vmatprep.subr.mxu0 0.0
    %1404 = vmatpush2.msra.mxu0 0.0
    %1405 = vmatprep.subr.mxu0 0.0
    %1406 = vmatpush2.msra.mxu0 0.0
    %1407 = vmatprep.subr.mxu0 0.0
    %1408 = vmatpush2.msra.mxu0 0.0
    %1409 = vmatprep.subr.mxu0 0.0
    %1410 = vmatpush2.msra.mxu0 0.0
    %1411 = vmatprep.subr.mxu0 0.0
    %1412 = vmatpush2.msra.mxu0 0.0
    %1413 = vmatprep.mubr.f32.mxu0 0.0
    %1414 = vmatmul.mubr.f32.gmra.mxu0 %v214
    %v1415 = vpop.f32.mrf.mxu0
    %v1416 = vadd.f32 0.0, %v1415
    %v1417 = vpop.f32.mrf.mxu0
    %1418 = vmatprep.mubr.f32.mxu0 0.0
    %1419 = vmatmul.mubr.f32.gmra.mxu0 %v217
    %v1420 = vpop.f32.mrf.mxu0
    %v1421 = vadd.f32 0.0, %v1420
    %v1422 = vpop.f32.mrf.mxu0
    %1423 = vdwg.mxu0
    %v1424 = vld [vmem:[%s49] sm:$0x7]
    %v1425 = vld [vmem:[%s51] sm:$0x1]
    %v1427 = vlaneseq
    %v1428 = vshrl.u32 %v1427, 7
    %v1429 = vsub.s32 0, %v1428
    %v1430 = vrot.slane %v1425, %v1429
    %v1433 = vsel %vm206, %v1338, 0
    %v1436 = vsel %vm206, %v1343, 0
    %v1439 = vsel %vm206, %v1416, 0
    %v1442 = vsel %vm206, %v1421, 0
    %v1445 = vsel %vm219, %v1424, 0
    %1447 = vmatprep.subr.mxu0 0.0
    %1448 = vmatpush1.msra.mxu0 0.0
    %1449 = vmatprep.subr.mxu0 0.0
    %1450 = vmatpush1.msra.mxu0 0.0
    %1451 = vmatprep.subr.mxu0 0.0
    %1452 = vmatpush1.msra.mxu0 0.0
    %1453 = vmatprep.subr.mxu0 0.0
    %1454 = vmatpush1.msra.mxu0 0.0
    %1455 = vmatprep.subr.mxu0 0.0
    %1456 = vmatpush1.msra.mxu0 0.0
    %1457 = vmatprep.subr.mxu0 0.0
    %1458 = vmatpush1.msra.mxu0 0.0
    %1459 = vmatprep.subr.mxu0 0.0
    %1460 = vmatpush1.msra.mxu0 0.0
    %1461 = vmatprep.subr.mxu0 0.0
    %1462 = vmatpush1.msra.mxu0 0.0
    %1463 = vmatprep.subr.mxu0 0.0
    %1464 = vmatpush1.msra.mxu0 0.0
    %1465 = vmatprep.subr.mxu0 0.0
    %1466 = vmatpush1.msra.mxu0 0.0
    %1467 = vmatprep.subr.mxu0 0.0
    %1468 = vmatpush1.msra.mxu0 0.0
    %1469 = vmatprep.subr.mxu0 0.0
    %1470 = vmatpush1.msra.mxu0 0.0
    %1471 = vmatprep.subr.mxu0 0.0
    %1472 = vmatpush1.msra.mxu0 0.0
    %1473 = vmatprep.subr.mxu0 0.0
    %1474 = vmatpush1.msra.mxu0 0.0
    %1475 = vmatprep.subr.mxu0 0.0
    %1476 = vmatpush1.msra.mxu0 0.0
    %1477 = vmatprep.subr.mxu0 0.0
    %1478 = vmatpush1.msra.mxu0 %v1445
    %1479 = vmatprep.subr.mxu0 0.0
    %1480 = vmatpush2.msra.mxu0 0.0
    %1481 = vmatprep.subr.mxu0 0.0
    %1482 = vmatpush2.msra.mxu0 0.0
    %1483 = vmatprep.subr.mxu0 0.0
    %1484 = vmatpush2.msra.mxu0 0.0
    %1485 = vmatprep.subr.mxu0 0.0
    %1486 = vmatpush2.msra.mxu0 0.0
    %1487 = vmatprep.subr.mxu0 0.0
    %1488 = vmatpush2.msra.mxu0 0.0
    %1489 = vmatprep.subr.mxu0 0.0
    %1490 = vmatpush2.msra.mxu0 0.0
    %1491 = vmatprep.subr.mxu0 0.0
    %1492 = vmatpush2.msra.mxu0 0.0
    %1493 = vmatprep.subr.mxu0 0.0
    %1494 = vmatpush2.msra.mxu0 0.0
    %1495 = vmatprep.subr.mxu0 0.0
    %1496 = vmatpush2.msra.mxu0 0.0
    %1497 = vmatprep.subr.mxu0 0.0
    %1498 = vmatpush2.msra.mxu0 0.0
    %1499 = vmatprep.subr.mxu0 0.0
    %1500 = vmatpush2.msra.mxu0 0.0
    %1501 = vmatprep.subr.mxu0 0.0
    %1502 = vmatpush2.msra.mxu0 0.0
    %1503 = vmatprep.subr.mxu0 0.0
    %1504 = vmatpush2.msra.mxu0 0.0
    %1505 = vmatprep.subr.mxu0 0.0
    %1506 = vmatpush2.msra.mxu0 0.0
    %1507 = vmatprep.subr.mxu0 0.0
    %1508 = vmatpush2.msra.mxu0 0.0
    %1509 = vmatprep.subr.mxu0 0.0
    %1510 = vmatpush2.msra.mxu0 0.0
    %1511 = vmatprep.mubr.f32.mxu0 0.0
    %1512 = vmatmul.mubr.f32.gmra.mxu0 %v1433
    %v1513 = vpop.f32.mrf.mxu0
    %v1514 = vadd.f32 %v1430, %v1513
    %v1515 = vpop.f32.mrf.mxu0
    %1516 = vmatprep.mubr.f32.mxu0 0.0
    %1517 = vmatmul.mubr.f32.gmra.mxu0 %v1436
    %v1518 = vpop.f32.mrf.mxu0
    %v1519 = vadd.f32 %v1430, %v1518
    %v1520 = vpop.f32.mrf.mxu0
    %1521 = vmatprep.mubr.f32.mxu0 0.0
    %1522 = vmatmul.mubr.f32.gmra.mxu0 %v1439
    %v1523 = vpop.f32.mrf.mxu0
    %v1524 = vadd.f32 %v1430, %v1523
    %v1525 = vpop.f32.mrf.mxu0
    %1526 = vmatprep.mubr.f32.mxu0 0.0
    %1527 = vmatmul.mubr.f32.gmra.mxu0 %v1442
    %v1528 = vpop.f32.mrf.mxu0
    %v1529 = vadd.f32 %v1430, %v1528
    %v1530 = vpop.f32.mrf.mxu0
    %1531 = vdwg.mxu0
    %v1532 = vld [vmem:[%s53] sm:$0x1]
    %v1533 = vld [vmem:[%s55] sm:$0x1]
    %v1534 = vsel %vm310, %v1514, 0.0
    %v1535 = vsel %vm310, %v1519, 0.0
    %v1536 = vadd.f32 %v1534, %v1535
    %v1537 = vsel %vm310, %v1524, 0.0
    %v1538 = vadd.f32 %v1536, %v1537
    %v1539 = vsel %vm310, %v1529, 0.0
    %v1540 = vadd.f32 %v1538, %v1539
    %v1541 = vrot.slane %v1540, 4
    %v1542 = vadd.f32 %v1540, %v1541
    %v1543 = vrot.slane %v1542, 2
    %v1544 = vadd.f32 %v1542, %v1543
    %v1545 = vrot.slane %v1544, 1
    %v1546 = vadd.f32 %v1544, %v1545
    %v1547 = vmul.f32 %v1546, 0.03125
    %v1548 = vmul.f32 %v1514, %v1514
    %v1549 = vmul.f32 %v1519, %v1519
    %v1550 = vmul.f32 %v1524, %v1524
    %v1551 = vmul.f32 %v1529, %v1529
    %v1552 = vsel %vm310, %v1548, 0.0
    %v1553 = vsel %vm310, %v1549, 0.0
    %v1554 = vadd.f32 %v1552, %v1553
    %v1555 = vsel %vm310, %v1550, 0.0
    %v1556 = vadd.f32 %v1554, %v1555
    %v1557 = vsel %vm310, %v1551, 0.0
    %v1558 = vadd.f32 %v1556, %v1557
    %v1559 = vrot.slane %v1558, 4
    %v1560 = vadd.f32 %v1558, %v1559
    %v1561 = vrot.slane %v1560, 2
    %v1562 = vadd.f32 %v1560, %v1561
    %v1563 = vrot.slane %v1562, 1
    %v1564 = vadd.f32 %v1562, %v1563
    %v1565 = vmul.f32 %v1564, 0.03125
    %v1566 = vmul.f32 %v1547, %v1547
    %v1567 = vsub.f32 %v1565, %v1566
    %v1568 = vsub.f32 %v1514, %v1547
    %v1569 = vsub.f32 %v1519, %v1547
    %v1570 = vsub.f32 %v1524, %v1547
    %v1571 = vsub.f32 %v1529, %v1547
    %v1572 = vadd.f32 %v1567, 1e-05
    %v1573 = vrsqrt.pop %v1572
    %v1574 = vmul.f32 %v1568, %v1573
    %v1575 = vmul.f32 %v1569, %v1573
    %v1576 = vmul.f32 %v1570, %v1573
    %v1577 = vmul.f32 %v1571, %v1573
    %v1579 = vlaneseq
    %v1580 = vshrl.u32 %v1579, 7
    %v1581 = vsub.s32 0, %v1580
    %v1582 = vrot.slane %v1532, %v1581
    %v1584 = vmul.f32 %v1574, %v1582
    %v1585 = vmul.f32 %v1575, %v1582
    %v1586 = vmul.f32 %v1576, %v1582
    %v1587 = vmul.f32 %v1577, %v1582
    %v1589 = vlaneseq
    %v1590 = vshrl.u32 %v1589, 7
    %v1591 = vsub.s32 0, %v1590
    %v1592 = vrot.slane %v1533, %v1591
    %v1594 = vadd.f32 %v1584, %v1592
    %v1595 = vadd.f32 %v1585, %v1592
    %v1596 = vadd.f32 %v1586, %v1592
    %v1597 = vadd.f32 %v1587, %v1592
    %v1598 = vmax.f32 %v1594, 0.0
    %v1599 = vmax.f32 %v1595, 0.0
    %v1600 = vmax.f32 %v1596, 0.0
    %v1601 = vmax.f32 %v1597, 0.0
    %v1602 = vld [vmem:[%s57] sm:$0xff]
    %v1603 = vld [vmem:[%s57 + $0x8] sm:$0xff]
    %v1604 = vld [vmem:[%s59] sm:$0x1]
    %v1606 = vlaneseq
    %v1607 = vshrl.u32 %v1606, 7
    %v1608 = vsub.s32 0, %v1607
    %v1609 = vrot.slane %v1604, %v1608
    %v1612 = vsel %vm310, %v1598, 0
    %v1615 = vsel %vm310, %v1599, 0
    %v1618 = vsel %vm310, %v1600, 0
    %v1621 = vsel %vm310, %v1601, 0
    %1623 = vmatprep.subr.mxu0 0.0
    %1624 = vmatpush1.msra.mxu0 0.0
    %1625 = vmatprep.subr.mxu0 0.0
    %1626 = vmatpush1.msra.mxu0 0.0
    %1627 = vmatprep.subr.mxu0 0.0
    %1628 = vmatpush1.msra.mxu0 0.0
    %1629 = vmatprep.subr.mxu0 0.0
    %1630 = vmatpush1.msra.mxu0 0.0
    %1631 = vmatprep.subr.mxu0 0.0
    %1632 = vmatpush1.msra.mxu0 0.0
    %1633 = vmatprep.subr.mxu0 0.0
    %1634 = vmatpush1.msra.mxu0 0.0
    %1635 = vmatprep.subr.mxu0 0.0
    %1636 = vmatpush1.msra.mxu0 0.0
    %1637 = vmatprep.subr.mxu0 0.0
    %1638 = vmatpush1.msra.mxu0 0.0
    %1639 = vmatprep.subr.mxu0 0.0
    %1640 = vmatpush1.msra.mxu0 0.0
    %1641 = vmatprep.subr.mxu0 0.0
    %1642 = vmatpush1.msra.mxu0 0.0
    %1643 = vmatprep.subr.mxu0 0.0
    %1644 = vmatpush1.msra.mxu0 0.0
    %1645 = vmatprep.subr.mxu0 0.0
    %1646 = vmatpush1.msra.mxu0 0.0
    %1647 = vmatprep.subr.mxu0 0.0
    %1648 = vmatpush1.msra.mxu0 0.0
    %1649 = vmatprep.subr.mxu0 0.0
    %1650 = vmatpush1.msra.mxu0 0.0
    %1651 = vmatprep.subr.mxu0 0.0
    %1652 = vmatpush1.msra.mxu0 %v1603
    %1653 = vmatprep.subr.mxu0 0.0
    %1654 = vmatpush1.msra.mxu0 %v1602
    %1655 = vmatprep.subr.mxu0 0.0
    %1656 = vmatpush2.msra.mxu0 0.0
    %1657 = vmatprep.subr.mxu0 0.0
    %1658 = vmatpush2.msra.mxu0 0.0
    %1659 = vmatprep.subr.mxu0 0.0
    %1660 = vmatpush2.msra.mxu0 0.0
    %1661 = vmatprep.subr.mxu0 0.0
    %1662 = vmatpush2.msra.mxu0 0.0
    %1663 = vmatprep.subr.mxu0 0.0
    %1664 = vmatpush2.msra.mxu0 0.0
    %1665 = vmatprep.subr.mxu0 0.0
    %1666 = vmatpush2.msra.mxu0 0.0
    %1667 = vmatprep.subr.mxu0 0.0
    %1668 = vmatpush2.msra.mxu0 0.0
    %1669 = vmatprep.subr.mxu0 0.0
    %1670 = vmatpush2.msra.mxu0 0.0
    %1671 = vmatprep.subr.mxu0 0.0
    %1672 = vmatpush2.msra.mxu0 0.0
    %1673 = vmatprep.subr.mxu0 0.0
    %1674 = vmatpush2.msra.mxu0 0.0
    %1675 = vmatprep.subr.mxu0 0.0
    %1676 = vmatpush2.msra.mxu0 0.0
    %1677 = vmatprep.subr.mxu0 0.0
    %1678 = vmatpush2.msra.mxu0 0.0
    %1679 = vmatprep.subr.mxu0 0.0
    %1680 = vmatpush2.msra.mxu0 0.0
    %1681 = vmatprep.subr.mxu0 0.0
    %1682 = vmatpush2.msra.mxu0 0.0
    %1683 = vmatprep.subr.mxu0 0.0
    %1684 = vmatpush2.msra.mxu0 0.0
    %1685 = vmatprep.subr.mxu0 0.0
    %1686 = vmatpush2.msra.mxu0 0.0
    %1687 = vmatprep.mubr.f32.mxu0 0.0
    %1688 = vmatmul.mubr.f32.gmra.mxu0 %v1612
    %v1689 = vpop.f32.mrf.mxu0
    %v1690 = vadd.f32 %v1609, %v1689
    %v1691 = vpop.f32.mrf.mxu0
    %1692 = vmatprep.mubr.f32.mxu0 0.0
    %1693 = vmatmul.mubr.f32.gmra.mxu0 %v1615
    %v1694 = vpop.f32.mrf.mxu0
    %v1695 = vadd.f32 %v1609, %v1694
    %v1696 = vpop.f32.mrf.mxu0
    %1697 = vmatprep.mubr.f32.mxu0 0.0
    %1698 = vmatmul.mubr.f32.gmra.mxu0 %v1618
    %v1699 = vpop.f32.mrf.mxu0
    %v1700 = vadd.f32 %v1609, %v1699
    %v1701 = vpop.f32.mrf.mxu0
    %1702 = vmatprep.mubr.f32.mxu0 0.0
    %1703 = vmatmul.mubr.f32.gmra.mxu0 %v1621
    %v1704 = vpop.f32.mrf.mxu0
    %v1705 = vadd.f32 %v1609, %v1704
    %v1706 = vpop.f32.mrf.mxu0
    %1707 = vdwg.mxu0
    %v1708 = vld [vmem:[%s61] sm:$0x1]
    %v1709 = vld [vmem:[%s63] sm:$0x1]
    %v1710 = vsel %vm487, %v1690, 0.0
    %v1711 = vsel %vm487, %v1695, 0.0
    %v1712 = vadd.f32 %v1710, %v1711
    %v1713 = vsel %vm487, %v1700, 0.0
    %v1714 = vadd.f32 %v1712, %v1713
    %v1715 = vsel %vm487, %v1705, 0.0
    %v1716 = vadd.f32 %v1714, %v1715
    %v1717 = vrot.slane %v1716, 4
    %v1718 = vadd.f32 %v1716, %v1717
    %v1719 = vrot.slane %v1718, 2
    %v1720 = vadd.f32 %v1718, %v1719
    %v1721 = vrot.slane %v1720, 1
    %v1722 = vadd.f32 %v1720, %v1721
    %v1723 = vmul.f32 %v1722, 0.03125
    %v1724 = vmul.f32 %v1690, %v1690
    %v1725 = vmul.f32 %v1695, %v1695
    %v1726 = vmul.f32 %v1700, %v1700
    %v1727 = vmul.f32 %v1705, %v1705
    %v1728 = vsel %vm487, %v1724, 0.0
    %v1729 = vsel %vm487, %v1725, 0.0
    %v1730 = vadd.f32 %v1728, %v1729
    %v1731 = vsel %vm487, %v1726, 0.0
    %v1732 = vadd.f32 %v1730, %v1731
    %v1733 = vsel %vm487, %v1727, 0.0
    %v1734 = vadd.f32 %v1732, %v1733
    %v1735 = vrot.slane %v1734, 4
    %v1736 = vadd.f32 %v1734, %v1735
    %v1737 = vrot.slane %v1736, 2
    %v1738 = vadd.f32 %v1736, %v1737
    %v1739 = vrot.slane %v1738, 1
    %v1740 = vadd.f32 %v1738, %v1739
    %v1741 = vmul.f32 %v1740, 0.03125
    %v1742 = vmul.f32 %v1723, %v1723
    %v1743 = vsub.f32 %v1741, %v1742
    %v1744 = vsub.f32 %v1690, %v1723
    %v1745 = vsub.f32 %v1695, %v1723
    %v1746 = vsub.f32 %v1700, %v1723
    %v1747 = vsub.f32 %v1705, %v1723
    %v1748 = vadd.f32 %v1743, 1e-05
    %v1749 = vrsqrt.pop %v1748
    %v1750 = vmul.f32 %v1744, %v1749
    %v1751 = vmul.f32 %v1745, %v1749
    %v1752 = vmul.f32 %v1746, %v1749
    %v1753 = vmul.f32 %v1747, %v1749
    %v1755 = vlaneseq
    %v1756 = vshrl.u32 %v1755, 7
    %v1757 = vsub.s32 0, %v1756
    %v1758 = vrot.slane %v1708, %v1757
    %v1760 = vmul.f32 %v1750, %v1758
    %v1761 = vmul.f32 %v1751, %v1758
    %v1762 = vmul.f32 %v1752, %v1758
    %v1763 = vmul.f32 %v1753, %v1758
    %v1765 = vlaneseq
    %v1766 = vshrl.u32 %v1765, 7
    %v1767 = vsub.s32 0, %v1766
    %v1768 = vrot.slane %v1709, %v1767
    %v1770 = vadd.f32 %v1760, %v1768
    %v1771 = vadd.f32 %v1761, %v1768
    %v1772 = vadd.f32 %v1762, %v1768
    %v1773 = vadd.f32 %v1763, %v1768
    %v1774 = vmax.f32 %v1770, 0.0
    %v1775 = vmax.f32 %v1771, 0.0
    %v1776 = vmax.f32 %v1772, 0.0
    %v1777 = vmax.f32 %v1773, 0.0
    %v1778 = vld [vmem:[%s65] sm:$0xff]
    %v1779 = vld [vmem:[%s65 + $0x8] sm:$0xff]
    %v1780 = vld [vmem:[%s65 + $0x10] sm:$0xff]
    %v1781 = vld [vmem:[%s65 + $0x18] sm:$0xff]
    %v1782 = vld [vmem:[%s65 + $0x20] sm:$0xff]
    %v1783 = vld [vmem:[%s65 + $0x28] sm:$0xff]
    %v1784 = vld [vmem:[%s65 + $0x30] sm:$0xff]
    %v1785 = vld [vmem:[%s65 + $0x38] sm:$0xff]
    %v1786 = vld [vmem:[%s67] sm:$0x3]
    %v1788 = vlaneseq
    %v1789 = vshrl.u32 %v1788, 7
    %v1790 = vsub.s32 0, %v1789
    %v1791 = vrot.slane %v1786, %v1790
    %v1792 = vlaneseq
    %v1793 = vshrl.u32 %v1792, 7
    %v1794 = vsub.s32 1, %v1793
    %v1795 = vrot.slane %v1786, %v1794
    %v1799 = vsel %vm487, %v1774, 0
    %v1802 = vsel %vm487, %v1775, 0
    %v1805 = vsel %vm487, %v1776, 0
    %v1808 = vsel %vm487, %v1777, 0
    %1810 = vmatprep.subr.mxu0 0.0
    %1811 = vmatpush1.msra.mxu0 0.0
    %1812 = vmatprep.subr.mxu0 0.0
    %1813 = vmatpush1.msra.mxu0 0.0
    %1814 = vmatprep.subr.mxu0 0.0
    %1815 = vmatpush1.msra.mxu0 0.0
    %1816 = vmatprep.subr.mxu0 0.0
    %1817 = vmatpush1.msra.mxu0 0.0
    %1818 = vmatprep.subr.mxu0 0.0
    %1819 = vmatpush1.msra.mxu0 0.0
    %1820 = vmatprep.subr.mxu0 0.0
    %1821 = vmatpush1.msra.mxu0 0.0
    %1822 = vmatprep.subr.mxu0 0.0
    %1823 = vmatpush1.msra.mxu0 0.0
    %1824 = vmatprep.subr.mxu0 0.0
    %1825 = vmatpush1.msra.mxu0 0.0
    %1826 = vmatprep.subr.mxu0 0.0
    %1827 = vmatpush1.msra.mxu0 0.0
    %1828 = vmatprep.subr.mxu0 0.0
    %1829 = vmatpush1.msra.mxu0 0.0
    %1830 = vmatprep.subr.mxu0 0.0
    %1831 = vmatpush1.msra.mxu0 0.0
    %1832 = vmatprep.subr.mxu0 0.0
    %1833 = vmatpush1.msra.mxu0 0.0
    %1834 = vmatprep.subr.mxu0 %v1785
    %1835 = vmatpush1.msra.mxu0 %v1784
    %1836 = vmatprep.subr.mxu0 %v1783
    %1837 = vmatpush1.msra.mxu0 %v1782
    %1838 = vmatprep.subr.mxu0 %v1781
    %1839 = vmatpush1.msra.mxu0 %v1780
    %1840 = vmatprep.subr.mxu0 %v1779
    %1841 = vmatpush1.msra.mxu0 %v1778
    %1842 = vmatprep.subr.mxu0 0.0
    %1843 = vmatpush2.msra.mxu0 0.0
    %1844 = vmatprep.subr.mxu0 0.0
    %1845 = vmatpush2.msra.mxu0 0.0
    %1846 = vmatprep.subr.mxu0 0.0
    %1847 = vmatpush2.msra.mxu0 0.0
    %1848 = vmatprep.subr.mxu0 0.0
    %1849 = vmatpush2.msra.mxu0 0.0
    %1850 = vmatprep.subr.mxu0 0.0
    %1851 = vmatpush2.msra.mxu0 0.0
    %1852 = vmatprep.subr.mxu0 0.0
    %1853 = vmatpush2.msra.mxu0 0.0
    %1854 = vmatprep.subr.mxu0 0.0
    %1855 = vmatpush2.msra.mxu0 0.0
    %1856 = vmatprep.subr.mxu0 0.0
    %1857 = vmatpush2.msra.mxu0 0.0
    %1858 = vmatprep.subr.mxu0 0.0
    %1859 = vmatpush2.msra.mxu0 0.0
    %1860 = vmatprep.subr.mxu0 0.0
    %1861 = vmatpush2.msra.mxu0 0.0
    %1862 = vmatprep.subr.mxu0 0.0
    %1863 = vmatpush2.msra.mxu0 0.0
    %1864 = vmatprep.subr.mxu0 0.0
    %1865 = vmatpush2.msra.mxu0 0.0
    %1866 = vmatprep.subr.mxu0 0.0
    %1867 = vmatpush2.msra.mxu0 0.0
    %1868 = vmatprep.subr.mxu0 0.0
    %1869 = vmatpush2.msra.mxu0 0.0
    %1870 = vmatprep.subr.mxu0 0.0
    %1871 = vmatpush2.msra.mxu0 0.0
    %1872 = vmatprep.subr.mxu0 0.0
    %1873 = vmatpush2.msra.mxu0 0.0
    %1874 = vmatprep.mubr.f32.mxu0 0.0
    %1875 = vmatmul.mubr.f32.gmra.mxu0 %v1799
    %v1876 = vpop.f32.mrf.mxu0
    %v1877 = vadd.f32 %v1791, %v1876
    %v1878 = vpop.f32.mrf.mxu0
    %v1879 = vadd.f32 %v1795, %v1878
    %1880 = vmatprep.mubr.f32.mxu0 0.0
    %1881 = vmatmul.mubr.f32.gmra.mxu0 %v1802
    %v1882 = vpop.f32.mrf.mxu0
    %v1883 = vadd.f32 %v1791, %v1882
    %v1884 = vpop.f32.mrf.mxu0
    %v1885 = vadd.f32 %v1795, %v1884
    %1886 = vmatprep.mubr.f32.mxu0 0.0
    %1887 = vmatmul.mubr.f32.gmra.mxu0 %v1805
    %v1888 = vpop.f32.mrf.mxu0
    %v1889 = vadd.f32 %v1791, %v1888
    %v1890 = vpop.f32.mrf.mxu0
    %v1891 = vadd.f32 %v1795, %v1890
    %1892 = vmatprep.mubr.f32.mxu0 0.0
    %1893 = vmatmul.mubr.f32.gmra.mxu0 %v1808
    %v1894 = vpop.f32.mrf.mxu0
    %v1895 = vadd.f32 %v1791, %v1894
    %v1896 = vpop.f32.mrf.mxu0
    %v1897 = vadd.f32 %v1795, %v1896
    %1898 = vdwg.mxu0
    %v1899 = vld [vmem:[%s69] sm:$0x3]
    %v1900 = vld [vmem:[%s71] sm:$0x3]
    %v1901 = vadd.f32 %v1877, %v1883
    %v1902 = vadd.f32 %v1901, %v1889
    %v1903 = vadd.f32 %v1902, %v1895
    %v1904 = vrot.slane %v1903, 4
    %v1905 = vadd.f32 %v1903, %v1904
    %v1906 = vrot.slane %v1905, 2
    %v1907 = vadd.f32 %v1905, %v1906
    %v1908 = vrot.slane %v1907, 1
    %v1909 = vadd.f32 %v1907, %v1908
    %v1910 = vadd.f32 %v1879, %v1885
    %v1911 = vadd.f32 %v1910, %v1891
    %v1912 = vadd.f32 %v1911, %v1897
    %v1913 = vrot.slane %v1912, 4
    %v1914 = vadd.f32 %v1912, %v1913
    %v1915 = vrot.slane %v1914, 2
    %v1916 = vadd.f32 %v1914, %v1915
    %v1917 = vrot.slane %v1916, 1
    %v1918 = vadd.f32 %v1916, %v1917
    %v1919 = vmul.f32 %v1909, 0.03125
    %v1920 = vmul.f32 %v1918, 0.03125
    %v1921 = vmul.f32 %v1877, %v1877
    %v1922 = vmul.f32 %v1879, %v1879
    %v1923 = vmul.f32 %v1883, %v1883
    %v1924 = vmul.f32 %v1885, %v1885
    %v1925 = vmul.f32 %v1889, %v1889
    %v1926 = vmul.f32 %v1891, %v1891
    %v1927 = vmul.f32 %v1895, %v1895
    %v1928 = vmul.f32 %v1897, %v1897
    %v1929 = vadd.f32 %v1921, %v1923
    %v1930 = vadd.f32 %v1929, %v1925
    %v1931 = vadd.f32 %v1930, %v1927
    %v1932 = vrot.slane %v1931, 4
    %v1933 = vadd.f32 %v1931, %v1932
    %v1934 = vrot.slane %v1933, 2
    %v1935 = vadd.f32 %v1933, %v1934
    %v1936 = vrot.slane %v1935, 1
    %v1937 = vadd.f32 %v1935, %v1936
    %v1938 = vadd.f32 %v1922, %v1924
    %v1939 = vadd.f32 %v1938, %v1926
    %v1940 = vadd.f32 %v1939, %v1928
    %v1941 = vrot.slane %v1940, 4
    %v1942 = vadd.f32 %v1940, %v1941
    %v1943 = vrot.slane %v1942, 2
    %v1944 = vadd.f32 %v1942, %v1943
    %v1945 = vrot.slane %v1944, 1
    %v1946 = vadd.f32 %v1944, %v1945
    %v1947 = vmul.f32 %v1937, 0.03125
    %v1948 = vmul.f32 %v1946, 0.03125
    %v1949 = vmul.f32 %v1919, %v1919
    %v1950 = vmul.f32 %v1920, %v1920
    %v1951 = vsub.f32 %v1947, %v1949
    %v1952 = vsub.f32 %v1948, %v1950
    %v1953 = vsub.f32 %v1877, %v1919
    %v1954 = vsub.f32 %v1879, %v1920
    %v1955 = vsub.f32 %v1883, %v1919
    %v1956 = vsub.f32 %v1885, %v1920
    %v1957 = vsub.f32 %v1889, %v1919
    %v1958 = vsub.f32 %v1891, %v1920
    %v1959 = vsub.f32 %v1895, %v1919
    %v1960 = vsub.f32 %v1897, %v1920
    %v1961 = vadd.f32 %v1951, 1e-05
    %v1962 = vadd.f32 %v1952, 1e-05
    %v1963 = vrsqrt.pop %v1961
    %v1964 = vrsqrt.pop %v1962
    %v1965 = vmul.f32 %v1953, %v1963
    %v1966 = vmul.f32 %v1954, %v1964
    %v1967 = vmul.f32 %v1955, %v1963
    %v1968 = vmul.f32 %v1956, %v1964
    %v1969 = vmul.f32 %v1957, %v1963
    %v1970 = vmul.f32 %v1958, %v1964
    %v1971 = vmul.f32 %v1959, %v1963
    %v1972 = vmul.f32 %v1960, %v1964
    %v1974 = vlaneseq
    %v1975 = vshrl.u32 %v1974, 7
    %v1976 = vsub.s32 0, %v1975
    %v1977 = vrot.slane %v1899, %v1976
    %v1978 = vlaneseq
    %v1979 = vshrl.u32 %v1978, 7
    %v1980 = vsub.s32 1, %v1979
    %v1981 = vrot.slane %v1899, %v1980
    %v1984 = vmul.f32 %v1965, %v1977
    %v1985 = vmul.f32 %v1966, %v1981
    %v1986 = vmul.f32 %v1967, %v1977
    %v1987 = vmul.f32 %v1968, %v1981
    %v1988 = vmul.f32 %v1969, %v1977
    %v1989 = vmul.f32 %v1970, %v1981
    %v1990 = vmul.f32 %v1971, %v1977
    %v1991 = vmul.f32 %v1972, %v1981
    %v1993 = vlaneseq
    %v1994 = vshrl.u32 %v1993, 7
    %v1995 = vsub.s32 0, %v1994
    %v1996 = vrot.slane %v1900, %v1995
    %v1997 = vlaneseq
    %v1998 = vshrl.u32 %v1997, 7
    %v1999 = vsub.s32 1, %v1998
    %v2000 = vrot.slane %v1900, %v1999
    %v2003 = vadd.f32 %v1984, %v1996
    %v2004 = vadd.f32 %v1985, %v2000
    %v2005 = vadd.f32 %v1986, %v1996
    %v2006 = vadd.f32 %v1987, %v2000
    %v2007 = vadd.f32 %v1988, %v1996
    %v2008 = vadd.f32 %v1989, %v2000
    %v2009 = vadd.f32 %v1990, %v1996
    %v2010 = vadd.f32 %v1991, %v2000
    %v2011 = vmax.f32 %v2003, %v2005
    %v2012 = vrot.slane %v2011, 4
    %v2013 = vmax.f32 %v2011, %v2012
    %v2014 = vrot.slane %v2013, 2
    %v2015 = vmax.f32 %v2013, %v2014
    %v2016 = vrot.slane %v2015, 1
    %v2017 = vmax.f32 %v2015, %v2016
    %v2018 = vmax.f32 %v2004, %v2006
    %v2019 = vrot.slane %v2018, 4
    %v2020 = vmax.f32 %v2018, %v2019
    %v2021 = vrot.slane %v2020, 2
    %v2022 = vmax.f32 %v2020, %v2021
    %v2023 = vrot.slane %v2022, 1
    %v2024 = vmax.f32 %v2022, %v2023
    %v2025 = vmax.f32 %v2007, %v2009
    %v2026 = vrot.slane %v2025, 4
    %v2027 = vmax.f32 %v2025, %v2026
    %v2028 = vrot.slane %v2027, 2
    %v2029 = vmax.f32 %v2027, %v2028
    %v2030 = vrot.slane %v2029, 1
    %v2031 = vmax.f32 %v2029, %v2030
    %v2032 = vmax.f32 %v2008, %v2010
    %v2033 = vrot.slane %v2032, 4
    %v2034 = vmax.f32 %v2032, %v2033
    %v2035 = vrot.slane %v2034, 2
    %v2036 = vmax.f32 %v2034, %v2035
    %v2037 = vrot.slane %v2036, 1
    %v2038 = vmax.f32 %v2036, %v2037
    %v2039 = vld [vmem:[%s73] sm:$0xff]
    %v2040 = vld [vmem:[%s73 + $0x8] sm:$0xff]
    %v2041 = vld [vmem:[%s73 + $0x10] sm:$0xff]
    %v2042 = vld [vmem:[%s73 + $0x18] sm:$0xff]
    %v2043 = vld [vmem:[%s73 + $0x20] sm:$0xff]
    %v2044 = vld [vmem:[%s73 + $0x28] sm:$0xff]
    %v2045 = vld [vmem:[%s73 + $0x30] sm:$0xff]
    %v2046 = vld [vmem:[%s73 + $0x38] sm:$0xff]
    %v2047 = vld [vmem:[%s73 + $0x40] sm:$0xff]
    %v2048 = vld [vmem:[%s73 + $0x48] sm:$0xff]
    %v2049 = vld [vmem:[%s73 + $0x50] sm:$0xff]
    %v2050 = vld [vmem:[%s73 + $0x58] sm:$0xff]
    %v2051 = vld [vmem:[%s73 + $0x60] sm:$0xff]
    %v2052 = vld [vmem:[%s73 + $0x68] sm:$0xff]
    %v2053 = vld [vmem:[%s73 + $0x70] sm:$0xff]
    %v2054 = vld [vmem:[%s73 + $0x78] sm:$0xff]
    %v2055 = vld [vmem:[%s73 + $0x80] sm:$0xff]
    %v2056 = vld [vmem:[%s73 + $0x88] sm:$0xff]
    %v2057 = vld [vmem:[%s73 + $0x90] sm:$0xff]
    %v2058 = vld [vmem:[%s73 + $0x98] sm:$0xff]
    %v2059 = vld [vmem:[%s73 + $0xa0] sm:$0xff]
    %v2060 = vld [vmem:[%s73 + $0xa8] sm:$0xff]
    %v2061 = vld [vmem:[%s73 + $0xb0] sm:$0xff]
    %v2062 = vld [vmem:[%s73 + $0xb8] sm:$0xff]
    %v2063 = vld [vmem:[%s73 + $0xc0] sm:$0xff]
    %v2064 = vld [vmem:[%s73 + $0xc8] sm:$0xff]
    %v2065 = vld [vmem:[%s73 + $0xd0] sm:$0xff]
    %v2066 = vld [vmem:[%s73 + $0xd8] sm:$0xff]
    %v2067 = vld [vmem:[%s73 + $0xe0] sm:$0xff]
    %v2068 = vld [vmem:[%s73 + $0xe8] sm:$0xff]
    %v2069 = vld [vmem:[%s73 + $0xf0] sm:$0xff]
    %v2070 = vld [vmem:[%s73 + $0xf8] sm:$0xff]
    %v2071 = vld [vmem:[%s75] sm:$0x1]
    %v2073 = vlaneseq
    %v2074 = vshrl.u32 %v2073, 7
    %v2075 = vsub.s32 0, %v2074
    %v2076 = vrot.slane %v2071, %v2075
    %v2082 = vsel %vm868, %v2031, %v2017
    %v2083 = vsel %vm868, %v2038, %v2024
    %2086 = vmatprep.subr.mxu0 0.0
    %2087 = vmatpush1.msra.mxu0 %v2054
    %2088 = vmatprep.subr.mxu0 0.0
    %2089 = vmatpush1.msra.mxu0 %v2053
    %2090 = vmatprep.subr.mxu0 0.0
    %2091 = vmatpush1.msra.mxu0 %v2052
    %2092 = vmatprep.subr.mxu0 0.0
    %2093 = vmatpush1.msra.mxu0 %v2051
    %2094 = vmatprep.subr.mxu0 0.0
    %2095 = vmatpush1.msra.mxu0 %v2050
    %2096 = vmatprep.subr.mxu0 0.0
    %2097 = vmatpush1.msra.mxu0 %v2049
    %2098 = vmatprep.subr.mxu0 0.0
    %2099 = vmatpush1.msra.mxu0 %v2048
    %2100 = vmatprep.subr.mxu0 0.0
    %2101 = vmatpush1.msra.mxu0 %v2047
    %2102 = vmatprep.subr.mxu0 0.0
    %2103 = vmatpush1.msra.mxu0 %v2046
    %2104 = vmatprep.subr.mxu0 0.0
    %2105 = vmatpush1.msra.mxu0 %v2045
    %2106 = vmatprep.subr.mxu0 0.0
    %2107 = vmatpush1.msra.mxu0 %v2044
    %2108 = vmatprep.subr.mxu0 0.0
    %2109 = vmatpush1.msra.mxu0 %v2043
    %2110 = vmatprep.subr.mxu0 0.0
    %2111 = vmatpush1.msra.mxu0 %v2042
    %2112 = vmatprep.subr.mxu0 0.0
    %2113 = vmatpush1.msra.mxu0 %v2041
    %2114 = vmatprep.subr.mxu0 0.0
    %2115 = vmatpush1.msra.mxu0 %v2040
    %2116 = vmatprep.subr.mxu0 0.0
    %2117 = vmatpush1.msra.mxu0 %v2039
    %2118 = vmatprep.subr.mxu0 0.0
    %2119 = vmatpush2.msra.mxu0 %v2070
    %2120 = vmatprep.subr.mxu0 0.0
    %2121 = vmatpush2.msra.mxu0 %v2069
    %2122 = vmatprep.subr.mxu0 0.0
    %2123 = vmatpush2.msra.mxu0 %v2068
    %2124 = vmatprep.subr.mxu0 0.0
    %2125 = vmatpush2.msra.mxu0 %v2067
    %2126 = vmatprep.subr.mxu0 0.0
    %2127 = vmatpush2.msra.mxu0 %v2066
    %2128 = vmatprep.subr.mxu0 0.0
    %2129 = vmatpush2.msra.mxu0 %v2065
    %2130 = vmatprep.subr.mxu0 0.0
    %2131 = vmatpush2.msra.mxu0 %v2064
    %2132 = vmatprep.subr.mxu0 0.0
    %2133 = vmatpush2.msra.mxu0 %v2063
    %2134 = vmatprep.subr.mxu0 0.0
    %2135 = vmatpush2.msra.mxu0 %v2062
    %2136 = vmatprep.subr.mxu0 0.0
    %2137 = vmatpush2.msra.mxu0 %v2061
    %2138 = vmatprep.subr.mxu0 0.0
    %2139 = vmatpush2.msra.mxu0 %v2060
    %2140 = vmatprep.subr.mxu0 0.0
    %2141 = vmatpush2.msra.mxu0 %v2059
    %2142 = vmatprep.subr.mxu0 0.0
    %2143 = vmatpush2.msra.mxu0 %v2058
    %2144 = vmatprep.subr.mxu0 0.0
    %2145 = vmatpush2.msra.mxu0 %v2057
    %2146 = vmatprep.subr.mxu0 0.0
    %2147 = vmatpush2.msra.mxu0 %v2056
    %2148 = vmatprep.subr.mxu0 0.0
    %2149 = vmatpush2.msra.mxu0 %v2055
    %2150 = vmatprep.mubr.f32.mxu0 %v2083
    %2151 = vmatmul.mubr.f32.gmra.mxu0 %v2082
    %v2152 = vpop.f32.mrf.mxu0
    %v2153 = vadd.f32 %v2076, %v2152
    %v2154 = vpop.f32.mrf.mxu0
    %2155 = vdwg.mxu0
    %v2156 = vld [vmem:[%s77] sm:$0x1]
    %v2157 = vld [vmem:[%s79] sm:$0x1]
    %v2158 = vsel %vm945, %v2153, 0.0
    %v2159 = vrot.slane %v2158, 4
    %v2160 = vadd.f32 %v2158, %v2159
    %v2161 = vrot.slane %v2160, 2
    %v2162 = vadd.f32 %v2160, %v2161
    %v2163 = vrot.slane %v2162, 1
    %v2164 = vadd.f32 %v2162, %v2163
    %v2165 = vmul.f32 %v2164, 0.5
    %v2166 = vmul.f32 %v2153, %v2153
    %v2167 = vsel %vm945, %v2166, 0.0
    %v2168 = vrot.slane %v2167, 4
    %v2169 = vadd.f32 %v2167, %v2168
    %v2170 = vrot.slane %v2169, 2
    %v2171 = vadd.f32 %v2169, %v2170
    %v2172 = vrot.slane %v2171, 1
    %v2173 = vadd.f32 %v2171, %v2172
    %v2174 = vmul.f32 %v2173, 0.5
    %v2175 = vmul.f32 %v2165, %v2165
    %v2176 = vsub.f32 %v2174, %v2175
    %v2177 = vsub.f32 %v2153, %v2165
    %v2178 = vadd.f32 %v2176, 1e-05
    %v2179 = vrsqrt.pop %v2178
    %v2180 = vmul.f32 %v2177, %v2179
    %v2182 = vlaneseq
    %v2183 = vshrl.u32 %v2182, 7
    %v2184 = vsub.s32 0, %v2183
    %v2185 = vrot.slane %v2156, %v2184
    %v2187 = vmul.f32 %v2180, %v2185
    %v2189 = vlaneseq
    %v2190 = vshrl.u32 %v2189, 7
    %v2191 = vsub.s32 0, %v2190
    %v2192 = vrot.slane %v2157, %v2191
    %v2194 = vadd.f32 %v2187, %v2192
    %v2195 = vmax.f32 %v2194, 0.0
    %v2196 = vld [vmem:[%s81] sm:$0xff]
    %v2197 = vld [vmem:[%s81 + $0x8] sm:$0xff]
    %v2198 = vld [vmem:[%s81 + $0x10] sm:$0xff]
    %v2199 = vld [vmem:[%s81 + $0x18] sm:$0xff]
    %v2200 = vld [vmem:[%s81 + $0x20] sm:$0xff]
    %v2201 = vld [vmem:[%s81 + $0x28] sm:$0xff]
    %v2202 = vld [vmem:[%s81 + $0x30] sm:$0xff]
    %v2203 = vld [vmem:[%s81 + $0x38] sm:$0xff]
    %v2204 = vld [vmem:[%s81 + $0x40] sm:$0xff]
    %v2205 = vld [vmem:[%s81 + $0x48] sm:$0xff]
    %v2206 = vld [vmem:[%s81 + $0x50] sm:$0xff]
    %v2207 = vld [vmem:[%s81 + $0x58] sm:$0xff]
    %v2208 = vld [vmem:[%s81 + $0x60] sm:$0xff]
    %v2209 = vld [vmem:[%s81 + $0x68] sm:$0xff]
    %v2210 = vld [vmem:[%s81 + $0x70] sm:$0xff]
    %v2211 = vld [vmem:[%s81 + $0x78] sm:$0xff]
    %v2212 = vld [vmem:[%s83] sm:$0x1]
    %v2214 = vlaneseq
    %v2215 = vshrl.u32 %v2214, 7
    %v2216 = vsub.s32 0, %v2215
    %v2217 = vrot.slane %v2212, %v2216
    %2219 = vmatprep.subr.mxu0 0.0
    %2220 = vmatpush1.msra.mxu0 %v2211
    %2221 = vmatprep.subr.mxu0 0.0
    %2222 = vmatpush1.msra.mxu0 %v2210
    %2223 = vmatprep.subr.mxu0 0.0
    %2224 = vmatpush1.msra.mxu0 %v2209
    %2225 = vmatprep.subr.mxu0 0.0
    %2226 = vmatpush1.msra.mxu0 %v2208
    %2227 = vmatprep.subr.mxu0 0.0
    %2228 = vmatpush1.msra.mxu0 %v2207
    %2229 = vmatprep.subr.mxu0 0.0
    %2230 = vmatpush1.msra.mxu0 %v2206
    %2231 = vmatprep.subr.mxu0 0.0
    %2232 = vmatpush1.msra.mxu0 %v2205
    %2233 = vmatprep.subr.mxu0 0.0
    %2234 = vmatpush1.msra.mxu0 %v2204
    %2235 = vmatprep.subr.mxu0 0.0
    %2236 = vmatpush1.msra.mxu0 %v2203
    %2237 = vmatprep.subr.mxu0 0.0
    %2238 = vmatpush1.msra.mxu0 %v2202
    %2239 = vmatprep.subr.mxu0 0.0
    %2240 = vmatpush1.msra.mxu0 %v2201
    %2241 = vmatprep.subr.mxu0 0.0
    %2242 = vmatpush1.msra.mxu0 %v2200
    %2243 = vmatprep.subr.mxu0 0.0
    %2244 = vmatpush1.msra.mxu0 %v2199
    %2245 = vmatprep.subr.mxu0 0.0
    %2246 = vmatpush1.msra.mxu0 %v2198
    %2247 = vmatprep.subr.mxu0 0.0
    %2248 = vmatpush1.msra.mxu0 %v2197
    %2249 = vmatprep.subr.mxu0 0.0
    %2250 = vmatpush1.msra.mxu0 %v2196
    %2251 = vmatprep.subr.mxu0 0.0
    %2252 = vmatpush2.msra.mxu0 0.0
    %2253 = vmatprep.subr.mxu0 0.0
    %2254 = vmatpush2.msra.mxu0 0.0
    %2255 = vmatprep.subr.mxu0 0.0
    %2256 = vmatpush2.msra.mxu0 0.0
    %2257 = vmatprep.subr.mxu0 0.0
    %2258 = vmatpush2.msra.mxu0 0.0
    %2259 = vmatprep.subr.mxu0 0.0
    %2260 = vmatpush2.msra.mxu0 0.0
    %2261 = vmatprep.subr.mxu0 0.0
    %2262 = vmatpush2.msra.mxu0 0.0
    %2263 = vmatprep.subr.mxu0 0.0
    %2264 = vmatpush2.msra.mxu0 0.0
    %2265 = vmatprep.subr.mxu0 0.0
    %2266 = vmatpush2.msra.mxu0 0.0
    %2267 = vmatprep.subr.mxu0 0.0
    %2268 = vmatpush2.msra.mxu0 0.0
    %2269 = vmatprep.subr.mxu0 0.0
    %2270 = vmatpush2.msra.mxu0 0.0
    %2271 = vmatprep.subr.mxu0 0.0
    %2272 = vmatpush2.msra.mxu0 0.0
    %2273 = vmatprep.subr.mxu0 0.0
    %2274 = vmatpush2.msra.mxu0 0.0
    %2275 = vmatprep.subr.mxu0 0.0
    %2276 = vmatpush2.msra.mxu0 0.0
    %2277 = vmatprep.subr.mxu0 0.0
    %2278 = vmatpush2.msra.mxu0 0.0
    %2279 = vmatprep.subr.mxu0 0.0
    %2280 = vmatpush2.msra.mxu0 0.0
    %2281 = vmatprep.subr.mxu0 0.0
    %2282 = vmatpush2.msra.mxu0 0.0
    %2283 = vmatprep.mubr.f32.mxu0 0.0
    %2284 = vmatmul.mubr.f32.gmra.mxu0 %v2195
    %v2285 = vpop.f32.mrf.mxu0
    %v2286 = vadd.f32 %v2217, %v2285
    %v2287 = vpop.f32.mrf.mxu0
    %2288 = vdwg.mxu0
    %v2289 = vld [vmem:[%s85] sm:$0x1]
    %v2290 = vld [vmem:[%s87] sm:$0x1]
    %v2291 = vsel %vm1079, %v2286, 0.0
    %v2292 = vrot.slane %v2291, 4
    %v2293 = vadd.f32 %v2291, %v2292
    %v2294 = vrot.slane %v2293, 2
    %v2295 = vadd.f32 %v2293, %v2294
    %v2296 = vrot.slane %v2295, 1
    %v2297 = vadd.f32 %v2295, %v2296
    %v2298 = vmul.f32 %v2297, 0.5
    %v2299 = vmul.f32 %v2286, %v2286
    %v2300 = vsel %vm1079, %v2299, 0.0
    %v2301 = vrot.slane %v2300, 4
    %v2302 = vadd.f32 %v2300, %v2301
    %v2303 = vrot.slane %v2302, 2
    %v2304 = vadd.f32 %v2302, %v2303
    %v2305 = vrot.slane %v2304, 1
    %v2306 = vadd.f32 %v2304, %v2305
    %v2307 = vmul.f32 %v2306, 0.5
    %v2308 = vmul.f32 %v2298, %v2298
    %v2309 = vsub.f32 %v2307, %v2308
    %v2310 = vsub.f32 %v2286, %v2298
    %v2311 = vadd.f32 %v2309, 1e-05
    %v2312 = vrsqrt.pop %v2311
    %v2313 = vmul.f32 %v2310, %v2312
    %v2315 = vlaneseq
    %v2316 = vshrl.u32 %v2315, 7
    %v2317 = vsub.s32 0, %v2316
    %v2318 = vrot.slane %v2289, %v2317
    %v2320 = vmul.f32 %v2313, %v2318
    %v2322 = vlaneseq
    %v2323 = vshrl.u32 %v2322, 7
    %v2324 = vsub.s32 0, %v2323
    %v2325 = vrot.slane %v2290, %v2324
    %v2327 = vadd.f32 %v2320, %v2325
    %v2328 = vmax.f32 %v2327, 0.0
    %v2329 = vld [vmem:[%s89] sm:$0xff]
    %v2330 = vld [vmem:[%s89 + $0x8] sm:$0xff]
    %v2331 = vld [vmem:[%s89 + $0x10] sm:$0xff]
    %v2332 = vld [vmem:[%s89 + $0x18] sm:$0xff]
    %v2333 = vld [vmem:[%s89 + $0x20] sm:$0xff]
    %v2334 = vld [vmem:[%s89 + $0x28] sm:$0xff]
    %v2335 = vld [vmem:[%s89 + $0x30] sm:$0xff]
    %v2336 = vld [vmem:[%s89 + $0x38] sm:$0xff]
    %v2337 = vld [vmem:[%s91] sm:$0x1]
    %v2339 = vlaneseq
    %v2340 = vshrl.u32 %v2339, 7
    %v2341 = vsub.s32 0, %v2340
    %v2342 = vrot.slane %v2337, %v2341
    %v2345 = vsel %vm1133, %v2328, 0
    %2347 = vmatprep.subr.mxu0 0.0
    %2348 = vmatpush1.msra.mxu0 0.0
    %2349 = vmatprep.subr.mxu0 0.0
    %2350 = vmatpush1.msra.mxu0 0.0
    %2351 = vmatprep.subr.mxu0 0.0
    %2352 = vmatpush1.msra.mxu0 0.0
    %2353 = vmatprep.subr.mxu0 0.0
    %2354 = vmatpush1.msra.mxu0 0.0
    %2355 = vmatprep.subr.mxu0 0.0
    %2356 = vmatpush1.msra.mxu0 0.0
    %2357 = vmatprep.subr.mxu0 0.0
    %2358 = vmatpush1.msra.mxu0 0.0
    %2359 = vmatprep.subr.mxu0 0.0
    %2360 = vmatpush1.msra.mxu0 0.0
    %2361 = vmatprep.subr.mxu0 0.0
    %2362 = vmatpush1.msra.mxu0 0.0
    %2363 = vmatprep.subr.mxu0 0.0
    %2364 = vmatpush1.msra.mxu0 %v2336
    %2365 = vmatprep.subr.mxu0 0.0
    %2366 = vmatpush1.msra.mxu0 %v2335
    %2367 = vmatprep.subr.mxu0 0.0
    %2368 = vmatpush1.msra.mxu0 %v2334
    %2369 = vmatprep.subr.mxu0 0.0
    %2370 = vmatpush1.msra.mxu0 %v2333
    %2371 = vmatprep.subr.mxu0 0.0
    %2372 = vmatpush1.msra.mxu0 %v2332
    %2373 = vmatprep.subr.mxu0 0.0
    %2374 = vmatpush1.msra.mxu0 %v2331
    %2375 = vmatprep.subr.mxu0 0.0
    %2376 = vmatpush1.msra.mxu0 %v2330
    %2377 = vmatprep.subr.mxu0 0.0
    %2378 = vmatpush1.msra.mxu0 %v2329
    %2379 = vmatprep.subr.mxu0 0.0
    %2380 = vmatpush2.msra.mxu0 0.0
    %2381 = vmatprep.subr.mxu0 0.0
    %2382 = vmatpush2.msra.mxu0 0.0
    %2383 = vmatprep.subr.mxu0 0.0
    %2384 = vmatpush2.msra.mxu0 0.0
    %2385 = vmatprep.subr.mxu0 0.0
    %2386 = vmatpush2.msra.mxu0 0.0
    %2387 = vmatprep.subr.mxu0 0.0
    %2388 = vmatpush2.msra.mxu0 0.0
    %2389 = vmatprep.subr.mxu0 0.0
    %2390 = vmatpush2.msra.mxu0 0.0
    %2391 = vmatprep.subr.mxu0 0.0
    %2392 = vmatpush2.msra.mxu0 0.0
    %2393 = vmatprep.subr.mxu0 0.0
    %2394 = vmatpush2.msra.mxu0 0.0
    %2395 = vmatprep.subr.mxu0 0.0
    %2396 = vmatpush2.msra.mxu0 0.0
    %2397 = vmatprep.subr.mxu0 0.0
    %2398 = vmatpush2.msra.mxu0 0.0
    %2399 = vmatprep.subr.mxu0 0.0
    %2400 = vmatpush2.msra.mxu0 0.0
    %2401 = vmatprep.subr.mxu0 0.0
    %2402 = vmatpush2.msra.mxu0 0.0
    %2403 = vmatprep.subr.mxu0 0.0
    %2404 = vmatpush2.msra.mxu0 0.0
    %2405 = vmatprep.subr.mxu0 0.0
    %2406 = vmatpush2.msra.mxu0 0.0
    %2407 = vmatprep.subr.mxu0 0.0
    %2408 = vmatpush2.msra.mxu0 0.0
    %2409 = vmatprep.subr.mxu0 0.0
    %2410 = vmatpush2.msra.mxu0 0.0
    %2411 = vmatprep.mubr.f32.mxu0 0.0
    %2412 = vmatmul.mubr.f32.gmra.mxu0 %v2345
    %v2413 = vpop.f32.mrf.mxu0
    %v2414 = vadd.f32 %v2342, %v2413
    %v2415 = vpop.f32.mrf.mxu0
    %2416 = vdwg.mxu0
    %vm2417 = vcmask 9216
    %v2418 = vsel %vm2417, %v2414, -inf
    %2419 = vmax.xlane.f32.xlu0 %v2418
    %v2420 = vpop.xlane.xlu0 %2419
    %v2421 = vsub.f32 %v2414, %v2420
    %v2422 = vmul.f32 %v2421, 1.442695
    %v2423 = vpow.pop %v2422
    %v2424 = vsel %vm2417, %v2423, 0.0
    %2425 = vadd.xlane.f32.xlu0 %v2424
    %v2426 = vpop.xlane.xlu0 %2425
    %v2427 = vlog2.pop %v2426
    %v2428 = vmul.f32 %v2427, 0.6931472
    %v2429 = vsub.f32 %v2421, %v2428
    %2430 = vst.msk [vmem:[#allocation2] sm:$0x3] %vm2417, %v2429
    // Predicated region
    $region186: #{pointnet_cls_forward.1} parent=1 // pred_check
      _
    $region187: #{pointnet_cls_forward.1} parent=1 // pred_check_branch
      %2432 = sbr.rel (0) target = $region189
    $region188: #{pointnet_cls_forward.1} parent=1 // pred_region
      %s2434 = ssub.s32 32, 32
      %2435 = vsyncadd [#allocation3], %s2434
      %s2437 = sshll.u32 [#allocation2], 4
      %s2438 = int_to_ptr.vmem [resolvable:$true] %s2437
      %2440 = dma.vmem_to_hbm [thread:$0]  %s2438, 32, %s93, [#allocation3]
    $region189: #{pointnet_cls_forward.1} parent=1 // pred_fallthru
      _
    // Predicated region
    $region190: #{pointnet_cls_forward.1} parent=1 // pred_check
      _
    $region191: #{pointnet_cls_forward.1} parent=1 // pred_check_branch
      %2442 = sbr.rel (0) target = $region193
    $region192: #{pointnet_cls_forward.1} parent=1 // pred_region
      _
    $region193: #{pointnet_cls_forward.1} parent=1 // pred_fallthru
      _
    // Predicated region
    $region194: #{pointnet_cls_forward.1} parent=1 // pred_check
      _
    $region195: #{pointnet_cls_forward.1} parent=1 // pred_check_branch
      %2444 = sbr.rel (0) target = $region197
    $region196: #{pointnet_cls_forward.1} parent=1 // pred_region
      %2445 = dma.done [#allocation3], 32
    $region197: #{pointnet_cls_forward.1} parent=1 // pred_fallthru
      _
    // Predicated region
    $region198: #{pointnet_cls_forward.1} parent=1 // pred_check
      _
    $region199: #{pointnet_cls_forward.1} parent=1 // pred_check_branch
      %2447 = sbr.rel (0) target = $region201
    $region200: #{pointnet_cls_forward.1} parent=1 // pred_region
      _
    $region201: #{pointnet_cls_forward.1} parent=1 // pred_fallthru
      _
    %2448 = vsyncpa [#allocation3], 1

</llo_original>
